<compile_context>
chip_gen: v6e
topology: v6e:2x2x1
jax: 0.10.0
libtpu: 0.0.40
codegen_flags: <defaults>
</compile_context>

<pallas_src>
import jax
import jax.numpy as jnp
from jax.experimental import pallas as pl
from jax.experimental.pallas import tpu as pltpu


# ----------------------------------------------------------------------------
# Fused kernel: one batch element per grid step, everything in VMEM.
# ----------------------------------------------------------------------------
def _fused_seg_kernel(x_ref, w1_ref, b1_ref, w2_ref, b2_ref,
                      w3_ref, b3_ref, w4_ref, b4_ref, o_ref):
    f32 = jnp.float32

    def pad1_hw(x):
        # zero-pad 1 pixel on each spatial side: (h, w, c) -> (h+2, w+2, c)
        h, w, c = x.shape
        zc = jnp.zeros((h, 1, c), x.dtype)
        x = jnp.concatenate([zc, x, zc], axis=1)
        zr = jnp.zeros((1, w + 2, c), x.dtype)
        return jnp.concatenate([zr, x, zr], axis=0)

    def conv3x3_relu_pool2x2(x, w_ref, b_ref):
        # x: (h, w, c); w_ref: (9*c, co); b_ref: (1, co)  ->  (h/2, w/2, co)
        h, w, c = x.shape
        xp = pad1_hw(x)
        # im2col: all 9 taps concatenated on the lane (channel) dim -> one
        # large-K MXU matmul instead of 9 tiny ones.
        cols = jnp.concatenate(
            [xp[dy:dy + h, dx:dx + w, :] for dy in range(3) for dx in range(3)],
            axis=-1).reshape(h * w, 9 * c)
        acc = jnp.dot(cols, w_ref[...], preferred_element_type=f32)
        acc = jnp.maximum(acc + b_ref[...], 0.0)          # bias + ReLU (hoisted)
        co = acc.shape[-1]
        y = acc.reshape(h // 2, 2, w // 2, 2, co)         # 2x2 max pool
        return jnp.maximum(jnp.maximum(y[:, 0, :, 0, :], y[:, 0, :, 1, :]),
                           jnp.maximum(y[:, 1, :, 0, :], y[:, 1, :, 1, :]))

    p1 = conv3x3_relu_pool2x2(x_ref[...], w1_ref, b1_ref)   # (H/2, W/2, 32)
    p2 = conv3x3_relu_pool2x2(p1, w2_ref, b2_ref)           # (H/4, W/4, 64)

    h4, w4, c2 = p2.shape
    feat = p2.reshape(h4 * w4, c2)                          # (H4*W4, 64)

    # upconv1 (k=2, s=2): all 4 (dy, dx) phases fused into the N dim -> one
    # matmul, lane-dense (H4*W4, 4*32) result.
    y1 = jnp.maximum(
        jnp.dot(feat, w3_ref[...], preferred_element_type=f32) + b3_ref[...],
        0.0)

    # upconv2 (k=2, s=2, Cout=1): block-diagonal phase weight (4*32, 16) keeps
    # the (dy, dx) phase of y1 and adds the (ey, ex) phase -> one matmul.
    z = jax.nn.sigmoid(
        jnp.dot(y1, w4_ref[...], preferred_element_type=f32) + b4_ref[...])

    # Phase-factored output: rows = coarse pixel p = i*W4 + j,
    # cols = ((dy*2 + dx)*2 + ey)*2 + ex.  Spatial interleave happens in the
    # wrapper (cheap XLA reshape/transpose on 2 KB of data).
    o_ref[...] = z


# ----------------------------------------------------------------------------
# Model wrapper (NCHW in / NCHW out, like the PyTorch module).
# ----------------------------------------------------------------------------
def init_params(key, in_channels=11):
    ks = jax.random.split(key, 8)

    def conv_w(k, cout, cin, kh, kw):
        # PyTorch layout (Cout, Cin, kH, kW) -> (kH, kW, Cin, Cout)
        std = (2.0 / (cin * kh * kw)) ** 0.5
        w = jax.random.normal(k, (cout, cin, kh, kw), jnp.float32) * std
        return jnp.transpose(w, (2, 3, 1, 0))

    def deconv_w(k, cin, cout, kh, kw):
        # PyTorch ConvTranspose layout (Cin, Cout, kH, kW) -> (kH, kW, Cin, Cout)
        std = (2.0 / (cin * kh * kw)) ** 0.5
        w = jax.random.normal(k, (cin, cout, kh, kw), jnp.float32) * std
        return jnp.transpose(w, (2, 3, 0, 1))

    return {
        "w1": conv_w(ks[0], 32, in_channels, 3, 3),
        "b1": 0.01 * jax.random.normal(ks[1], (32,), jnp.float32),
        "w2": conv_w(ks[2], 64, 32, 3, 3),
        "b2": 0.01 * jax.random.normal(ks[3], (64,), jnp.float32),
        "w3": deconv_w(ks[4], 64, 32, 2, 2),
        "b3": 0.01 * jax.random.normal(ks[5], (32,), jnp.float32),
        "w4": deconv_w(ks[6], 32, 1, 2, 2),
        "b4": 0.01 * jax.random.normal(ks[7], (1,), jnp.float32),
    }


@jax.jit
def segmentation_forward(x_nchw, params):
    N, Cin, H, W = x_nchw.shape
    assert H % 4 == 0 and W % 4 == 0, "spatial dims must be divisible by 4"

    x = jnp.transpose(x_nchw, (0, 2, 3, 1))                 # NCHW -> NHWC

    w1, b1 = params["w1"], params["b1"]                     # (3,3,Cin,32), (32,)
    w2, b2 = params["w2"], params["b2"]                     # (3,3,32,64),  (64,)
    w3, b3 = params["w3"], params["b3"]                     # (2,2,64,32),  (32,)
    w4, b4 = params["w4"], params["b4"]                     # (2,2,32,1),   (1,)
    C1, C2, C3, C4 = w1.shape[-1], w2.shape[-1], w3.shape[-1], w4.shape[-1]

    # --- fused weight layouts (prepared once, tiny XLA ops) -----------------
    w1r = w1.reshape(9 * Cin, C1)                           # (9*Cin, 32)
    b1r = b1.reshape(1, C1)
    w2r = w2.reshape(9 * C1, C2)                            # (288, 64)
    b2r = b2.reshape(1, C2)
    # upconv1: columns ordered (dy, dx, co)
    w3f = jnp.transpose(w3, (2, 0, 1, 3)).reshape(C2, 4 * C3)       # (64, 128)
    b3f = jnp.tile(b3, 4).reshape(1, 4 * C3)
    # upconv2: block-diagonal over the (dy, dx) phase of y1
    w4p = jnp.transpose(w4, (2, 0, 1, 3)).reshape(C3, 4 * C4)       # (32, 4)
    w4big = jnp.einsum("pq,ce->pcqe", jnp.eye(4, dtype=w4.dtype),
                       w4p).reshape(4 * C3, 16 * C4)                # (128, 16)
    b4big = jnp.tile(b4, 16).reshape(1, 16 * C4)

    H4, W4 = H // 4, W // 4
    z = pl.pallas_call(
        _fused_seg_kernel,
        out_shape=jax.ShapeDtypeStruct((N, H4 * W4, 16 * C4), jnp.float32),
        grid=(N,),
        in_specs=[
            pl.BlockSpec((None, H, W, Cin), lambda n: (n, 0, 0, 0)),
            pl.BlockSpec((9 * Cin, C1), lambda n: (0, 0)),
            pl.BlockSpec((1, C1), lambda n: (0, 0)),
            pl.BlockSpec((9 * C1, C2), lambda n: (0, 0)),
            pl.BlockSpec((1, C2), lambda n: (0, 0)),
            pl.BlockSpec((C2, 4 * C3), lambda n: (0, 0)),
            pl.BlockSpec((1, 4 * C3), lambda n: (0, 0)),
            pl.BlockSpec((4 * C3, 16 * C4), lambda n: (0, 0)),
            pl.BlockSpec((1, 16 * C4), lambda n: (0, 0)),
        ],
        out_specs=pl.BlockSpec((None, H4 * W4, 16 * C4), lambda n: (n, 0, 0)),
        compiler_params=pltpu.CompilerParams(
            dimension_semantics=("parallel",)),     # v7x: 2 TCs, 1 image each
    )(x, w1r, b1r, w2r, b2r, w3f, b3f, w4big, b4big)

    # Decode phase-factored output -> spatial NCHW (free/tiny XLA reshuffle).
    # z[n, i*W4+j, ((dy,dx),(ey,ex),co)] -> out[n, co, 4i+2dy+ey, 4j+2dx+ex]
    z8 = z.reshape(N, H4, W4, 2, 2, 2, 2, C4)
    out = jnp.transpose(z8, (0, 7, 1, 3, 5, 2, 4, 6)).reshape(N, C4, H, W)
    return out


# ----------------------------------------------------------------------------
# Pure-JAX reference (same math, no Pallas) for a correctness check.
# ----------------------------------------------------------------------------
def _ref_conv_relu_pool(x, w, b):
    N, H, W, Cin = x.shape
    Cout = w.shape[-1]
    xp = jnp.pad(x, ((0, 0), (1, 1), (1, 1), (0, 0)))
    acc = jnp.zeros((N, H, W, Cout), jnp.float32)
    for dy in range(3):
        for dx in range(3):
            acc = acc + jnp.einsum("nhwi,io->nhwo",
                                   xp[:, dy:dy + H, dx:dx + W, :], w[dy, dx],
                                   precision=jax.lax.Precision.HIGHEST)
    acc = jnp.maximum(acc + b, 0.0)
    return acc.reshape(N, H // 2, 2, W // 2, 2, Cout).max(axis=(2, 4))


def _ref_upconv(x, w, b, act):
    N, H, W, Cin = x.shape
    Cout = w.shape[-1]
    out = jnp.zeros((N, H, 2, W, 2, Cout), jnp.float32)
    for dy in range(2):
        for dx in range(2):
            y = act(jnp.einsum("nhwi,io->nhwo", x, w[dy, dx],
                               precision=jax.lax.Precision.HIGHEST) + b)
            out = out.at[:, :, dy, :, dx, :].set(y)
    return out.reshape(N, 2 * H, 2 * W, Cout)


def reference_forward(x_nchw, p):
    x = jnp.transpose(x_nchw, (0, 2, 3, 1))
    x = _ref_conv_relu_pool(x, p["w1"], p["b1"])
    x = _ref_conv_relu_pool(x, p["w2"], p["b2"])
    x = _ref_upconv(x, p["w3"], p["b3"], lambda v: jnp.maximum(v, 0.0))
    x = _ref_upconv(x, p["w4"], p["b4"], jax.nn.sigmoid)
    return jnp.transpose(x, (0, 3, 1, 2))


if __name__ == "__main__":
    key = jax.random.PRNGKey(0)
    kx, kp = jax.random.split(key)

    # Shapes consistent with the module: batch=2, in_channels=11, 16x16.
    x = jax.random.normal(kx, (2, 11, 16, 16), jnp.float32)
    params = init_params(kp, in_channels=11)

    out = jax.block_until_ready(segmentation_forward(x, params))

    assert out.shape == (2, 1, 16, 16), out.shape
    assert bool(jnp.all(jnp.isfinite(out)))

    ref = reference_forward(x, params)
    assert bool(jnp.allclose(out, ref, rtol=1e-2, atol=1e-2)), (
        float(jnp.max(jnp.abs(out - ref))))

    print("KERNEL_OK")
</pallas_src>

<mosaic_0001>
module attributes {stable_mosaic.version = 11 : i64} {
  func.func @_fused_seg_kernel(%arg0: i32, %arg1: memref<1x16x16x11xf32, #tpu.memory_space<vmem>>, %arg2: memref<99x32xf32, #tpu.memory_space<vmem>>, %arg3: memref<1x32xf32, #tpu.memory_space<vmem>>, %arg4: memref<288x64xf32, #tpu.memory_space<vmem>>, %arg5: memref<1x64xf32, #tpu.memory_space<vmem>>, %arg6: memref<64x128xf32, #tpu.memory_space<vmem>>, %arg7: memref<1x128xf32, #tpu.memory_space<vmem>>, %arg8: memref<128x16xf32, #tpu.memory_space<vmem>>, %arg9: memref<1x16xf32, #tpu.memory_space<vmem>>, %arg10: memref<1x16x16xf32, #tpu.memory_space<vmem>>) attributes {dimension_semantics = [#tpu.dimension_semantics<parallel>], iteration_bounds = array<i64: 2>, scalar_prefetch = 0 : i64, scratch_operands = 0 : i64, tpu.core_type = #tpu.core_type<tc>, window_params = [{transform_indices = @transform_0, window_bounds = array<i64: 1, 16, 16, 11>}, {pipeline_mode = #tpu.pipeline_mode<synchronous>, transform_indices = @transform_1, window_bounds = array<i64: 99, 32>}, {pipeline_mode = #tpu.pipeline_mode<synchronous>, transform_indices = @transform_2, window_bounds = array<i64: 1, 32>}, {pipeline_mode = #tpu.pipeline_mode<synchronous>, transform_indices = @transform_3, window_bounds = array<i64: 288, 64>}, {pipeline_mode = #tpu.pipeline_mode<synchronous>, transform_indices = @transform_4, window_bounds = array<i64: 1, 64>}, {pipeline_mode = #tpu.pipeline_mode<synchronous>, transform_indices = @transform_5, window_bounds = array<i64: 64, 128>}, {pipeline_mode = #tpu.pipeline_mode<synchronous>, transform_indices = @transform_6, window_bounds = array<i64: 1, 128>}, {pipeline_mode = #tpu.pipeline_mode<synchronous>, transform_indices = @transform_7, window_bounds = array<i64: 128, 16>}, {pipeline_mode = #tpu.pipeline_mode<synchronous>, transform_indices = @transform_8, window_bounds = array<i64: 1, 16>}, {transform_indices = @transform_9, window_bounds = array<i64: 1, 16, 16>}]} {
    %c0 = arith.constant 0 : index
    %c0_0 = arith.constant 0 : index
    %c0_1 = arith.constant 0 : index
    %c0_2 = arith.constant 0 : index
    %0 = vector.load %arg1[%c0, %c0_0, %c0_1, %c0_2] : memref<1x16x16x11xf32, #tpu.memory_space<vmem>>, vector<1x16x16x11xf32>
    %1 = vector.shape_cast %0 : vector<1x16x16x11xf32> to vector<16x16x11xf32>
    %cst = arith.constant 0.000000e+00 : f32
    %2 = vector.broadcast %cst : f32 to vector<16x1x11xf32>
    %3 = tpu.concatenate %2, %1, %2 in 1 : vector<16x1x11xf32>, vector<16x16x11xf32>, vector<16x1x11xf32> -> vector<16x18x11xf32>
    %cst_3 = arith.constant 0.000000e+00 : f32
    %4 = vector.broadcast %cst_3 : f32 to vector<1x18x11xf32>
    %5 = tpu.concatenate %4, %3, %4 in 0 : vector<1x18x11xf32>, vector<16x18x11xf32>, vector<1x18x11xf32> -> vector<18x18x11xf32>
    %6 = vector.extract_strided_slice %5 {offsets = [0, 0, 0], sizes = [16, 16, 11], strides = [1, 1, 1]} : vector<18x18x11xf32> to vector<16x16x11xf32>
    %7 = vector.extract_strided_slice %5 {offsets = [0, 1, 0], sizes = [16, 16, 11], strides = [1, 1, 1]} : vector<18x18x11xf32> to vector<16x16x11xf32>
    %8 = vector.extract_strided_slice %5 {offsets = [0, 2, 0], sizes = [16, 16, 11], strides = [1, 1, 1]} : vector<18x18x11xf32> to vector<16x16x11xf32>
    %9 = vector.extract_strided_slice %5 {offsets = [1, 0, 0], sizes = [16, 16, 11], strides = [1, 1, 1]} : vector<18x18x11xf32> to vector<16x16x11xf32>
    %10 = vector.extract_strided_slice %5 {offsets = [1, 1, 0], sizes = [16, 16, 11], strides = [1, 1, 1]} : vector<18x18x11xf32> to vector<16x16x11xf32>
    %11 = vector.extract_strided_slice %5 {offsets = [1, 2, 0], sizes = [16, 16, 11], strides = [1, 1, 1]} : vector<18x18x11xf32> to vector<16x16x11xf32>
    %12 = vector.extract_strided_slice %5 {offsets = [2, 0, 0], sizes = [16, 16, 11], strides = [1, 1, 1]} : vector<18x18x11xf32> to vector<16x16x11xf32>
    %13 = vector.extract_strided_slice %5 {offsets = [2, 1, 0], sizes = [16, 16, 11], strides = [1, 1, 1]} : vector<18x18x11xf32> to vector<16x16x11xf32>
    %14 = vector.extract_strided_slice %5 {offsets = [2, 2, 0], sizes = [16, 16, 11], strides = [1, 1, 1]} : vector<18x18x11xf32> to vector<16x16x11xf32>
    %15 = tpu.concatenate %6, %7, %8, %9, %10, %11, %12, %13, %14 in 2 : vector<16x16x11xf32>, vector<16x16x11xf32>, vector<16x16x11xf32>, vector<16x16x11xf32>, vector<16x16x11xf32>, vector<16x16x11xf32>, vector<16x16x11xf32>, vector<16x16x11xf32>, vector<16x16x11xf32> -> vector<16x16x99xf32>
    %16 = vector.shape_cast %15 : vector<16x16x99xf32> to vector<256x99xf32>
    %c0_4 = arith.constant 0 : index
    %c0_5 = arith.constant 0 : index
    %17 = vector.load %arg2[%c0_4, %c0_5] : memref<99x32xf32, #tpu.memory_space<vmem>>, vector<99x32xf32>
    %cst_6 = arith.constant dense<0.000000e+00> : vector<256x32xf32>
    %18 = tpu.matmul %16, %17, %cst_6 {dimension_numbers = #tpu.dot_dimension_numbers<[1], [0], [0], [1], [0, 0, 1, 1], [], []>} : vector<256x99xf32>, vector<99x32xf32>, vector<256x32xf32> -> vector<256x32xf32>
    %c0_7 = arith.constant 0 : index
    %c0_8 = arith.constant 0 : index
    %19 = vector.load %arg3[%c0_7, %c0_8] : memref<1x32xf32, #tpu.memory_space<vmem>>, vector<1x32xf32>
    %20 = vector.broadcast %19 : vector<1x32xf32> to vector<256x32xf32>
    %21 = arith.addf %18, %20 : vector<256x32xf32>
    %cst_9 = arith.constant 0.000000e+00 : f32
    %22 = vector.broadcast %cst_9 : f32 to vector<256x32xf32>
    %23 = arith.maximumf %21, %22 : vector<256x32xf32>
    %24 = vector.shape_cast %23 : vector<256x32xf32> to vector<8x2x8x2x32xf32>
    %25 = vector.extract_strided_slice %24 {offsets = [0, 0, 0, 0, 0], sizes = [8, 1, 8, 1, 32], strides = [1, 1, 1, 1, 1]} : vector<8x2x8x2x32xf32> to vector<8x1x8x1x32xf32>
    %26 = vector.shape_cast %25 : vector<8x1x8x1x32xf32> to vector<8x8x32xf32>
    %27 = vector.extract_strided_slice %24 {offsets = [0, 0, 0, 1, 0], sizes = [8, 1, 8, 1, 32], strides = [1, 1, 1, 1, 1]} : vector<8x2x8x2x32xf32> to vector<8x1x8x1x32xf32>
    %28 = vector.shape_cast %27 : vector<8x1x8x1x32xf32> to vector<8x8x32xf32>
    %29 = arith.maximumf %26, %28 : vector<8x8x32xf32>
    %30 = vector.extract_strided_slice %24 {offsets = [0, 1, 0, 0, 0], sizes = [8, 1, 8, 1, 32], strides = [1, 1, 1, 1, 1]} : vector<8x2x8x2x32xf32> to vector<8x1x8x1x32xf32>
    %31 = vector.shape_cast %30 : vector<8x1x8x1x32xf32> to vector<8x8x32xf32>
    %32 = vector.extract_strided_slice %24 {offsets = [0, 1, 0, 1, 0], sizes = [8, 1, 8, 1, 32], strides = [1, 1, 1, 1, 1]} : vector<8x2x8x2x32xf32> to vector<8x1x8x1x32xf32>
    %33 = vector.shape_cast %32 : vector<8x1x8x1x32xf32> to vector<8x8x32xf32>
    %34 = arith.maximumf %31, %33 : vector<8x8x32xf32>
    %35 = arith.maximumf %29, %34 : vector<8x8x32xf32>
    %cst_10 = arith.constant 0.000000e+00 : f32
    %36 = vector.broadcast %cst_10 : f32 to vector<8x1x32xf32>
    %37 = tpu.concatenate %36, %35, %36 in 1 : vector<8x1x32xf32>, vector<8x8x32xf32>, vector<8x1x32xf32> -> vector<8x10x32xf32>
    %cst_11 = arith.constant 0.000000e+00 : f32
    %38 = vector.broadcast %cst_11 : f32 to vector<1x10x32xf32>
    %39 = tpu.concatenate %38, %37, %38 in 0 : vector<1x10x32xf32>, vector<8x10x32xf32>, vector<1x10x32xf32> -> vector<10x10x32xf32>
    %40 = vector.extract_strided_slice %39 {offsets = [0, 0, 0], sizes = [8, 8, 32], strides = [1, 1, 1]} : vector<10x10x32xf32> to vector<8x8x32xf32>
    %41 = vector.extract_strided_slice %39 {offsets = [0, 1, 0], sizes = [8, 8, 32], strides = [1, 1, 1]} : vector<10x10x32xf32> to vector<8x8x32xf32>
    %42 = vector.extract_strided_slice %39 {offsets = [0, 2, 0], sizes = [8, 8, 32], strides = [1, 1, 1]} : vector<10x10x32xf32> to vector<8x8x32xf32>
    %43 = vector.extract_strided_slice %39 {offsets = [1, 0, 0], sizes = [8, 8, 32], strides = [1, 1, 1]} : vector<10x10x32xf32> to vector<8x8x32xf32>
    %44 = vector.extract_strided_slice %39 {offsets = [1, 1, 0], sizes = [8, 8, 32], strides = [1, 1, 1]} : vector<10x10x32xf32> to vector<8x8x32xf32>
    %45 = vector.extract_strided_slice %39 {offsets = [1, 2, 0], sizes = [8, 8, 32], strides = [1, 1, 1]} : vector<10x10x32xf32> to vector<8x8x32xf32>
    %46 = vector.extract_strided_slice %39 {offsets = [2, 0, 0], sizes = [8, 8, 32], strides = [1, 1, 1]} : vector<10x10x32xf32> to vector<8x8x32xf32>
    %47 = vector.extract_strided_slice %39 {offsets = [2, 1, 0], sizes = [8, 8, 32], strides = [1, 1, 1]} : vector<10x10x32xf32> to vector<8x8x32xf32>
    %48 = vector.extract_strided_slice %39 {offsets = [2, 2, 0], sizes = [8, 8, 32], strides = [1, 1, 1]} : vector<10x10x32xf32> to vector<8x8x32xf32>
    %49 = tpu.concatenate %40, %41, %42, %43, %44, %45, %46, %47, %48 in 2 : vector<8x8x32xf32>, vector<8x8x32xf32>, vector<8x8x32xf32>, vector<8x8x32xf32>, vector<8x8x32xf32>, vector<8x8x32xf32>, vector<8x8x32xf32>, vector<8x8x32xf32>, vector<8x8x32xf32> -> vector<8x8x288xf32>
    %50 = vector.shape_cast %49 : vector<8x8x288xf32> to vector<64x288xf32>
    %c0_12 = arith.constant 0 : index
    %c0_13 = arith.constant 0 : index
    %51 = vector.load %arg4[%c0_12, %c0_13] : memref<288x64xf32, #tpu.memory_space<vmem>>, vector<288x64xf32>
    %cst_14 = arith.constant dense<0.000000e+00> : vector<64x64xf32>
    %52 = tpu.matmul %50, %51, %cst_14 {dimension_numbers = #tpu.dot_dimension_numbers<[1], [0], [0], [1], [0, 0, 1, 1], [], []>} : vector<64x288xf32>, vector<288x64xf32>, vector<64x64xf32> -> vector<64x64xf32>
    %c0_15 = arith.constant 0 : index
    %c0_16 = arith.constant 0 : index
    %53 = vector.load %arg5[%c0_15, %c0_16] : memref<1x64xf32, #tpu.memory_space<vmem>>, vector<1x64xf32>
    %54 = vector.broadcast %53 : vector<1x64xf32> to vector<64x64xf32>
    %55 = arith.addf %52, %54 : vector<64x64xf32>
    %cst_17 = arith.constant 0.000000e+00 : f32
    %56 = vector.broadcast %cst_17 : f32 to vector<64x64xf32>
    %57 = arith.maximumf %55, %56 : vector<64x64xf32>
    %58 = vector.shape_cast %57 : vector<64x64xf32> to vector<4x2x4x2x64xf32>
    %59 = vector.extract_strided_slice %58 {offsets = [0, 0, 0, 0, 0], sizes = [4, 1, 4, 1, 64], strides = [1, 1, 1, 1, 1]} : vector<4x2x4x2x64xf32> to vector<4x1x4x1x64xf32>
    %60 = vector.shape_cast %59 : vector<4x1x4x1x64xf32> to vector<4x4x64xf32>
    %61 = vector.extract_strided_slice %58 {offsets = [0, 0, 0, 1, 0], sizes = [4, 1, 4, 1, 64], strides = [1, 1, 1, 1, 1]} : vector<4x2x4x2x64xf32> to vector<4x1x4x1x64xf32>
    %62 = vector.shape_cast %61 : vector<4x1x4x1x64xf32> to vector<4x4x64xf32>
    %63 = arith.maximumf %60, %62 : vector<4x4x64xf32>
    %64 = vector.extract_strided_slice %58 {offsets = [0, 1, 0, 0, 0], sizes = [4, 1, 4, 1, 64], strides = [1, 1, 1, 1, 1]} : vector<4x2x4x2x64xf32> to vector<4x1x4x1x64xf32>
    %65 = vector.shape_cast %64 : vector<4x1x4x1x64xf32> to vector<4x4x64xf32>
    %66 = vector.extract_strided_slice %58 {offsets = [0, 1, 0, 1, 0], sizes = [4, 1, 4, 1, 64], strides = [1, 1, 1, 1, 1]} : vector<4x2x4x2x64xf32> to vector<4x1x4x1x64xf32>
    %67 = vector.shape_cast %66 : vector<4x1x4x1x64xf32> to vector<4x4x64xf32>
    %68 = arith.maximumf %65, %67 : vector<4x4x64xf32>
    %69 = arith.maximumf %63, %68 : vector<4x4x64xf32>
    %70 = vector.shape_cast %69 : vector<4x4x64xf32> to vector<16x64xf32>
    %c0_18 = arith.constant 0 : index
    %c0_19 = arith.constant 0 : index
    %71 = vector.load %arg6[%c0_18, %c0_19] : memref<64x128xf32, #tpu.memory_space<vmem>>, vector<64x128xf32>
    %cst_20 = arith.constant dense<0.000000e+00> : vector<16x128xf32>
    %72 = tpu.matmul %70, %71, %cst_20 {dimension_numbers = #tpu.dot_dimension_numbers<[1], [0], [0], [1], [0, 0, 1, 1], [], []>} : vector<16x64xf32>, vector<64x128xf32>, vector<16x128xf32> -> vector<16x128xf32>
    %c0_21 = arith.constant 0 : index
    %c0_22 = arith.constant 0 : index
    %73 = vector.load %arg7[%c0_21, %c0_22] : memref<1x128xf32, #tpu.memory_space<vmem>>, vector<1x128xf32>
    %74 = vector.broadcast %73 : vector<1x128xf32> to vector<16x128xf32>
    %75 = arith.addf %72, %74 : vector<16x128xf32>
    %cst_23 = arith.constant 0.000000e+00 : f32
    %76 = vector.broadcast %cst_23 : f32 to vector<16x128xf32>
    %77 = arith.maximumf %75, %76 : vector<16x128xf32>
    %c0_24 = arith.constant 0 : index
    %c0_25 = arith.constant 0 : index
    %78 = vector.load %arg8[%c0_24, %c0_25] : memref<128x16xf32, #tpu.memory_space<vmem>>, vector<128x16xf32>
    %cst_26 = arith.constant dense<0.000000e+00> : vector<16x16xf32>
    %79 = tpu.matmul %77, %78, %cst_26 {dimension_numbers = #tpu.dot_dimension_numbers<[1], [0], [0], [1], [0, 0, 1, 1], [], []>} : vector<16x128xf32>, vector<128x16xf32>, vector<16x16xf32> -> vector<16x16xf32>
    %c0_27 = arith.constant 0 : index
    %c0_28 = arith.constant 0 : index
    %80 = vector.load %arg9[%c0_27, %c0_28] : memref<1x16xf32, #tpu.memory_space<vmem>>, vector<1x16xf32>
    %81 = vector.broadcast %80 : vector<1x16xf32> to vector<16x16xf32>
    %82 = arith.addf %79, %81 : vector<16x16xf32>
    %83 = arith.negf %82 : vector<16x16xf32>
    %84 = math.exp %83 : vector<16x16xf32>
    %cst_29 = arith.constant 1.000000e+00 : f32
    %85 = vector.broadcast %cst_29 : f32 to vector<16x16xf32>
    %86 = arith.addf %85, %84 : vector<16x16xf32>
    %87 = arith.divf %85, %86 : vector<16x16xf32>
    %c0_30 = arith.constant 0 : index
    %c0_31 = arith.constant 0 : index
    %c0_32 = arith.constant 0 : index
    %88 = vector.load %arg10[%c0_30, %c0_31, %c0_32] : memref<1x16x16xf32, #tpu.memory_space<vmem>>, vector<1x16x16xf32>
    %89 = vector.shape_cast %88 : vector<1x16x16xf32> to vector<16x16xf32>
    %90 = vector.shape_cast %87 : vector<16x16xf32> to vector<1x16x16xf32>
    tpu.vector_store %arg10[%c0_30, %c0_31, %c0_32], %90 {strides = array<i32>} : memref<1x16x16xf32, #tpu.memory_space<vmem>>, vector<1x16x16xf32>,
    return
  }
  func.func @transform_0(%arg0: i32) -> (i32, i32, i32, i32) {
    %c0_i32 = arith.constant 0 : i32
    %c0_i32_0 = arith.constant 0 : i32
    %c0_i32_1 = arith.constant 0 : i32
    %c0_i32_2 = arith.constant 0 : i32
    return %arg0, %c0_i32, %c0_i32_0, %c0_i32_1 : i32, i32, i32, i32
  }
  func.func @transform_1(%arg0: i32) -> (i32, i32) {
    %c0_i32 = arith.constant 0 : i32
    %c0_i32_0 = arith.constant 0 : i32
    %c0_i32_1 = arith.constant 0 : i32
    return %c0_i32, %c0_i32_0 : i32, i32
  }
  func.func @transform_2(%arg0: i32) -> (i32, i32) {
    %c0_i32 = arith.constant 0 : i32
    %c0_i32_0 = arith.constant 0 : i32
    %c0_i32_1 = arith.constant 0 : i32
    return %c0_i32, %c0_i32_0 : i32, i32
  }
  func.func @transform_3(%arg0: i32) -> (i32, i32) {
    %c0_i32 = arith.constant 0 : i32
    %c0_i32_0 = arith.constant 0 : i32
    %c0_i32_1 = arith.constant 0 : i32
    return %c0_i32, %c0_i32_0 : i32, i32
  }
  func.func @transform_4(%arg0: i32) -> (i32, i32) {
    %c0_i32 = arith.constant 0 : i32
    %c0_i32_0 = arith.constant 0 : i32
    %c0_i32_1 = arith.constant 0 : i32
    return %c0_i32, %c0_i32_0 : i32, i32
  }
  func.func @transform_5(%arg0: i32) -> (i32, i32) {
    %c0_i32 = arith.constant 0 : i32
    %c0_i32_0 = arith.constant 0 : i32
    %c0_i32_1 = arith.constant 0 : i32
    return %c0_i32, %c0_i32_0 : i32, i32
  }
  func.func @transform_6(%arg0: i32) -> (i32, i32) {
    %c0_i32 = arith.constant 0 : i32
    %c0_i32_0 = arith.constant 0 : i32
    %c0_i32_1 = arith.constant 0 : i32
    return %c0_i32, %c0_i32_0 : i32, i32
  }
  func.func @transform_7(%arg0: i32) -> (i32, i32) {
    %c0_i32 = arith.constant 0 : i32
    %c0_i32_0 = arith.constant 0 : i32
    %c0_i32_1 = arith.constant 0 : i32
    return %c0_i32, %c0_i32_0 : i32, i32
  }
  func.func @transform_8(%arg0: i32) -> (i32, i32) {
    %c0_i32 = arith.constant 0 : i32
    %c0_i32_0 = arith.constant 0 : i32
    %c0_i32_1 = arith.constant 0 : i32
    return %c0_i32, %c0_i32_0 : i32, i32
  }
  func.func @transform_9(%arg0: i32) -> (i32, i32, i32) {
    %c0_i32 = arith.constant 0 : i32
    %c0_i32_0 = arith.constant 0 : i32
    %c0_i32_1 = arith.constant 0 : i32
    return %arg0, %c0_i32, %c0_i32_0 : i32, i32, i32
  }
}

</mosaic_0001>

<llo_original>
// kernel: tile.14
$region0: #{tile.14}
  %s0 = inlined_call_operand.vmem [shape: f32[4,32], index: 0, kind: input, shape index: {}]
  %s1 = inlined_call_operand.vmem [shape: f32[1,128], index: 1, kind: output, shape index: {}]
  $region1: #{tile.14} parent=0
    #allocation0 [shape = 'u8[4096]{0}', space=vmem, size = 0x1000, scoped, tag = 'scoped mem for output reshape']
    #allocation1 [shape = 'u8[4096]{0}', space=vmem, size = 0x1000, scoped, tag = 'scoped mem for input reshape']
    %s3 = sshll.u32 1, 4
    %s4 = ssub.s32 %s3, 1
    %v5 = vld [vmem:[%s0] sm:%s4]
    %6 = vst [vmem:[#allocation1] sm:%s4] %v5
    %v7 = vld [vmem:[#allocation1] sm:$0x1]
    %vm8 = vcmask 261120
    %9 = vst.msk [vmem:[#allocation0] sm:$0x1] %vm8, %v7
    %s10 = scalar_lea.vmem [#allocation1], 3
    %v11 = vld [vmem:[%s10] sm:$0x1]
    %12 = vrot.lane.b32.xlu0 %v11, 96
    %v13 = vpop.permute.xlu0 %12
    %vm14 = vcmask 1048320
    %15 = vst.msk [vmem:[#allocation0] sm:$0x1] %vm14, %v13
    %s16 = scalar_lea.vmem [#allocation1], 2
    %v17 = vld [vmem:[%s16] sm:$0x1]
    %18 = vrot.lane.b32.xlu0 %v17, 64
    %v19 = vpop.permute.xlu0 %18
    %vm20 = vcmask 785920
    %21 = vst.msk [vmem:[#allocation0] sm:$0x1] %vm20, %v19
    %s22 = scalar_lea.vmem [#allocation1], 1
    %v23 = vld [vmem:[%s22] sm:$0x1]
    %24 = vrot.lane.b32.xlu0 %v23, 32
    %v25 = vpop.permute.xlu0 %24
    %vm26 = vcmask 523520
    %27 = vst.msk [vmem:[#allocation0] sm:$0x1] %vm26, %v25
    %s29 = sshll.u32 1, 1
    %s30 = ssub.s32 %s29, 1
    %v32 = vld [vmem:[#allocation0] sm:%s30]
    %s33 = sshll.u32 1, 1
    %s34 = ssub.s32 %s33, 1
    %35 = vst [vmem:[%s1] sm:%s34] %v32

// kernel: tile.13
$region0: #{tile.13}
  #allocation2 [shape = 's32[1]{0}', space=sflag, size = 0x4, scoped, tag = 'scoped memory for tile.13']
  %s0 = inlined_call_operand.hbm [shape: f32[32], index: 0, kind: input, shape index: {}]
  %s1 = inlined_call_operand.vmem [shape: f32[4,32], index: 1, kind: output, shape index: {}]
  $region1: #{tile.13} parent=0
    #allocation0 [shape = 'u8[512]{0}', space=vmem, size = 0x400, scoped, tag = 'operand span for operand 0']
    #allocation1 [shape = 's32[1]{0}', space=sflag, size = 0x4, scoped, tag = 'scoped memory for tile.13']
    %2 = vsyncpa [#allocation1], 0
    // Predicated region
    $region2: #{tile.13} parent=1 // pred_check
      _
    $region3: #{tile.13} parent=1 // pred_check_branch
      %4 = sbr.rel (0) target = $region5
    $region4: #{tile.13} parent=1 // pred_region
      %s6 = ssub.s32 16, 16
      %7 = vsyncadd [#allocation1], %s6
      %s9 = sshll.u32 [#allocation0], 4
      %s10 = int_to_ptr.vmem [resolvable:$true] %s9
      %12 = dma.hbm_to_vmem [thread:$0]  %s0, 16, %s10, [#allocation1]
    $region5: #{tile.13} parent=1 // pred_fallthru
      _
    // Predicated region
    $region6: #{tile.13} parent=1 // pred_check
      _
    $region7: #{tile.13} parent=1 // pred_check_branch
      %14 = sbr.rel (0) target = $region9
    $region8: #{tile.13} parent=1 // pred_region
      %15 = dma.done [#allocation1], 16
    $region9: #{tile.13} parent=1 // pred_fallthru
      _
    %v16 = vld [vmem:[#allocation0] ss:$0 sm:$0xff]
    %17 = vst [vmem:[%s1] sm:$0xf] %v16
    %18 = vsyncpa [#allocation1], 1

// kernel: segmentation_forward.1
$region0: #{segmentation_forward.1}
  #allocation0 [shape = 'u32[]', space=smem, size = 0x4, offset = 0x4, fixed_abs, tag = 'smem constant byte address 0x4 - core index']
  #allocation1 [shape = 'u32[144,128]{1,0:T(1,128)}', space=vmem, size = 0x12000, scoped, tag = 'internal scratch']
  %s0 = inlined_call_operand.vmem [shape: f32[2,16,16,11], index: 0, kind: input, shape index: {}]
  %s1 = inlined_call_operand.vmem [shape: f32[99,32], index: 1, kind: input, shape index: {}]
  %s2 = inlined_call_operand.vmem [shape: f32[1,32], index: 2, kind: input, shape index: {}]
  %s3 = inlined_call_operand.vmem [shape: f32[288,64], index: 3, kind: input, shape index: {}]
  %s4 = inlined_call_operand.vmem [shape: f32[1,64], index: 4, kind: input, shape index: {}]
  %s5 = inlined_call_operand.vmem [shape: f32[64,128], index: 5, kind: input, shape index: {}]
  %s6 = inlined_call_operand.vmem [shape: f32[1,128], index: 6, kind: input, shape index: {}]
  %s7 = inlined_call_operand.vmem [shape: f32[128,16], index: 7, kind: input, shape index: {}]
  %s8 = inlined_call_operand.vmem [shape: f32[1,16], index: 8, kind: input, shape index: {}]
  %s9 = inlined_call_operand.vmem [shape: f32[2,16,16], index: 9, kind: output, shape index: {}]
  %s10 = sld [smem:[#allocation0]]
  $region69: #{segmentation_forward.1} parent=0
    _
  %s12 = ssub.s32 1, %s10
  %s13 = scalar_select 0, %s12, %s10
  loop: start=0, step=1, limit=4
  $region2: #{segmentation_forward.1} parent=0 // loop_pre_header
    _
  $region3: #{segmentation_forward.1} parent=0 // loop_header
    %s15 = sphi 0, %s19
    %p16 = scmp.ge.s32.totalorder %s15, 4
    %s25 = sphi 0, %s27
    %s28 = sphi 0, %s25
    %s29 = sphi 0, %s28
    %s45 = sphi 0, %s29
    %s49 = sphi 0, %s49
    %s51 = sphi 0, %s49
    %s52 = sphi 0, %s51
    %s66 = sphi 0, %s52
    %s70 = sphi 0, %s70
    %s72 = sphi 0, %s70
    %s73 = sphi 0, %s72
    %s87 = sphi 0, %s73
    %s91 = sphi 0, %s91
    %s93 = sphi 0, %s91
    %s94 = sphi 0, %s93
    %s108 = sphi 0, %s94
    %s112 = sphi 0, %s112
    %s114 = sphi 0, %s112
    %s115 = sphi 0, %s114
    %s129 = sphi 0, %s115
    %s133 = sphi 0, %s133
    %s135 = sphi 0, %s133
    %s136 = sphi 0, %s135
    %s150 = sphi 0, %s136
    %s154 = sphi 0, %s154
    %s156 = sphi 0, %s154
    %s157 = sphi 0, %s156
    %s171 = sphi 0, %s157
    %s175 = sphi 0, %s175
    %s177 = sphi 0, %s175
    %s178 = sphi 0, %s177
    %s192 = sphi 0, %s178
    %s196 = sphi 0, %s196
    %s198 = sphi 0, %s196
    %s199 = sphi 0, %s198
    %s213 = sphi 0, %s199
    %s219 = sphi 0, %s221
    %s222 = sphi 0, %s219
    %s223 = sphi 0, %s222
    %s239 = sphi 0, %s223
  $region4: #{segmentation_forward.1} parent=0 // loop_header_branch
    %18 = sbr.rel (%p16) target = $region8
  $region5: #{segmentation_forward.1} parent=0 // loop_body
    %s20 = ssub.s32 %s15, 1
    %s21 = ssub.s32 %s15, 2
    %s22 = sadd.s32 %s15, 1
    %s23 = ssub.s32 %s15, %s22
    %p24 = scmp.eq.s32.totalorder %s23, 0
    %s26 = sadd.s32 %s25, 1
    %s27 = scalar_select %p24, %s25, %s26
    %p30 = pneg %p24
    %p31 = scmp.eq.s32.totalorder %s15, 1
    %p32 = por %p30, %p31
    %p33 = scmp.ne.s32.totalorder %s25, %s28
    %p34 = scmp.eq.s32.totalorder %s15, 0
    %p35 = por %p33, %p34
    %p36 = scmp.ne.s32.totalorder %s25, %s28
    %p37 = scmp.eq.s32.totalorder %s20, 1
    %p38 = por %p36, %p37
    %p39 = scmp.ne.s32.totalorder %s28, %s29
    %p40 = scmp.eq.s32.totalorder %s20, 0
    %p41 = por %p39, %p40
    %p42 = scmp.ne.s32.totalorder %s28, %s29
    %p43 = scmp.eq.s32.totalorder %s21, 1
    %p44 = por %p42, %p43
    %p46 = scmp.ne.s32.totalorder %s29, %s45
    %p47 = scmp.eq.s32.totalorder %s21, 0
    %p48 = por %p46, %p47
    %s50 = sadd.s32 %s49, 1
    %p53 = scmp.eq.s32.totalorder %s15, 1
    %p54 = scmp.ne.s32.totalorder %s49, %s51
    %p55 = scmp.eq.s32.totalorder %s15, 0
    %p56 = por %p54, %p55
    %p57 = scmp.ne.s32.totalorder %s49, %s51
    %p58 = scmp.eq.s32.totalorder %s20, 1
    %p59 = por %p57, %p58
    %p60 = scmp.ne.s32.totalorder %s51, %s52
    %p61 = scmp.eq.s32.totalorder %s20, 0
    %p62 = por %p60, %p61
    %p63 = scmp.ne.s32.totalorder %s51, %s52
    %p64 = scmp.eq.s32.totalorder %s21, 1
    %p65 = por %p63, %p64
    %p67 = scmp.ne.s32.totalorder %s52, %s66
    %p68 = scmp.eq.s32.totalorder %s21, 0
    %p69 = por %p67, %p68
    %s71 = sadd.s32 %s70, 1
    %p74 = scmp.eq.s32.totalorder %s15, 1
    %p75 = scmp.ne.s32.totalorder %s70, %s72
    %p76 = scmp.eq.s32.totalorder %s15, 0
    %p77 = por %p75, %p76
    %p78 = scmp.ne.s32.totalorder %s70, %s72
    %p79 = scmp.eq.s32.totalorder %s20, 1
    %p80 = por %p78, %p79
    %p81 = scmp.ne.s32.totalorder %s72, %s73
    %p82 = scmp.eq.s32.totalorder %s20, 0
    %p83 = por %p81, %p82
    %p84 = scmp.ne.s32.totalorder %s72, %s73
    %p85 = scmp.eq.s32.totalorder %s21, 1
    %p86 = por %p84, %p85
    %p88 = scmp.ne.s32.totalorder %s73, %s87
    %p89 = scmp.eq.s32.totalorder %s21, 0
    %p90 = por %p88, %p89
    %s92 = sadd.s32 %s91, 1
    %p95 = scmp.eq.s32.totalorder %s15, 1
    %p96 = scmp.ne.s32.totalorder %s91, %s93
    %p97 = scmp.eq.s32.totalorder %s15, 0
    %p98 = por %p96, %p97
    %p99 = scmp.ne.s32.totalorder %s91, %s93
    %p100 = scmp.eq.s32.totalorder %s20, 1
    %p101 = por %p99, %p100
    %p102 = scmp.ne.s32.totalorder %s93, %s94
    %p103 = scmp.eq.s32.totalorder %s20, 0
    %p104 = por %p102, %p103
    %p105 = scmp.ne.s32.totalorder %s93, %s94
    %p106 = scmp.eq.s32.totalorder %s21, 1
    %p107 = por %p105, %p106
    %p109 = scmp.ne.s32.totalorder %s94, %s108
    %p110 = scmp.eq.s32.totalorder %s21, 0
    %p111 = por %p109, %p110
    %s113 = sadd.s32 %s112, 1
    %p116 = scmp.eq.s32.totalorder %s15, 1
    %p117 = scmp.ne.s32.totalorder %s112, %s114
    %p118 = scmp.eq.s32.totalorder %s15, 0
    %p119 = por %p117, %p118
    %p120 = scmp.ne.s32.totalorder %s112, %s114
    %p121 = scmp.eq.s32.totalorder %s20, 1
    %p122 = por %p120, %p121
    %p123 = scmp.ne.s32.totalorder %s114, %s115
    %p124 = scmp.eq.s32.totalorder %s20, 0
    %p125 = por %p123, %p124
    %p126 = scmp.ne.s32.totalorder %s114, %s115
    %p127 = scmp.eq.s32.totalorder %s21, 1
    %p128 = por %p126, %p127
    %p130 = scmp.ne.s32.totalorder %s115, %s129
    %p131 = scmp.eq.s32.totalorder %s21, 0
    %p132 = por %p130, %p131
    %s134 = sadd.s32 %s133, 1
    %p137 = scmp.eq.s32.totalorder %s15, 1
    %p138 = scmp.ne.s32.totalorder %s133, %s135
    %p139 = scmp.eq.s32.totalorder %s15, 0
    %p140 = por %p138, %p139
    %p141 = scmp.ne.s32.totalorder %s133, %s135
    %p142 = scmp.eq.s32.totalorder %s20, 1
    %p143 = por %p141, %p142
    %p144 = scmp.ne.s32.totalorder %s135, %s136
    %p145 = scmp.eq.s32.totalorder %s20, 0
    %p146 = por %p144, %p145
    %p147 = scmp.ne.s32.totalorder %s135, %s136
    %p148 = scmp.eq.s32.totalorder %s21, 1
    %p149 = por %p147, %p148
    %p151 = scmp.ne.s32.totalorder %s136, %s150
    %p152 = scmp.eq.s32.totalorder %s21, 0
    %p153 = por %p151, %p152
    %s155 = sadd.s32 %s154, 1
    %p158 = scmp.eq.s32.totalorder %s15, 1
    %p159 = scmp.ne.s32.totalorder %s154, %s156
    %p160 = scmp.eq.s32.totalorder %s15, 0
    %p161 = por %p159, %p160
    %p162 = scmp.ne.s32.totalorder %s154, %s156
    %p163 = scmp.eq.s32.totalorder %s20, 1
    %p164 = por %p162, %p163
    %p165 = scmp.ne.s32.totalorder %s156, %s157
    %p166 = scmp.eq.s32.totalorder %s20, 0
    %p167 = por %p165, %p166
    %p168 = scmp.ne.s32.totalorder %s156, %s157
    %p169 = scmp.eq.s32.totalorder %s21, 1
    %p170 = por %p168, %p169
    %p172 = scmp.ne.s32.totalorder %s157, %s171
    %p173 = scmp.eq.s32.totalorder %s21, 0
    %p174 = por %p172, %p173
    %s176 = sadd.s32 %s175, 1
    %p179 = scmp.eq.s32.totalorder %s15, 1
    %p180 = scmp.ne.s32.totalorder %s175, %s177
    %p181 = scmp.eq.s32.totalorder %s15, 0
    %p182 = por %p180, %p181
    %p183 = scmp.ne.s32.totalorder %s175, %s177
    %p184 = scmp.eq.s32.totalorder %s20, 1
    %p185 = por %p183, %p184
    %p186 = scmp.ne.s32.totalorder %s177, %s178
    %p187 = scmp.eq.s32.totalorder %s20, 0
    %p188 = por %p186, %p187
    %p189 = scmp.ne.s32.totalorder %s177, %s178
    %p190 = scmp.eq.s32.totalorder %s21, 1
    %p191 = por %p189, %p190
    %p193 = scmp.ne.s32.totalorder %s178, %s192
    %p194 = scmp.eq.s32.totalorder %s21, 0
    %p195 = por %p193, %p194
    %s197 = sadd.s32 %s196, 1
    %p200 = scmp.eq.s32.totalorder %s15, 1
    %p201 = scmp.ne.s32.totalorder %s196, %s198
    %p202 = scmp.eq.s32.totalorder %s15, 0
    %p203 = por %p201, %p202
    %p204 = scmp.ne.s32.totalorder %s196, %s198
    %p205 = scmp.eq.s32.totalorder %s20, 1
    %p206 = por %p204, %p205
    %p207 = scmp.ne.s32.totalorder %s198, %s199
    %p208 = scmp.eq.s32.totalorder %s20, 0
    %p209 = por %p207, %p208
    %p210 = scmp.ne.s32.totalorder %s198, %s199
    %p211 = scmp.eq.s32.totalorder %s21, 1
    %p212 = por %p210, %p211
    %p214 = scmp.ne.s32.totalorder %s199, %s213
    %p215 = scmp.eq.s32.totalorder %s21, 0
    %p216 = por %p214, %p215
    %s217 = ssub.s32 %s15, %s22
    %p218 = scmp.eq.s32.totalorder %s217, 0
    %s220 = sadd.s32 %s219, 1
    %s221 = scalar_select %p218, %s219, %s220
    %p224 = pneg %p218
    %p225 = scmp.eq.s32.totalorder %s15, 1
    %p226 = por %p224, %p225
    %p227 = scmp.ne.s32.totalorder %s219, %s222
    %p228 = scmp.eq.s32.totalorder %s15, 0
    %p229 = por %p227, %p228
    %p230 = scmp.ne.s32.totalorder %s219, %s222
    %p231 = scmp.eq.s32.totalorder %s20, 1
    %p232 = por %p230, %p231
    %p233 = scmp.ne.s32.totalorder %s222, %s223
    %p234 = scmp.eq.s32.totalorder %s20, 0
    %p235 = por %p233, %p234
    %p236 = scmp.ne.s32.totalorder %s222, %s223
    %p237 = scmp.eq.s32.totalorder %s21, 1
    %p238 = por %p236, %p237
    %p240 = scmp.ne.s32.totalorder %s223, %s239
    %p241 = scmp.eq.s32.totalorder %s21, 0
    %p242 = por %p240, %p241
    %p243 = scmp.le.s32.totalorder 1, %s15
    %p244 = scmp.lt.s32.totalorder %s15, 3
    %p245 = pnand %p243, %p244
    %p246 = pneg %p245
    // Predicated region
    $region9: #{segmentation_forward.1} parent=5 // pred_check
      _
    $region10: #{segmentation_forward.1} parent=5 // pred_check_branch
      %248 = sbr.rel (%p245) target = $region12
    $region11: #{segmentation_forward.1} parent=5 // pred_region
      %s249 = ssub.s32 %s15, 1
      // Predicated region
      $region13: #{segmentation_forward.1} parent=11 // pred_check
        %p250 = pneg %p62
      $region14: #{segmentation_forward.1} parent=11 // pred_check_branch
        %252 = sbr.rel (%p250) target = $region16
      $region15: #{segmentation_forward.1} parent=11 // pred_region
        _
      $region16: #{segmentation_forward.1} parent=11 // pred_fallthru
        _
      // Predicated region
      $region17: #{segmentation_forward.1} parent=11 // pred_check
        %p253 = pneg %p83
      $region18: #{segmentation_forward.1} parent=11 // pred_check_branch
        %255 = sbr.rel (%p253) target = $region20
      $region19: #{segmentation_forward.1} parent=11 // pred_region
        _
      $region20: #{segmentation_forward.1} parent=11 // pred_fallthru
        _
      // Predicated region
      $region21: #{segmentation_forward.1} parent=11 // pred_check
        %p256 = pneg %p104
      $region22: #{segmentation_forward.1} parent=11 // pred_check_branch
        %258 = sbr.rel (%p256) target = $region24
      $region23: #{segmentation_forward.1} parent=11 // pred_region
        _
      $region24: #{segmentation_forward.1} parent=11 // pred_fallthru
        _
      // Predicated region
      $region25: #{segmentation_forward.1} parent=11 // pred_check
        %p259 = pneg %p125
      $region26: #{segmentation_forward.1} parent=11 // pred_check_branch
        %261 = sbr.rel (%p259) target = $region28
      $region27: #{segmentation_forward.1} parent=11 // pred_region
        _
      $region28: #{segmentation_forward.1} parent=11 // pred_fallthru
        _
      // Predicated region
      $region29: #{segmentation_forward.1} parent=11 // pred_check
        %p262 = pneg %p146
      $region30: #{segmentation_forward.1} parent=11 // pred_check_branch
        %264 = sbr.rel (%p262) target = $region32
      $region31: #{segmentation_forward.1} parent=11 // pred_region
        _
      $region32: #{segmentation_forward.1} parent=11 // pred_fallthru
        _
      // Predicated region
      $region33: #{segmentation_forward.1} parent=11 // pred_check
        %p265 = pneg %p167
      $region34: #{segmentation_forward.1} parent=11 // pred_check_branch
        %267 = sbr.rel (%p265) target = $region36
      $region35: #{segmentation_forward.1} parent=11 // pred_region
        _
      $region36: #{segmentation_forward.1} parent=11 // pred_fallthru
        _
      // Predicated region
      $region37: #{segmentation_forward.1} parent=11 // pred_check
        %p268 = pneg %p188
      $region38: #{segmentation_forward.1} parent=11 // pred_check_branch
        %270 = sbr.rel (%p268) target = $region40
      $region39: #{segmentation_forward.1} parent=11 // pred_region
        _
      $region40: #{segmentation_forward.1} parent=11 // pred_fallthru
        _
      // Predicated region
      $region41: #{segmentation_forward.1} parent=11 // pred_check
        %p271 = pneg %p209
      $region42: #{segmentation_forward.1} parent=11 // pred_check_branch
        %273 = sbr.rel (%p271) target = $region44
      $region43: #{segmentation_forward.1} parent=11 // pred_region
        _
      $region44: #{segmentation_forward.1} parent=11 // pred_fallthru
        _
    $region12: #{segmentation_forward.1} parent=5 // pred_fallthru
      _
    %p274 = scmp.lt.s32.totalorder %s15, 2
    // Predicated region
    $region45: #{segmentation_forward.1} parent=5 // pred_check
      %p275 = pneg %p274
    $region46: #{segmentation_forward.1} parent=5 // pred_check_branch
      %277 = sbr.rel (%p275) target = $region48
    $region47: #{segmentation_forward.1} parent=5 // pred_region
      // Predicated region
      $region49: #{segmentation_forward.1} parent=47 // pred_check
        %p278 = pneg %p35
      $region50: #{segmentation_forward.1} parent=47 // pred_check_branch
        %280 = sbr.rel (%p278) target = $region52
      $region51: #{segmentation_forward.1} parent=47 // pred_region
        %p281 = scmp.lt.s32.totalorder %s15, 1
        %s282 = scalar_select %p281, %s15, 1
        %s283 = smul.addr %s282, 32
        %s284 = smul.addr %s283, 8
        %s285 = scalar_lea.vmem %s0, %s284
      $region52: #{segmentation_forward.1} parent=47 // pred_fallthru
        _
    $region48: #{segmentation_forward.1} parent=5 // pred_fallthru
      _
    %p286 = scmp.le.s32.totalorder 1, %s15
    %p287 = scmp.lt.s32.totalorder %s15, 3
    %p288 = pnand %p286, %p287
    %p289 = pneg %p288
    // Predicated region
    $region53: #{segmentation_forward.1} parent=5 // pred_check
      _
    $region54: #{segmentation_forward.1} parent=5 // pred_check_branch
      %291 = sbr.rel (%p288) target = $region56
    $region55: #{segmentation_forward.1} parent=5 // pred_region
      %s292 = ssub.s32 %s15, 1
      %p293 = scmp.lt.s32.totalorder %s20, 1
      %s294 = scalar_select %p293, %s20, 1
      %s295 = smul.addr %s294, 32
      %s296 = smul.addr %s295, 8
      %s297 = scalar_lea.vmem %s0, %s296
      %p298 = pneg %p41
      %p299 = pneg %p38
      %p300 = pneg %p62
      %p301 = pneg %p59
      %p302 = pneg %p83
      %p303 = pneg %p80
      %p304 = pneg %p104
      %p305 = pneg %p101
      %p306 = pneg %p125
      %p307 = pneg %p122
      %p308 = pneg %p146
      %p309 = pneg %p143
      %p310 = pneg %p167
      %p311 = pneg %p164
      %p312 = pneg %p188
      %p313 = pneg %p185
      %p314 = pneg %p209
      %p315 = pneg %p206
      %p316 = pneg %p235
      %p317 = pneg %p232
      %p318 = scmp.lt.s32.totalorder %s20, 1
      %s319 = scalar_select %p318, %s20, 1
      %s320 = smul.addr %s319, 2
      %s321 = smul.addr %s320, 8
      %s322 = scalar_lea.vmem %s9, %s321
      %p323 = scmp.lt.s32.totalorder %s20, 1
      %s324 = scalar_select %p323, %s20, 1
      %s325 = smul.addr %s324, 32
      %s326 = smul.addr %s325, 8
      %s327 = scalar_lea.vmem %s0, %s326
      %p328 = scmp.lt.s32.totalorder %s20, 1
      %s329 = scalar_select %p328, %s20, 1
      %s330 = smul.addr %s329, 2
      %s331 = smul.addr %s330, 8
      %s332 = scalar_lea.vmem %s9, %s331
      %v333 = vld [vmem:[%s327] sm:$0xff]
      %v334 = vld [vmem:[%s327 + $0x8] sm:$0xff]
      %v335 = vld [vmem:[%s327 + $0x10] sm:$0xff]
      %v336 = vld [vmem:[%s327 + $0x18] sm:$0xff]
      %v337 = vld [vmem:[%s327 + $0x20] sm:$0xff]
      %v338 = vld [vmem:[%s327 + $0x28] sm:$0xff]
      %v339 = vld [vmem:[%s327 + $0x30] sm:$0xff]
      %v340 = vld [vmem:[%s327 + $0x38] sm:$0xff]
      %v341 = vld [vmem:[%s327 + $0x40] sm:$0xff]
      %v342 = vld [vmem:[%s327 + $0x48] sm:$0xff]
      %v343 = vld [vmem:[%s327 + $0x50] sm:$0xff]
      %v344 = vld [vmem:[%s327 + $0x58] sm:$0xff]
      %v345 = vld [vmem:[%s327 + $0x60] sm:$0xff]
      %v346 = vld [vmem:[%s327 + $0x68] sm:$0xff]
      %v347 = vld [vmem:[%s327 + $0x70] sm:$0xff]
      %v348 = vld [vmem:[%s327 + $0x78] sm:$0xff]
      %v349 = vld [vmem:[%s327 + $0x80] sm:$0xff]
      %v350 = vld [vmem:[%s327 + $0x88] sm:$0xff]
      %v351 = vld [vmem:[%s327 + $0x90] sm:$0xff]
      %v352 = vld [vmem:[%s327 + $0x98] sm:$0xff]
      %v353 = vld [vmem:[%s327 + $0xa0] sm:$0xff]
      %v354 = vld [vmem:[%s327 + $0xa8] sm:$0xff]
      %v355 = vld [vmem:[%s327 + $0xb0] sm:$0xff]
      %v356 = vld [vmem:[%s327 + $0xb8] sm:$0xff]
      %v357 = vld [vmem:[%s327 + $0xc0] sm:$0xff]
      %v358 = vld [vmem:[%s327 + $0xc8] sm:$0xff]
      %v359 = vld [vmem:[%s327 + $0xd0] sm:$0xff]
      %v360 = vld [vmem:[%s327 + $0xd8] sm:$0xff]
      %v361 = vld [vmem:[%s327 + $0xe0] sm:$0xff]
      %v362 = vld [vmem:[%s327 + $0xe8] sm:$0xff]
      %v363 = vld [vmem:[%s327 + $0xf0] sm:$0xff]
      %v364 = vld [vmem:[%s327 + $0xf8] sm:$0xff]
      %vm397 = vcmask 1040384
      %v398 = vrot.slane %v333, 7
      %v399 = vrot.slane %v334, 7
      %v400 = vsel %vm397, %v398, %v399
      %v401 = vrot.slane %v335, 7
      %v402 = vrot.slane %v336, 7
      %v403 = vsel %vm397, %v401, %v402
      %v404 = vrot.slane %v337, 7
      %v405 = vrot.slane %v338, 7
      %v406 = vsel %vm397, %v404, %v405
      %v407 = vrot.slane %v339, 7
      %v408 = vrot.slane %v340, 7
      %v409 = vsel %vm397, %v407, %v408
      %v410 = vrot.slane %v341, 7
      %v411 = vrot.slane %v342, 7
      %v412 = vsel %vm397, %v410, %v411
      %v413 = vrot.slane %v343, 7
      %v414 = vrot.slane %v344, 7
      %v415 = vsel %vm397, %v413, %v414
      %v416 = vrot.slane %v345, 7
      %v417 = vrot.slane %v346, 7
      %v418 = vsel %vm397, %v416, %v417
      %v419 = vrot.slane %v347, 7
      %v420 = vrot.slane %v348, 7
      %v421 = vsel %vm397, %v419, %v420
      %v422 = vrot.slane %v349, 7
      %v423 = vrot.slane %v350, 7
      %v424 = vsel %vm397, %v422, %v423
      %v425 = vrot.slane %v351, 7
      %v426 = vrot.slane %v352, 7
      %v427 = vsel %vm397, %v425, %v426
      %v428 = vrot.slane %v353, 7
      %v429 = vrot.slane %v354, 7
      %v430 = vsel %vm397, %v428, %v429
      %v431 = vrot.slane %v355, 7
      %v432 = vrot.slane %v356, 7
      %v433 = vsel %vm397, %v431, %v432
      %v434 = vrot.slane %v357, 7
      %v435 = vrot.slane %v358, 7
      %v436 = vsel %vm397, %v434, %v435
      %v437 = vrot.slane %v359, 7
      %v438 = vrot.slane %v360, 7
      %v439 = vsel %vm397, %v437, %v438
      %v440 = vrot.slane %v361, 7
      %v441 = vrot.slane %v362, 7
      %v442 = vsel %vm397, %v440, %v441
      %v443 = vrot.slane %v363, 7
      %v444 = vrot.slane %v364, 7
      %v445 = vsel %vm397, %v443, %v444
      %v493 = vsel %vm397, 0.0, %v398
      %v494 = vsel %vm397, 0.0, %v401
      %v495 = vsel %vm397, 0.0, %v404
      %v496 = vsel %vm397, 0.0, %v407
      %v497 = vsel %vm397, 0.0, %v410
      %v498 = vsel %vm397, 0.0, %v413
      %v499 = vsel %vm397, 0.0, %v416
      %v500 = vsel %vm397, 0.0, %v419
      %v501 = vsel %vm397, 0.0, %v422
      %v502 = vsel %vm397, 0.0, %v425
      %v503 = vsel %vm397, 0.0, %v428
      %v504 = vsel %vm397, 0.0, %v431
      %v505 = vsel %vm397, 0.0, %v434
      %v506 = vsel %vm397, 0.0, %v437
      %v507 = vsel %vm397, 0.0, %v440
      %v508 = vsel %vm397, 0.0, %v443
      %v509 = vsel %vm397, %v399, 0.0
      %v510 = vsel %vm397, %v402, 0.0
      %v511 = vsel %vm397, %v405, 0.0
      %v512 = vsel %vm397, %v408, 0.0
      %v513 = vsel %vm397, %v411, 0.0
      %v514 = vsel %vm397, %v414, 0.0
      %v515 = vsel %vm397, %v417, 0.0
      %v516 = vsel %vm397, %v420, 0.0
      %v517 = vsel %vm397, %v423, 0.0
      %v518 = vsel %vm397, %v426, 0.0
      %v519 = vsel %vm397, %v429, 0.0
      %v520 = vsel %vm397, %v432, 0.0
      %v521 = vsel %vm397, %v435, 0.0
      %v522 = vsel %vm397, %v438, 0.0
      %v523 = vsel %vm397, %v441, 0.0
      %v524 = vsel %vm397, %v444, 0.0
      %vm556 = vcmask 1046528
      %v557 = vrot.slane 0.0, 1
      %v558 = vsel %vm556, %v557, %v557
      %v559 = vrot.slane %v493, 1
      %v560 = vrot.slane %v400, 1
      %v561 = vsel %vm556, %v559, %v560
      %v562 = vrot.slane %v509, 1
      %v563 = vsel %vm556, %v560, %v562
      %v564 = vrot.slane %v494, 1
      %v565 = vrot.slane %v403, 1
      %v566 = vsel %vm556, %v564, %v565
      %v567 = vrot.slane %v510, 1
      %v568 = vsel %vm556, %v565, %v567
      %v569 = vrot.slane %v495, 1
      %v570 = vrot.slane %v406, 1
      %v571 = vsel %vm556, %v569, %v570
      %v572 = vrot.slane %v511, 1
      %v573 = vsel %vm556, %v570, %v572
      %v574 = vrot.slane %v496, 1
      %v575 = vrot.slane %v409, 1
      %v576 = vsel %vm556, %v574, %v575
      %v577 = vrot.slane %v512, 1
      %v578 = vsel %vm556, %v575, %v577
      %v579 = vrot.slane %v497, 1
      %v580 = vrot.slane %v412, 1
      %v581 = vsel %vm556, %v579, %v580
      %v582 = vrot.slane %v513, 1
      %v583 = vsel %vm556, %v580, %v582
      %v584 = vrot.slane %v498, 1
      %v585 = vrot.slane %v415, 1
      %v586 = vsel %vm556, %v584, %v585
      %v587 = vrot.slane %v514, 1
      %v588 = vsel %vm556, %v585, %v587
      %v589 = vrot.slane %v499, 1
      %v590 = vrot.slane %v418, 1
      %v591 = vsel %vm556, %v589, %v590
      %v592 = vrot.slane %v515, 1
      %v593 = vsel %vm556, %v590, %v592
      %v594 = vrot.slane %v500, 1
      %v595 = vrot.slane %v421, 1
      %v596 = vsel %vm556, %v594, %v595
      %v597 = vrot.slane %v516, 1
      %v598 = vsel %vm556, %v595, %v597
      %v599 = vrot.slane %v501, 1
      %v600 = vrot.slane %v424, 1
      %v601 = vsel %vm556, %v599, %v600
      %v602 = vrot.slane %v517, 1
      %v603 = vsel %vm556, %v600, %v602
      %v604 = vrot.slane %v502, 1
      %v605 = vrot.slane %v427, 1
      %v606 = vsel %vm556, %v604, %v605
      %v607 = vrot.slane %v518, 1
      %v608 = vsel %vm556, %v605, %v607
      %v609 = vrot.slane %v503, 1
      %v610 = vrot.slane %v430, 1
      %v611 = vsel %vm556, %v609, %v610
      %v612 = vrot.slane %v519, 1
      %v613 = vsel %vm556, %v610, %v612
      %v614 = vrot.slane %v504, 1
      %v615 = vrot.slane %v433, 1
      %v616 = vsel %vm556, %v614, %v615
      %v617 = vrot.slane %v520, 1
      %v618 = vsel %vm556, %v615, %v617
      %v619 = vrot.slane %v505, 1
      %v620 = vrot.slane %v436, 1
      %v621 = vsel %vm556, %v619, %v620
      %v622 = vrot.slane %v521, 1
      %v623 = vsel %vm556, %v620, %v622
      %v624 = vrot.slane %v506, 1
      %v625 = vrot.slane %v439, 1
      %v626 = vsel %vm556, %v624, %v625
      %v627 = vrot.slane %v522, 1
      %v628 = vsel %vm556, %v625, %v627
      %v629 = vrot.slane %v507, 1
      %v630 = vrot.slane %v442, 1
      %v631 = vsel %vm556, %v629, %v630
      %v632 = vrot.slane %v523, 1
      %v633 = vsel %vm556, %v630, %v632
      %634 = vrot.lane.b32.xlu0 %v558, 11
      %v635 = vpop.permute.xlu0 %634
      %636 = vrot.lane.b32.xlu0 %v561, 11
      %v637 = vpop.permute.xlu0 %636
      %638 = vrot.lane.b32.xlu0 %v563, 11
      %v639 = vpop.permute.xlu0 %638
      %640 = vrot.lane.b32.xlu0 %v566, 11
      %v641 = vpop.permute.xlu0 %640
      %642 = vrot.lane.b32.xlu0 %v568, 11
      %v643 = vpop.permute.xlu0 %642
      %644 = vrot.lane.b32.xlu0 %v571, 11
      %v645 = vpop.permute.xlu0 %644
      %646 = vrot.lane.b32.xlu0 %v573, 11
      %v647 = vpop.permute.xlu0 %646
      %648 = vrot.lane.b32.xlu0 %v576, 11
      %v649 = vpop.permute.xlu0 %648
      %650 = vrot.lane.b32.xlu0 %v578, 11
      %v651 = vpop.permute.xlu0 %650
      %652 = vrot.lane.b32.xlu0 %v581, 11
      %v653 = vpop.permute.xlu0 %652
      %654 = vrot.lane.b32.xlu0 %v583, 11
      %v655 = vpop.permute.xlu0 %654
      %656 = vrot.lane.b32.xlu0 %v586, 11
      %v657 = vpop.permute.xlu0 %656
      %658 = vrot.lane.b32.xlu0 %v588, 11
      %v659 = vpop.permute.xlu0 %658
      %660 = vrot.lane.b32.xlu0 %v591, 11
      %v661 = vpop.permute.xlu0 %660
      %662 = vrot.lane.b32.xlu0 %v593, 11
      %v663 = vpop.permute.xlu0 %662
      %664 = vrot.lane.b32.xlu0 %v596, 11
      %v665 = vpop.permute.xlu0 %664
      %666 = vrot.lane.b32.xlu0 %v598, 11
      %v667 = vpop.permute.xlu0 %666
      %668 = vrot.lane.b32.xlu0 %v601, 11
      %v669 = vpop.permute.xlu0 %668
      %670 = vrot.lane.b32.xlu0 %v603, 11
      %v671 = vpop.permute.xlu0 %670
      %672 = vrot.lane.b32.xlu0 %v606, 11
      %v673 = vpop.permute.xlu0 %672
      %674 = vrot.lane.b32.xlu0 %v608, 11
      %v675 = vpop.permute.xlu0 %674
      %676 = vrot.lane.b32.xlu0 %v611, 11
      %v677 = vpop.permute.xlu0 %676
      %678 = vrot.lane.b32.xlu0 %v613, 11
      %v679 = vpop.permute.xlu0 %678
      %680 = vrot.lane.b32.xlu0 %v616, 11
      %v681 = vpop.permute.xlu0 %680
      %682 = vrot.lane.b32.xlu0 %v618, 11
      %v683 = vpop.permute.xlu0 %682
      %684 = vrot.lane.b32.xlu0 %v621, 11
      %v685 = vpop.permute.xlu0 %684
      %686 = vrot.lane.b32.xlu0 %v623, 11
      %v687 = vpop.permute.xlu0 %686
      %688 = vrot.lane.b32.xlu0 %v626, 11
      %v689 = vpop.permute.xlu0 %688
      %690 = vrot.lane.b32.xlu0 %v628, 11
      %v691 = vpop.permute.xlu0 %690
      %692 = vrot.lane.b32.xlu0 %v631, 11
      %v693 = vpop.permute.xlu0 %692
      %694 = vrot.lane.b32.xlu0 %v633, 11
      %v695 = vpop.permute.xlu0 %694
      %vm727 = vcmask 1045504
      %v728 = vrot.slane 0.0, 2
      %v729 = vsel %vm727, %v728, %v728
      %v730 = vrot.slane %v493, 2
      %v731 = vrot.slane %v400, 2
      %v732 = vsel %vm727, %v730, %v731
      %v733 = vrot.slane %v509, 2
      %v734 = vsel %vm727, %v731, %v733
      %v735 = vrot.slane %v494, 2
      %v736 = vrot.slane %v403, 2
      %v737 = vsel %vm727, %v735, %v736
      %v738 = vrot.slane %v510, 2
      %v739 = vsel %vm727, %v736, %v738
      %v740 = vrot.slane %v495, 2
      %v741 = vrot.slane %v406, 2
      %v742 = vsel %vm727, %v740, %v741
      %v743 = vrot.slane %v511, 2
      %v744 = vsel %vm727, %v741, %v743
      %v745 = vrot.slane %v496, 2
      %v746 = vrot.slane %v409, 2
      %v747 = vsel %vm727, %v745, %v746
      %v748 = vrot.slane %v512, 2
      %v749 = vsel %vm727, %v746, %v748
      %v750 = vrot.slane %v497, 2
      %v751 = vrot.slane %v412, 2
      %v752 = vsel %vm727, %v750, %v751
      %v753 = vrot.slane %v513, 2
      %v754 = vsel %vm727, %v751, %v753
      %v755 = vrot.slane %v498, 2
      %v756 = vrot.slane %v415, 2
      %v757 = vsel %vm727, %v755, %v756
      %v758 = vrot.slane %v514, 2
      %v759 = vsel %vm727, %v756, %v758
      %v760 = vrot.slane %v499, 2
      %v761 = vrot.slane %v418, 2
      %v762 = vsel %vm727, %v760, %v761
      %v763 = vrot.slane %v515, 2
      %v764 = vsel %vm727, %v761, %v763
      %v765 = vrot.slane %v500, 2
      %v766 = vrot.slane %v421, 2
      %v767 = vsel %vm727, %v765, %v766
      %v768 = vrot.slane %v516, 2
      %v769 = vsel %vm727, %v766, %v768
      %v770 = vrot.slane %v501, 2
      %v771 = vrot.slane %v424, 2
      %v772 = vsel %vm727, %v770, %v771
      %v773 = vrot.slane %v517, 2
      %v774 = vsel %vm727, %v771, %v773
      %v775 = vrot.slane %v502, 2
      %v776 = vrot.slane %v427, 2
      %v777 = vsel %vm727, %v775, %v776
      %v778 = vrot.slane %v518, 2
      %v779 = vsel %vm727, %v776, %v778
      %v780 = vrot.slane %v503, 2
      %v781 = vrot.slane %v430, 2
      %v782 = vsel %vm727, %v780, %v781
      %v783 = vrot.slane %v519, 2
      %v784 = vsel %vm727, %v781, %v783
      %v785 = vrot.slane %v504, 2
      %v786 = vrot.slane %v433, 2
      %v787 = vsel %vm727, %v785, %v786
      %v788 = vrot.slane %v520, 2
      %v789 = vsel %vm727, %v786, %v788
      %v790 = vrot.slane %v505, 2
      %v791 = vrot.slane %v436, 2
      %v792 = vsel %vm727, %v790, %v791
      %v793 = vrot.slane %v521, 2
      %v794 = vsel %vm727, %v791, %v793
      %v795 = vrot.slane %v506, 2
      %v796 = vrot.slane %v439, 2
      %v797 = vsel %vm727, %v795, %v796
      %v798 = vrot.slane %v522, 2
      %v799 = vsel %vm727, %v796, %v798
      %v800 = vrot.slane %v507, 2
      %v801 = vrot.slane %v442, 2
      %v802 = vsel %vm727, %v800, %v801
      %v803 = vrot.slane %v523, 2
      %v804 = vsel %vm727, %v801, %v803
      %805 = vrot.lane.b32.xlu0 %v729, 22
      %v806 = vpop.permute.xlu0 %805
      %807 = vrot.lane.b32.xlu0 %v732, 22
      %v808 = vpop.permute.xlu0 %807
      %809 = vrot.lane.b32.xlu0 %v734, 22
      %v810 = vpop.permute.xlu0 %809
      %811 = vrot.lane.b32.xlu0 %v737, 22
      %v812 = vpop.permute.xlu0 %811
      %813 = vrot.lane.b32.xlu0 %v739, 22
      %v814 = vpop.permute.xlu0 %813
      %815 = vrot.lane.b32.xlu0 %v742, 22
      %v816 = vpop.permute.xlu0 %815
      %817 = vrot.lane.b32.xlu0 %v744, 22
      %v818 = vpop.permute.xlu0 %817
      %819 = vrot.lane.b32.xlu0 %v747, 22
      %v820 = vpop.permute.xlu0 %819
      %821 = vrot.lane.b32.xlu0 %v749, 22
      %v822 = vpop.permute.xlu0 %821
      %823 = vrot.lane.b32.xlu0 %v752, 22
      %v824 = vpop.permute.xlu0 %823
      %825 = vrot.lane.b32.xlu0 %v754, 22
      %v826 = vpop.permute.xlu0 %825
      %827 = vrot.lane.b32.xlu0 %v757, 22
      %v828 = vpop.permute.xlu0 %827
      %829 = vrot.lane.b32.xlu0 %v759, 22
      %v830 = vpop.permute.xlu0 %829
      %831 = vrot.lane.b32.xlu0 %v762, 22
      %v832 = vpop.permute.xlu0 %831
      %833 = vrot.lane.b32.xlu0 %v764, 22
      %v834 = vpop.permute.xlu0 %833
      %835 = vrot.lane.b32.xlu0 %v767, 22
      %v836 = vpop.permute.xlu0 %835
      %837 = vrot.lane.b32.xlu0 %v769, 22
      %v838 = vpop.permute.xlu0 %837
      %839 = vrot.lane.b32.xlu0 %v772, 22
      %v840 = vpop.permute.xlu0 %839
      %841 = vrot.lane.b32.xlu0 %v774, 22
      %v842 = vpop.permute.xlu0 %841
      %843 = vrot.lane.b32.xlu0 %v777, 22
      %v844 = vpop.permute.xlu0 %843
      %845 = vrot.lane.b32.xlu0 %v779, 22
      %v846 = vpop.permute.xlu0 %845
      %847 = vrot.lane.b32.xlu0 %v782, 22
      %v848 = vpop.permute.xlu0 %847
      %849 = vrot.lane.b32.xlu0 %v784, 22
      %v850 = vpop.permute.xlu0 %849
      %851 = vrot.lane.b32.xlu0 %v787, 22
      %v852 = vpop.permute.xlu0 %851
      %853 = vrot.lane.b32.xlu0 %v789, 22
      %v854 = vpop.permute.xlu0 %853
      %855 = vrot.lane.b32.xlu0 %v792, 22
      %v856 = vpop.permute.xlu0 %855
      %857 = vrot.lane.b32.xlu0 %v794, 22
      %v858 = vpop.permute.xlu0 %857
      %859 = vrot.lane.b32.xlu0 %v797, 22
      %v860 = vpop.permute.xlu0 %859
      %861 = vrot.lane.b32.xlu0 %v799, 22
      %v862 = vpop.permute.xlu0 %861
      %863 = vrot.lane.b32.xlu0 %v802, 22
      %v864 = vpop.permute.xlu0 %863
      %865 = vrot.lane.b32.xlu0 %v804, 22
      %v866 = vpop.permute.xlu0 %865
      %899 = vrot.lane.b32.xlu0 %v493, 33
      %v900 = vpop.permute.xlu0 %899
      %901 = vrot.lane.b32.xlu0 %v400, 33
      %v902 = vpop.permute.xlu0 %901
      %903 = vrot.lane.b32.xlu0 %v494, 33
      %v904 = vpop.permute.xlu0 %903
      %905 = vrot.lane.b32.xlu0 %v403, 33
      %v906 = vpop.permute.xlu0 %905
      %907 = vrot.lane.b32.xlu0 %v495, 33
      %v908 = vpop.permute.xlu0 %907
      %909 = vrot.lane.b32.xlu0 %v406, 33
      %v910 = vpop.permute.xlu0 %909
      %911 = vrot.lane.b32.xlu0 %v496, 33
      %v912 = vpop.permute.xlu0 %911
      %913 = vrot.lane.b32.xlu0 %v409, 33
      %v914 = vpop.permute.xlu0 %913
      %915 = vrot.lane.b32.xlu0 %v497, 33
      %v916 = vpop.permute.xlu0 %915
      %917 = vrot.lane.b32.xlu0 %v412, 33
      %v918 = vpop.permute.xlu0 %917
      %919 = vrot.lane.b32.xlu0 %v498, 33
      %v920 = vpop.permute.xlu0 %919
      %921 = vrot.lane.b32.xlu0 %v415, 33
      %v922 = vpop.permute.xlu0 %921
      %923 = vrot.lane.b32.xlu0 %v499, 33
      %v924 = vpop.permute.xlu0 %923
      %925 = vrot.lane.b32.xlu0 %v418, 33
      %v926 = vpop.permute.xlu0 %925
      %927 = vrot.lane.b32.xlu0 %v500, 33
      %v928 = vpop.permute.xlu0 %927
      %929 = vrot.lane.b32.xlu0 %v421, 33
      %v930 = vpop.permute.xlu0 %929
      %931 = vrot.lane.b32.xlu0 %v501, 33
      %v932 = vpop.permute.xlu0 %931
      %933 = vrot.lane.b32.xlu0 %v424, 33
      %v934 = vpop.permute.xlu0 %933
      %935 = vrot.lane.b32.xlu0 %v502, 33
      %v936 = vpop.permute.xlu0 %935
      %937 = vrot.lane.b32.xlu0 %v427, 33
      %v938 = vpop.permute.xlu0 %937
      %939 = vrot.lane.b32.xlu0 %v503, 33
      %v940 = vpop.permute.xlu0 %939
      %941 = vrot.lane.b32.xlu0 %v430, 33
      %v942 = vpop.permute.xlu0 %941
      %943 = vrot.lane.b32.xlu0 %v504, 33
      %v944 = vpop.permute.xlu0 %943
      %945 = vrot.lane.b32.xlu0 %v433, 33
      %v946 = vpop.permute.xlu0 %945
      %947 = vrot.lane.b32.xlu0 %v505, 33
      %v948 = vpop.permute.xlu0 %947
      %949 = vrot.lane.b32.xlu0 %v436, 33
      %v950 = vpop.permute.xlu0 %949
      %951 = vrot.lane.b32.xlu0 %v506, 33
      %v952 = vpop.permute.xlu0 %951
      %953 = vrot.lane.b32.xlu0 %v439, 33
      %v954 = vpop.permute.xlu0 %953
      %955 = vrot.lane.b32.xlu0 %v507, 33
      %v956 = vpop.permute.xlu0 %955
      %957 = vrot.lane.b32.xlu0 %v442, 33
      %v958 = vpop.permute.xlu0 %957
      %959 = vrot.lane.b32.xlu0 %v508, 33
      %v960 = vpop.permute.xlu0 %959
      %961 = vrot.lane.b32.xlu0 %v445, 33
      %v962 = vpop.permute.xlu0 %961
      %v996 = vrot.slane %v508, 1
      %v997 = vrot.slane %v445, 1
      %v998 = vsel %vm556, %v996, %v997
      %v999 = vrot.slane %v524, 1
      %v1000 = vsel %vm556, %v997, %v999
      %1001 = vrot.lane.b32.xlu0 %v561, 44
      %v1002 = vpop.permute.xlu0 %1001
      %1003 = vrot.lane.b32.xlu0 %v563, 44
      %v1004 = vpop.permute.xlu0 %1003
      %1005 = vrot.lane.b32.xlu0 %v566, 44
      %v1006 = vpop.permute.xlu0 %1005
      %1007 = vrot.lane.b32.xlu0 %v568, 44
      %v1008 = vpop.permute.xlu0 %1007
      %1009 = vrot.lane.b32.xlu0 %v571, 44
      %v1010 = vpop.permute.xlu0 %1009
      %1011 = vrot.lane.b32.xlu0 %v573, 44
      %v1012 = vpop.permute.xlu0 %1011
      %1013 = vrot.lane.b32.xlu0 %v576, 44
      %v1014 = vpop.permute.xlu0 %1013
      %1015 = vrot.lane.b32.xlu0 %v578, 44
      %v1016 = vpop.permute.xlu0 %1015
      %1017 = vrot.lane.b32.xlu0 %v581, 44
      %v1018 = vpop.permute.xlu0 %1017
      %1019 = vrot.lane.b32.xlu0 %v583, 44
      %v1020 = vpop.permute.xlu0 %1019
      %1021 = vrot.lane.b32.xlu0 %v586, 44
      %v1022 = vpop.permute.xlu0 %1021
      %1023 = vrot.lane.b32.xlu0 %v588, 44
      %v1024 = vpop.permute.xlu0 %1023
      %1025 = vrot.lane.b32.xlu0 %v591, 44
      %v1026 = vpop.permute.xlu0 %1025
      %1027 = vrot.lane.b32.xlu0 %v593, 44
      %v1028 = vpop.permute.xlu0 %1027
      %1029 = vrot.lane.b32.xlu0 %v596, 44
      %v1030 = vpop.permute.xlu0 %1029
      %1031 = vrot.lane.b32.xlu0 %v598, 44
      %v1032 = vpop.permute.xlu0 %1031
      %1033 = vrot.lane.b32.xlu0 %v601, 44
      %v1034 = vpop.permute.xlu0 %1033
      %1035 = vrot.lane.b32.xlu0 %v603, 44
      %v1036 = vpop.permute.xlu0 %1035
      %1037 = vrot.lane.b32.xlu0 %v606, 44
      %v1038 = vpop.permute.xlu0 %1037
      %1039 = vrot.lane.b32.xlu0 %v608, 44
      %v1040 = vpop.permute.xlu0 %1039
      %1041 = vrot.lane.b32.xlu0 %v611, 44
      %v1042 = vpop.permute.xlu0 %1041
      %1043 = vrot.lane.b32.xlu0 %v613, 44
      %v1044 = vpop.permute.xlu0 %1043
      %1045 = vrot.lane.b32.xlu0 %v616, 44
      %v1046 = vpop.permute.xlu0 %1045
      %1047 = vrot.lane.b32.xlu0 %v618, 44
      %v1048 = vpop.permute.xlu0 %1047
      %1049 = vrot.lane.b32.xlu0 %v621, 44
      %v1050 = vpop.permute.xlu0 %1049
      %1051 = vrot.lane.b32.xlu0 %v623, 44
      %v1052 = vpop.permute.xlu0 %1051
      %1053 = vrot.lane.b32.xlu0 %v626, 44
      %v1054 = vpop.permute.xlu0 %1053
      %1055 = vrot.lane.b32.xlu0 %v628, 44
      %v1056 = vpop.permute.xlu0 %1055
      %1057 = vrot.lane.b32.xlu0 %v631, 44
      %v1058 = vpop.permute.xlu0 %1057
      %1059 = vrot.lane.b32.xlu0 %v633, 44
      %v1060 = vpop.permute.xlu0 %1059
      %1061 = vrot.lane.b32.xlu0 %v998, 44
      %v1062 = vpop.permute.xlu0 %1061
      %1063 = vrot.lane.b32.xlu0 %v1000, 44
      %v1064 = vpop.permute.xlu0 %1063
      %v1097 = vrot.slane %v508, 2
      %v1098 = vrot.slane %v445, 2
      %v1099 = vsel %vm727, %v1097, %v1098
      %v1100 = vrot.slane %v524, 2
      %v1101 = vsel %vm727, %v1098, %v1100
      %1102 = vrot.lane.b32.xlu0 %v732, 55
      %v1103 = vpop.permute.xlu0 %1102
      %1104 = vrot.lane.b32.xlu0 %v734, 55
      %v1105 = vpop.permute.xlu0 %1104
      %1106 = vrot.lane.b32.xlu0 %v737, 55
      %v1107 = vpop.permute.xlu0 %1106
      %1108 = vrot.lane.b32.xlu0 %v739, 55
      %v1109 = vpop.permute.xlu0 %1108
      %1110 = vrot.lane.b32.xlu0 %v742, 55
      %v1111 = vpop.permute.xlu0 %1110
      %1112 = vrot.lane.b32.xlu0 %v744, 55
      %v1113 = vpop.permute.xlu0 %1112
      %1114 = vrot.lane.b32.xlu0 %v747, 55
      %v1115 = vpop.permute.xlu0 %1114
      %1116 = vrot.lane.b32.xlu0 %v749, 55
      %v1117 = vpop.permute.xlu0 %1116
      %1118 = vrot.lane.b32.xlu0 %v752, 55
      %v1119 = vpop.permute.xlu0 %1118
      %1120 = vrot.lane.b32.xlu0 %v754, 55
      %v1121 = vpop.permute.xlu0 %1120
      %1122 = vrot.lane.b32.xlu0 %v757, 55
      %v1123 = vpop.permute.xlu0 %1122
      %1124 = vrot.lane.b32.xlu0 %v759, 55
      %v1125 = vpop.permute.xlu0 %1124
      %1126 = vrot.lane.b32.xlu0 %v762, 55
      %v1127 = vpop.permute.xlu0 %1126
      %1128 = vrot.lane.b32.xlu0 %v764, 55
      %v1129 = vpop.permute.xlu0 %1128
      %1130 = vrot.lane.b32.xlu0 %v767, 55
      %v1131 = vpop.permute.xlu0 %1130
      %1132 = vrot.lane.b32.xlu0 %v769, 55
      %v1133 = vpop.permute.xlu0 %1132
      %1134 = vrot.lane.b32.xlu0 %v772, 55
      %v1135 = vpop.permute.xlu0 %1134
      %1136 = vrot.lane.b32.xlu0 %v774, 55
      %v1137 = vpop.permute.xlu0 %1136
      %1138 = vrot.lane.b32.xlu0 %v777, 55
      %v1139 = vpop.permute.xlu0 %1138
      %1140 = vrot.lane.b32.xlu0 %v779, 55
      %v1141 = vpop.permute.xlu0 %1140
      %1142 = vrot.lane.b32.xlu0 %v782, 55
      %v1143 = vpop.permute.xlu0 %1142
      %1144 = vrot.lane.b32.xlu0 %v784, 55
      %v1145 = vpop.permute.xlu0 %1144
      %1146 = vrot.lane.b32.xlu0 %v787, 55
      %v1147 = vpop.permute.xlu0 %1146
      %1148 = vrot.lane.b32.xlu0 %v789, 55
      %v1149 = vpop.permute.xlu0 %1148
      %1150 = vrot.lane.b32.xlu0 %v792, 55
      %v1151 = vpop.permute.xlu0 %1150
      %1152 = vrot.lane.b32.xlu0 %v794, 55
      %v1153 = vpop.permute.xlu0 %1152
      %1154 = vrot.lane.b32.xlu0 %v797, 55
      %v1155 = vpop.permute.xlu0 %1154
      %1156 = vrot.lane.b32.xlu0 %v799, 55
      %v1157 = vpop.permute.xlu0 %1156
      %1158 = vrot.lane.b32.xlu0 %v802, 55
      %v1159 = vpop.permute.xlu0 %1158
      %1160 = vrot.lane.b32.xlu0 %v804, 55
      %v1161 = vpop.permute.xlu0 %1160
      %1162 = vrot.lane.b32.xlu0 %v1099, 55
      %v1163 = vpop.permute.xlu0 %1162
      %1164 = vrot.lane.b32.xlu0 %v1101, 55
      %v1165 = vpop.permute.xlu0 %1164
      %1198 = vrot.lane.b32.xlu0 %v494, 66
      %v1199 = vpop.permute.xlu0 %1198
      %1200 = vrot.lane.b32.xlu0 %v403, 66
      %v1201 = vpop.permute.xlu0 %1200
      %1202 = vrot.lane.b32.xlu0 %v495, 66
      %v1203 = vpop.permute.xlu0 %1202
      %1204 = vrot.lane.b32.xlu0 %v406, 66
      %v1205 = vpop.permute.xlu0 %1204
      %1206 = vrot.lane.b32.xlu0 %v496, 66
      %v1207 = vpop.permute.xlu0 %1206
      %1208 = vrot.lane.b32.xlu0 %v409, 66
      %v1209 = vpop.permute.xlu0 %1208
      %1210 = vrot.lane.b32.xlu0 %v497, 66
      %v1211 = vpop.permute.xlu0 %1210
      %1212 = vrot.lane.b32.xlu0 %v412, 66
      %v1213 = vpop.permute.xlu0 %1212
      %1214 = vrot.lane.b32.xlu0 %v498, 66
      %v1215 = vpop.permute.xlu0 %1214
      %1216 = vrot.lane.b32.xlu0 %v415, 66
      %v1217 = vpop.permute.xlu0 %1216
      %1218 = vrot.lane.b32.xlu0 %v499, 66
      %v1219 = vpop.permute.xlu0 %1218
      %1220 = vrot.lane.b32.xlu0 %v418, 66
      %v1221 = vpop.permute.xlu0 %1220
      %1222 = vrot.lane.b32.xlu0 %v500, 66
      %v1223 = vpop.permute.xlu0 %1222
      %1224 = vrot.lane.b32.xlu0 %v421, 66
      %v1225 = vpop.permute.xlu0 %1224
      %1226 = vrot.lane.b32.xlu0 %v501, 66
      %v1227 = vpop.permute.xlu0 %1226
      %1228 = vrot.lane.b32.xlu0 %v424, 66
      %v1229 = vpop.permute.xlu0 %1228
      %1230 = vrot.lane.b32.xlu0 %v502, 66
      %v1231 = vpop.permute.xlu0 %1230
      %1232 = vrot.lane.b32.xlu0 %v427, 66
      %v1233 = vpop.permute.xlu0 %1232
      %1234 = vrot.lane.b32.xlu0 %v503, 66
      %v1235 = vpop.permute.xlu0 %1234
      %1236 = vrot.lane.b32.xlu0 %v430, 66
      %v1237 = vpop.permute.xlu0 %1236
      %1238 = vrot.lane.b32.xlu0 %v504, 66
      %v1239 = vpop.permute.xlu0 %1238
      %1240 = vrot.lane.b32.xlu0 %v433, 66
      %v1241 = vpop.permute.xlu0 %1240
      %1242 = vrot.lane.b32.xlu0 %v505, 66
      %v1243 = vpop.permute.xlu0 %1242
      %1244 = vrot.lane.b32.xlu0 %v436, 66
      %v1245 = vpop.permute.xlu0 %1244
      %1246 = vrot.lane.b32.xlu0 %v506, 66
      %v1247 = vpop.permute.xlu0 %1246
      %1248 = vrot.lane.b32.xlu0 %v439, 66
      %v1249 = vpop.permute.xlu0 %1248
      %1250 = vrot.lane.b32.xlu0 %v507, 66
      %v1251 = vpop.permute.xlu0 %1250
      %1252 = vrot.lane.b32.xlu0 %v442, 66
      %v1253 = vpop.permute.xlu0 %1252
      %1254 = vrot.lane.b32.xlu0 %v508, 66
      %v1255 = vpop.permute.xlu0 %1254
      %1256 = vrot.lane.b32.xlu0 %v445, 66
      %v1257 = vpop.permute.xlu0 %1256
      %1258 = vrot.lane.b32.xlu0 0.0, 66
      %v1259 = vpop.permute.xlu0 %1258
      %1291 = vrot.lane.b32.xlu0 %v566, 77
      %v1292 = vpop.permute.xlu0 %1291
      %1293 = vrot.lane.b32.xlu0 %v568, 77
      %v1294 = vpop.permute.xlu0 %1293
      %1295 = vrot.lane.b32.xlu0 %v571, 77
      %v1296 = vpop.permute.xlu0 %1295
      %1297 = vrot.lane.b32.xlu0 %v573, 77
      %v1298 = vpop.permute.xlu0 %1297
      %1299 = vrot.lane.b32.xlu0 %v576, 77
      %v1300 = vpop.permute.xlu0 %1299
      %1301 = vrot.lane.b32.xlu0 %v578, 77
      %v1302 = vpop.permute.xlu0 %1301
      %1303 = vrot.lane.b32.xlu0 %v581, 77
      %v1304 = vpop.permute.xlu0 %1303
      %1305 = vrot.lane.b32.xlu0 %v583, 77
      %v1306 = vpop.permute.xlu0 %1305
      %1307 = vrot.lane.b32.xlu0 %v586, 77
      %v1308 = vpop.permute.xlu0 %1307
      %1309 = vrot.lane.b32.xlu0 %v588, 77
      %v1310 = vpop.permute.xlu0 %1309
      %1311 = vrot.lane.b32.xlu0 %v591, 77
      %v1312 = vpop.permute.xlu0 %1311
      %1313 = vrot.lane.b32.xlu0 %v593, 77
      %v1314 = vpop.permute.xlu0 %1313
      %1315 = vrot.lane.b32.xlu0 %v596, 77
      %v1316 = vpop.permute.xlu0 %1315
      %1317 = vrot.lane.b32.xlu0 %v598, 77
      %v1318 = vpop.permute.xlu0 %1317
      %1319 = vrot.lane.b32.xlu0 %v601, 77
      %v1320 = vpop.permute.xlu0 %1319
      %1321 = vrot.lane.b32.xlu0 %v603, 77
      %v1322 = vpop.permute.xlu0 %1321
      %1323 = vrot.lane.b32.xlu0 %v606, 77
      %v1324 = vpop.permute.xlu0 %1323
      %1325 = vrot.lane.b32.xlu0 %v608, 77
      %v1326 = vpop.permute.xlu0 %1325
      %1327 = vrot.lane.b32.xlu0 %v611, 77
      %v1328 = vpop.permute.xlu0 %1327
      %1329 = vrot.lane.b32.xlu0 %v613, 77
      %v1330 = vpop.permute.xlu0 %1329
      %1331 = vrot.lane.b32.xlu0 %v616, 77
      %v1332 = vpop.permute.xlu0 %1331
      %1333 = vrot.lane.b32.xlu0 %v618, 77
      %v1334 = vpop.permute.xlu0 %1333
      %1335 = vrot.lane.b32.xlu0 %v621, 77
      %v1336 = vpop.permute.xlu0 %1335
      %1337 = vrot.lane.b32.xlu0 %v623, 77
      %v1338 = vpop.permute.xlu0 %1337
      %1339 = vrot.lane.b32.xlu0 %v626, 77
      %v1340 = vpop.permute.xlu0 %1339
      %1341 = vrot.lane.b32.xlu0 %v628, 77
      %v1342 = vpop.permute.xlu0 %1341
      %1343 = vrot.lane.b32.xlu0 %v631, 77
      %v1344 = vpop.permute.xlu0 %1343
      %1345 = vrot.lane.b32.xlu0 %v633, 77
      %v1346 = vpop.permute.xlu0 %1345
      %1347 = vrot.lane.b32.xlu0 %v998, 77
      %v1348 = vpop.permute.xlu0 %1347
      %1349 = vrot.lane.b32.xlu0 %v1000, 77
      %v1350 = vpop.permute.xlu0 %1349
      %1351 = vrot.lane.b32.xlu0 %v558, 77
      %v1352 = vpop.permute.xlu0 %1351
      %1384 = vrot.lane.b32.xlu0 %v737, 88
      %v1385 = vpop.permute.xlu0 %1384
      %1386 = vrot.lane.b32.xlu0 %v739, 88
      %v1387 = vpop.permute.xlu0 %1386
      %1388 = vrot.lane.b32.xlu0 %v742, 88
      %v1389 = vpop.permute.xlu0 %1388
      %1390 = vrot.lane.b32.xlu0 %v744, 88
      %v1391 = vpop.permute.xlu0 %1390
      %1392 = vrot.lane.b32.xlu0 %v747, 88
      %v1393 = vpop.permute.xlu0 %1392
      %1394 = vrot.lane.b32.xlu0 %v749, 88
      %v1395 = vpop.permute.xlu0 %1394
      %1396 = vrot.lane.b32.xlu0 %v752, 88
      %v1397 = vpop.permute.xlu0 %1396
      %1398 = vrot.lane.b32.xlu0 %v754, 88
      %v1399 = vpop.permute.xlu0 %1398
      %1400 = vrot.lane.b32.xlu0 %v757, 88
      %v1401 = vpop.permute.xlu0 %1400
      %1402 = vrot.lane.b32.xlu0 %v759, 88
      %v1403 = vpop.permute.xlu0 %1402
      %1404 = vrot.lane.b32.xlu0 %v762, 88
      %v1405 = vpop.permute.xlu0 %1404
      %1406 = vrot.lane.b32.xlu0 %v764, 88
      %v1407 = vpop.permute.xlu0 %1406
      %1408 = vrot.lane.b32.xlu0 %v767, 88
      %v1409 = vpop.permute.xlu0 %1408
      %1410 = vrot.lane.b32.xlu0 %v769, 88
      %v1411 = vpop.permute.xlu0 %1410
      %1412 = vrot.lane.b32.xlu0 %v772, 88
      %v1413 = vpop.permute.xlu0 %1412
      %1414 = vrot.lane.b32.xlu0 %v774, 88
      %v1415 = vpop.permute.xlu0 %1414
      %1416 = vrot.lane.b32.xlu0 %v777, 88
      %v1417 = vpop.permute.xlu0 %1416
      %1418 = vrot.lane.b32.xlu0 %v779, 88
      %v1419 = vpop.permute.xlu0 %1418
      %1420 = vrot.lane.b32.xlu0 %v782, 88
      %v1421 = vpop.permute.xlu0 %1420
      %1422 = vrot.lane.b32.xlu0 %v784, 88
      %v1423 = vpop.permute.xlu0 %1422
      %1424 = vrot.lane.b32.xlu0 %v787, 88
      %v1425 = vpop.permute.xlu0 %1424
      %1426 = vrot.lane.b32.xlu0 %v789, 88
      %v1427 = vpop.permute.xlu0 %1426
      %1428 = vrot.lane.b32.xlu0 %v792, 88
      %v1429 = vpop.permute.xlu0 %1428
      %1430 = vrot.lane.b32.xlu0 %v794, 88
      %v1431 = vpop.permute.xlu0 %1430
      %1432 = vrot.lane.b32.xlu0 %v797, 88
      %v1433 = vpop.permute.xlu0 %1432
      %1434 = vrot.lane.b32.xlu0 %v799, 88
      %v1435 = vpop.permute.xlu0 %1434
      %1436 = vrot.lane.b32.xlu0 %v802, 88
      %v1437 = vpop.permute.xlu0 %1436
      %1438 = vrot.lane.b32.xlu0 %v804, 88
      %v1439 = vpop.permute.xlu0 %1438
      %1440 = vrot.lane.b32.xlu0 %v1099, 88
      %v1441 = vpop.permute.xlu0 %1440
      %1442 = vrot.lane.b32.xlu0 %v1101, 88
      %v1443 = vpop.permute.xlu0 %1442
      %1444 = vrot.lane.b32.xlu0 %v729, 88
      %v1445 = vpop.permute.xlu0 %1444
      %vm1477 = vcmask 89088
      %v1478 = vsel %vm1477, 0.0, %v635
      %v1479 = vsel %vm1477, %v493, %v637
      %v1480 = vsel %vm1477, %v400, %v639
      %v1481 = vsel %vm1477, %v494, %v641
      %v1482 = vsel %vm1477, %v403, %v643
      %v1483 = vsel %vm1477, %v495, %v645
      %v1484 = vsel %vm1477, %v406, %v647
      %v1485 = vsel %vm1477, %v496, %v649
      %v1486 = vsel %vm1477, %v409, %v651
      %v1487 = vsel %vm1477, %v497, %v653
      %v1488 = vsel %vm1477, %v412, %v655
      %v1489 = vsel %vm1477, %v498, %v657
      %v1490 = vsel %vm1477, %v415, %v659
      %v1491 = vsel %vm1477, %v499, %v661
      %v1492 = vsel %vm1477, %v418, %v663
      %v1493 = vsel %vm1477, %v500, %v665
      %v1494 = vsel %vm1477, %v421, %v667
      %v1495 = vsel %vm1477, %v501, %v669
      %v1496 = vsel %vm1477, %v424, %v671
      %v1497 = vsel %vm1477, %v502, %v673
      %v1498 = vsel %vm1477, %v427, %v675
      %v1499 = vsel %vm1477, %v503, %v677
      %v1500 = vsel %vm1477, %v430, %v679
      %v1501 = vsel %vm1477, %v504, %v681
      %v1502 = vsel %vm1477, %v433, %v683
      %v1503 = vsel %vm1477, %v505, %v685
      %v1504 = vsel %vm1477, %v436, %v687
      %v1505 = vsel %vm1477, %v506, %v689
      %v1506 = vsel %vm1477, %v439, %v691
      %v1507 = vsel %vm1477, %v507, %v693
      %v1508 = vsel %vm1477, %v442, %v695
      %vm1509 = vcmask 179200
      %v1510 = vsel %vm1509, %v1478, %v806
      %v1511 = vsel %vm1509, %v1479, %v808
      %v1512 = vsel %vm1509, %v1480, %v810
      %v1513 = vsel %vm1509, %v1481, %v812
      %v1514 = vsel %vm1509, %v1482, %v814
      %v1515 = vsel %vm1509, %v1483, %v816
      %v1516 = vsel %vm1509, %v1484, %v818
      %v1517 = vsel %vm1509, %v1485, %v820
      %v1518 = vsel %vm1509, %v1486, %v822
      %v1519 = vsel %vm1509, %v1487, %v824
      %v1520 = vsel %vm1509, %v1488, %v826
      %v1521 = vsel %vm1509, %v1489, %v828
      %v1522 = vsel %vm1509, %v1490, %v830
      %v1523 = vsel %vm1509, %v1491, %v832
      %v1524 = vsel %vm1509, %v1492, %v834
      %v1525 = vsel %vm1509, %v1493, %v836
      %v1526 = vsel %vm1509, %v1494, %v838
      %v1527 = vsel %vm1509, %v1495, %v840
      %v1528 = vsel %vm1509, %v1496, %v842
      %v1529 = vsel %vm1509, %v1497, %v844
      %v1530 = vsel %vm1509, %v1498, %v846
      %v1531 = vsel %vm1509, %v1499, %v848
      %v1532 = vsel %vm1509, %v1500, %v850
      %v1533 = vsel %vm1509, %v1501, %v852
      %v1534 = vsel %vm1509, %v1502, %v854
      %v1535 = vsel %vm1509, %v1503, %v856
      %v1536 = vsel %vm1509, %v1504, %v858
      %v1537 = vsel %vm1509, %v1505, %v860
      %v1538 = vsel %vm1509, %v1506, %v862
      %v1539 = vsel %vm1509, %v1507, %v864
      %v1540 = vsel %vm1509, %v1508, %v866
      %vm1541 = vcmask 269312
      %v1542 = vsel %vm1541, %v1510, %v900
      %v1543 = vsel %vm1541, %v1510, %v902
      %v1544 = vsel %vm1541, %v1511, %v904
      %v1545 = vsel %vm1541, %v1512, %v906
      %v1546 = vsel %vm1541, %v1513, %v908
      %v1547 = vsel %vm1541, %v1514, %v910
      %v1548 = vsel %vm1541, %v1515, %v912
      %v1549 = vsel %vm1541, %v1516, %v914
      %v1550 = vsel %vm1541, %v1517, %v916
      %v1551 = vsel %vm1541, %v1518, %v918
      %v1552 = vsel %vm1541, %v1519, %v920
      %v1553 = vsel %vm1541, %v1520, %v922
      %v1554 = vsel %vm1541, %v1521, %v924
      %v1555 = vsel %vm1541, %v1522, %v926
      %v1556 = vsel %vm1541, %v1523, %v928
      %v1557 = vsel %vm1541, %v1524, %v930
      %v1558 = vsel %vm1541, %v1525, %v932
      %v1559 = vsel %vm1541, %v1526, %v934
      %v1560 = vsel %vm1541, %v1527, %v936
      %v1561 = vsel %vm1541, %v1528, %v938
      %v1562 = vsel %vm1541, %v1529, %v940
      %v1563 = vsel %vm1541, %v1530, %v942
      %v1564 = vsel %vm1541, %v1531, %v944
      %v1565 = vsel %vm1541, %v1532, %v946
      %v1566 = vsel %vm1541, %v1533, %v948
      %v1567 = vsel %vm1541, %v1534, %v950
      %v1568 = vsel %vm1541, %v1535, %v952
      %v1569 = vsel %vm1541, %v1536, %v954
      %v1570 = vsel %vm1541, %v1537, %v956
      %v1571 = vsel %vm1541, %v1538, %v958
      %v1572 = vsel %vm1541, %v1539, %v960
      %v1573 = vsel %vm1541, %v1540, %v962
      %vm1574 = vcmask 359424
      %v1575 = vsel %vm1574, %v1542, %v1002
      %v1576 = vsel %vm1574, %v1543, %v1004
      %v1577 = vsel %vm1574, %v1544, %v1006
      %v1578 = vsel %vm1574, %v1545, %v1008
      %v1579 = vsel %vm1574, %v1546, %v1010
      %v1580 = vsel %vm1574, %v1547, %v1012
      %v1581 = vsel %vm1574, %v1548, %v1014
      %v1582 = vsel %vm1574, %v1549, %v1016
      %v1583 = vsel %vm1574, %v1550, %v1018
      %v1584 = vsel %vm1574, %v1551, %v1020
      %v1585 = vsel %vm1574, %v1552, %v1022
      %v1586 = vsel %vm1574, %v1553, %v1024
      %v1587 = vsel %vm1574, %v1554, %v1026
      %v1588 = vsel %vm1574, %v1555, %v1028
      %v1589 = vsel %vm1574, %v1556, %v1030
      %v1590 = vsel %vm1574, %v1557, %v1032
      %v1591 = vsel %vm1574, %v1558, %v1034
      %v1592 = vsel %vm1574, %v1559, %v1036
      %v1593 = vsel %vm1574, %v1560, %v1038
      %v1594 = vsel %vm1574, %v1561, %v1040
      %v1595 = vsel %vm1574, %v1562, %v1042
      %v1596 = vsel %vm1574, %v1563, %v1044
      %v1597 = vsel %vm1574, %v1564, %v1046
      %v1598 = vsel %vm1574, %v1565, %v1048
      %v1599 = vsel %vm1574, %v1566, %v1050
      %v1600 = vsel %vm1574, %v1567, %v1052
      %v1601 = vsel %vm1574, %v1568, %v1054
      %v1602 = vsel %vm1574, %v1569, %v1056
      %v1603 = vsel %vm1574, %v1570, %v1058
      %v1604 = vsel %vm1574, %v1571, %v1060
      %v1605 = vsel %vm1574, %v1572, %v1062
      %v1606 = vsel %vm1574, %v1573, %v1064
      %vm1607 = vcmask 449536
      %v1608 = vsel %vm1607, %v1575, %v1103
      %v1609 = vsel %vm1607, %v1576, %v1105
      %v1610 = vsel %vm1607, %v1577, %v1107
      %v1611 = vsel %vm1607, %v1578, %v1109
      %v1612 = vsel %vm1607, %v1579, %v1111
      %v1613 = vsel %vm1607, %v1580, %v1113
      %v1614 = vsel %vm1607, %v1581, %v1115
      %v1615 = vsel %vm1607, %v1582, %v1117
      %v1616 = vsel %vm1607, %v1583, %v1119
      %v1617 = vsel %vm1607, %v1584, %v1121
      %v1618 = vsel %vm1607, %v1585, %v1123
      %v1619 = vsel %vm1607, %v1586, %v1125
      %v1620 = vsel %vm1607, %v1587, %v1127
      %v1621 = vsel %vm1607, %v1588, %v1129
      %v1622 = vsel %vm1607, %v1589, %v1131
      %v1623 = vsel %vm1607, %v1590, %v1133
      %v1624 = vsel %vm1607, %v1591, %v1135
      %v1625 = vsel %vm1607, %v1592, %v1137
      %v1626 = vsel %vm1607, %v1593, %v1139
      %v1627 = vsel %vm1607, %v1594, %v1141
      %v1628 = vsel %vm1607, %v1595, %v1143
      %v1629 = vsel %vm1607, %v1596, %v1145
      %v1630 = vsel %vm1607, %v1597, %v1147
      %v1631 = vsel %vm1607, %v1598, %v1149
      %v1632 = vsel %vm1607, %v1599, %v1151
      %v1633 = vsel %vm1607, %v1600, %v1153
      %v1634 = vsel %vm1607, %v1601, %v1155
      %v1635 = vsel %vm1607, %v1602, %v1157
      %v1636 = vsel %vm1607, %v1603, %v1159
      %v1637 = vsel %vm1607, %v1604, %v1161
      %v1638 = vsel %vm1607, %v1605, %v1163
      %v1639 = vsel %vm1607, %v1606, %v1165
      %vm1640 = vcmask 539648
      %v1641 = vsel %vm1640, %v1608, %v1199
      %v1642 = vsel %vm1640, %v1609, %v1201
      %v1643 = vsel %vm1640, %v1610, %v1203
      %v1644 = vsel %vm1640, %v1611, %v1205
      %v1645 = vsel %vm1640, %v1612, %v1207
      %v1646 = vsel %vm1640, %v1613, %v1209
      %v1647 = vsel %vm1640, %v1614, %v1211
      %v1648 = vsel %vm1640, %v1615, %v1213
      %v1649 = vsel %vm1640, %v1616, %v1215
      %v1650 = vsel %vm1640, %v1617, %v1217
      %v1651 = vsel %vm1640, %v1618, %v1219
      %v1652 = vsel %vm1640, %v1619, %v1221
      %v1653 = vsel %vm1640, %v1620, %v1223
      %v1654 = vsel %vm1640, %v1621, %v1225
      %v1655 = vsel %vm1640, %v1622, %v1227
      %v1656 = vsel %vm1640, %v1623, %v1229
      %v1657 = vsel %vm1640, %v1624, %v1231
      %v1658 = vsel %vm1640, %v1625, %v1233
      %v1659 = vsel %vm1640, %v1626, %v1235
      %v1660 = vsel %vm1640, %v1627, %v1237
      %v1661 = vsel %vm1640, %v1628, %v1239
      %v1662 = vsel %vm1640, %v1629, %v1241
      %v1663 = vsel %vm1640, %v1630, %v1243
      %v1664 = vsel %vm1640, %v1631, %v1245
      %v1665 = vsel %vm1640, %v1632, %v1247
      %v1666 = vsel %vm1640, %v1633, %v1249
      %v1667 = vsel %vm1640, %v1634, %v1251
      %v1668 = vsel %vm1640, %v1635, %v1253
      %v1669 = vsel %vm1640, %v1636, %v1255
      %v1670 = vsel %vm1640, %v1637, %v1257
      %v1671 = vsel %vm1640, %v1638, %v1259
      %v1672 = vsel %vm1640, %v1639, %v1259
      %vm1673 = vcmask 629760
      %v1674 = vsel %vm1673, %v1641, %v1292
      %v1675 = vsel %vm1673, %v1642, %v1294
      %v1676 = vsel %vm1673, %v1643, %v1296
      %v1677 = vsel %vm1673, %v1644, %v1298
      %v1678 = vsel %vm1673, %v1645, %v1300
      %v1679 = vsel %vm1673, %v1646, %v1302
      %v1680 = vsel %vm1673, %v1647, %v1304
      %v1681 = vsel %vm1673, %v1648, %v1306
      %v1682 = vsel %vm1673, %v1649, %v1308
      %v1683 = vsel %vm1673, %v1650, %v1310
      %v1684 = vsel %vm1673, %v1651, %v1312
      %v1685 = vsel %vm1673, %v1652, %v1314
      %v1686 = vsel %vm1673, %v1653, %v1316
      %v1687 = vsel %vm1673, %v1654, %v1318
      %v1688 = vsel %vm1673, %v1655, %v1320
      %v1689 = vsel %vm1673, %v1656, %v1322
      %v1690 = vsel %vm1673, %v1657, %v1324
      %v1691 = vsel %vm1673, %v1658, %v1326
      %v1692 = vsel %vm1673, %v1659, %v1328
      %v1693 = vsel %vm1673, %v1660, %v1330
      %v1694 = vsel %vm1673, %v1661, %v1332
      %v1695 = vsel %vm1673, %v1662, %v1334
      %v1696 = vsel %vm1673, %v1663, %v1336
      %v1697 = vsel %vm1673, %v1664, %v1338
      %v1698 = vsel %vm1673, %v1665, %v1340
      %v1699 = vsel %vm1673, %v1666, %v1342
      %v1700 = vsel %vm1673, %v1667, %v1344
      %v1701 = vsel %vm1673, %v1668, %v1346
      %v1702 = vsel %vm1673, %v1669, %v1348
      %v1703 = vsel %vm1673, %v1670, %v1350
      %v1704 = vsel %vm1673, %v1671, %v1352
      %v1705 = vsel %vm1673, %v1672, %v1352
      %vm1706 = vcmask 719872
      %v1707 = vsel %vm1706, %v1674, %v1385
      %v1708 = vsel %vm1706, %v1675, %v1387
      %v1709 = vsel %vm1706, %v1676, %v1389
      %v1710 = vsel %vm1706, %v1677, %v1391
      %v1711 = vsel %vm1706, %v1678, %v1393
      %v1712 = vsel %vm1706, %v1679, %v1395
      %v1713 = vsel %vm1706, %v1680, %v1397
      %v1714 = vsel %vm1706, %v1681, %v1399
      %v1715 = vsel %vm1706, %v1682, %v1401
      %v1716 = vsel %vm1706, %v1683, %v1403
      %v1717 = vsel %vm1706, %v1684, %v1405
      %v1718 = vsel %vm1706, %v1685, %v1407
      %v1719 = vsel %vm1706, %v1686, %v1409
      %v1720 = vsel %vm1706, %v1687, %v1411
      %v1721 = vsel %vm1706, %v1688, %v1413
      %v1722 = vsel %vm1706, %v1689, %v1415
      %v1723 = vsel %vm1706, %v1690, %v1417
      %v1724 = vsel %vm1706, %v1691, %v1419
      %v1725 = vsel %vm1706, %v1692, %v1421
      %v1726 = vsel %vm1706, %v1693, %v1423
      %v1727 = vsel %vm1706, %v1694, %v1425
      %v1728 = vsel %vm1706, %v1695, %v1427
      %v1729 = vsel %vm1706, %v1696, %v1429
      %v1730 = vsel %vm1706, %v1697, %v1431
      %v1731 = vsel %vm1706, %v1698, %v1433
      %v1732 = vsel %vm1706, %v1699, %v1435
      %v1733 = vsel %vm1706, %v1700, %v1437
      %v1734 = vsel %vm1706, %v1701, %v1439
      %v1735 = vsel %vm1706, %v1702, %v1441
      %v1736 = vsel %vm1706, %v1703, %v1443
      %v1737 = vsel %vm1706, %v1704, %v1445
      %v1738 = vsel %vm1706, %v1705, %v1445
      %v1739 = vld [vmem:[%s1] sm:$0xff]
      %v1740 = vld [vmem:[%s1 + $0x8] sm:$0xff]
      %v1741 = vld [vmem:[%s1 + $0x10] sm:$0xff]
      %v1742 = vld [vmem:[%s1 + $0x18] sm:$0xff]
      %v1743 = vld [vmem:[%s1 + $0x20] sm:$0xff]
      %v1744 = vld [vmem:[%s1 + $0x28] sm:$0xff]
      %v1745 = vld [vmem:[%s1 + $0x30] sm:$0xff]
      %v1746 = vld [vmem:[%s1 + $0x38] sm:$0xff]
      %v1747 = vld [vmem:[%s1 + $0x40] sm:$0xff]
      %v1748 = vld [vmem:[%s1 + $0x48] sm:$0xff]
      %v1749 = vld [vmem:[%s1 + $0x50] sm:$0xff]
      %v1750 = vld [vmem:[%s1 + $0x58] sm:$0xff]
      %v1751 = vld [vmem:[%s1 + $0x60] sm:$0x7]
      %v1752 = vld [vmem:[%s2] sm:$0x1]
      %v1754 = vlaneseq
      %v1755 = vshrl.u32 %v1754, 7
      %v1756 = vsub.s32 0, %v1755
      %v1757 = vrot.slane %v1752, %v1756
      %vm1759 = vcmask 809984
      %v1761 = vsel %vm1759, %v1707, 0
      %v1764 = vsel %vm1759, %v1708, 0
      %v1767 = vsel %vm1759, %v1709, 0
      %v1770 = vsel %vm1759, %v1710, 0
      %v1773 = vsel %vm1759, %v1711, 0
      %v1776 = vsel %vm1759, %v1712, 0
      %v1779 = vsel %vm1759, %v1713, 0
      %v1782 = vsel %vm1759, %v1714, 0
      %v1785 = vsel %vm1759, %v1715, 0
      %v1788 = vsel %vm1759, %v1716, 0
      %v1791 = vsel %vm1759, %v1717, 0
      %v1794 = vsel %vm1759, %v1718, 0
      %v1797 = vsel %vm1759, %v1719, 0
      %v1800 = vsel %vm1759, %v1720, 0
      %v1803 = vsel %vm1759, %v1721, 0
      %v1806 = vsel %vm1759, %v1722, 0
      %v1809 = vsel %vm1759, %v1723, 0
      %v1812 = vsel %vm1759, %v1724, 0
      %v1815 = vsel %vm1759, %v1725, 0
      %v1818 = vsel %vm1759, %v1726, 0
      %v1821 = vsel %vm1759, %v1727, 0
      %v1824 = vsel %vm1759, %v1728, 0
      %v1827 = vsel %vm1759, %v1729, 0
      %v1830 = vsel %vm1759, %v1730, 0
      %v1833 = vsel %vm1759, %v1731, 0
      %v1836 = vsel %vm1759, %v1732, 0
      %v1839 = vsel %vm1759, %v1733, 0
      %v1842 = vsel %vm1759, %v1734, 0
      %v1845 = vsel %vm1759, %v1735, 0
      %v1848 = vsel %vm1759, %v1736, 0
      %v1851 = vsel %vm1759, %v1737, 0
      %v1854 = vsel %vm1759, %v1738, 0
      %vm1856 = vcmask 1042432
      %v1858 = vsel %vm1856, %v1751, 0
      %1860 = vmatprep.subr.mxu0 0.0
      %1861 = vmatpush1.msra.mxu0 0.0
      %1862 = vmatprep.subr.mxu0 0.0
      %1863 = vmatpush1.msra.mxu0 0.0
      %1864 = vmatprep.subr.mxu0 0.0
      %1865 = vmatpush1.msra.mxu0 0.0
      %1866 = vmatprep.subr.mxu0 0.0
      %1867 = vmatpush1.msra.mxu0 %v1858
      %1868 = vmatprep.subr.mxu0 0.0
      %1869 = vmatpush1.msra.mxu0 %v1750
      %1870 = vmatprep.subr.mxu0 0.0
      %1871 = vmatpush1.msra.mxu0 %v1749
      %1872 = vmatprep.subr.mxu0 0.0
      %1873 = vmatpush1.msra.mxu0 %v1748
      %1874 = vmatprep.subr.mxu0 0.0
      %1875 = vmatpush1.msra.mxu0 %v1747
      %1876 = vmatprep.subr.mxu0 0.0
      %1877 = vmatpush1.msra.mxu0 %v1746
      %1878 = vmatprep.subr.mxu0 0.0
      %1879 = vmatpush1.msra.mxu0 %v1745
      %1880 = vmatprep.subr.mxu0 0.0
      %1881 = vmatpush1.msra.mxu0 %v1744
      %1882 = vmatprep.subr.mxu0 0.0
      %1883 = vmatpush1.msra.mxu0 %v1743
      %1884 = vmatprep.subr.mxu0 0.0
      %1885 = vmatpush1.msra.mxu0 %v1742
      %1886 = vmatprep.subr.mxu0 0.0
      %1887 = vmatpush1.msra.mxu0 %v1741
      %1888 = vmatprep.subr.mxu0 0.0
      %1889 = vmatpush1.msra.mxu0 %v1740
      %1890 = vmatprep.subr.mxu0 0.0
      %1891 = vmatpush1.msra.mxu0 %v1739
      %1892 = vmatprep.subr.mxu0 0.0
      %1893 = vmatpush2.msra.mxu0 0.0
      %1894 = vmatprep.subr.mxu0 0.0
      %1895 = vmatpush2.msra.mxu0 0.0
      %1896 = vmatprep.subr.mxu0 0.0
      %1897 = vmatpush2.msra.mxu0 0.0
      %1898 = vmatprep.subr.mxu0 0.0
      %1899 = vmatpush2.msra.mxu0 0.0
      %1900 = vmatprep.subr.mxu0 0.0
      %1901 = vmatpush2.msra.mxu0 0.0
      %1902 = vmatprep.subr.mxu0 0.0
      %1903 = vmatpush2.msra.mxu0 0.0
      %1904 = vmatprep.subr.mxu0 0.0
      %1905 = vmatpush2.msra.mxu0 0.0
      %1906 = vmatprep.subr.mxu0 0.0
      %1907 = vmatpush2.msra.mxu0 0.0
      %1908 = vmatprep.subr.mxu0 0.0
      %1909 = vmatpush2.msra.mxu0 0.0
      %1910 = vmatprep.subr.mxu0 0.0
      %1911 = vmatpush2.msra.mxu0 0.0
      %1912 = vmatprep.subr.mxu0 0.0
      %1913 = vmatpush2.msra.mxu0 0.0
      %1914 = vmatprep.subr.mxu0 0.0
      %1915 = vmatpush2.msra.mxu0 0.0
      %1916 = vmatprep.subr.mxu0 0.0
      %1917 = vmatpush2.msra.mxu0 0.0
      %1918 = vmatprep.subr.mxu0 0.0
      %1919 = vmatpush2.msra.mxu0 0.0
      %1920 = vmatprep.subr.mxu0 0.0
      %1921 = vmatpush2.msra.mxu0 0.0
      %1922 = vmatprep.subr.mxu0 0.0
      %1923 = vmatpush2.msra.mxu0 0.0
      %1924 = vmatprep.mubr.f32.mxu0 0.0
      %1925 = vmatmul.mubr.f32.gmra.mxu0 %v1761
      %v1926 = vpop.f32.mrf.mxu0
      %v1927 = vadd.f32 %v1757, %v1926
      %v1928 = vpop.f32.mrf.mxu0
      %1929 = vmatprep.mubr.f32.mxu0 0.0
      %1930 = vmatmul.mubr.f32.gmra.mxu0 %v1764
      %v1931 = vpop.f32.mrf.mxu0
      %v1932 = vadd.f32 %v1757, %v1931
      %v1933 = vpop.f32.mrf.mxu0
      %1934 = vmatprep.mubr.f32.mxu0 0.0
      %1935 = vmatmul.mubr.f32.gmra.mxu0 %v1767
      %v1936 = vpop.f32.mrf.mxu0
      %v1937 = vadd.f32 %v1757, %v1936
      %v1938 = vpop.f32.mrf.mxu0
      %1939 = vmatprep.mubr.f32.mxu0 0.0
      %1940 = vmatmul.mubr.f32.gmra.mxu0 %v1770
      %v1941 = vpop.f32.mrf.mxu0
      %v1942 = vadd.f32 %v1757, %v1941
      %v1943 = vpop.f32.mrf.mxu0
      %1944 = vmatprep.mubr.f32.mxu0 0.0
      %1945 = vmatmul.mubr.f32.gmra.mxu0 %v1773
      %v1946 = vpop.f32.mrf.mxu0
      %v1947 = vadd.f32 %v1757, %v1946
      %v1948 = vpop.f32.mrf.mxu0
      %1949 = vmatprep.mubr.f32.mxu0 0.0
      %1950 = vmatmul.mubr.f32.gmra.mxu0 %v1776
      %v1951 = vpop.f32.mrf.mxu0
      %v1952 = vadd.f32 %v1757, %v1951
      %v1953 = vpop.f32.mrf.mxu0
      %1954 = vmatprep.mubr.f32.mxu0 0.0
      %1955 = vmatmul.mubr.f32.gmra.mxu0 %v1779
      %v1956 = vpop.f32.mrf.mxu0
      %v1957 = vadd.f32 %v1757, %v1956
      %v1958 = vpop.f32.mrf.mxu0
      %1959 = vmatprep.mubr.f32.mxu0 0.0
      %1960 = vmatmul.mubr.f32.gmra.mxu0 %v1782
      %v1961 = vpop.f32.mrf.mxu0
      %v1962 = vadd.f32 %v1757, %v1961
      %v1963 = vpop.f32.mrf.mxu0
      %1964 = vmatprep.mubr.f32.mxu0 0.0
      %1965 = vmatmul.mubr.f32.gmra.mxu0 %v1785
      %v1966 = vpop.f32.mrf.mxu0
      %v1967 = vadd.f32 %v1757, %v1966
      %v1968 = vpop.f32.mrf.mxu0
      %1969 = vmatprep.mubr.f32.mxu0 0.0
      %1970 = vmatmul.mubr.f32.gmra.mxu0 %v1788
      %v1971 = vpop.f32.mrf.mxu0
      %v1972 = vadd.f32 %v1757, %v1971
      %v1973 = vpop.f32.mrf.mxu0
      %1974 = vmatprep.mubr.f32.mxu0 0.0
      %1975 = vmatmul.mubr.f32.gmra.mxu0 %v1791
      %v1976 = vpop.f32.mrf.mxu0
      %v1977 = vadd.f32 %v1757, %v1976
      %v1978 = vpop.f32.mrf.mxu0
      %1979 = vmatprep.mubr.f32.mxu0 0.0
      %1980 = vmatmul.mubr.f32.gmra.mxu0 %v1794
      %v1981 = vpop.f32.mrf.mxu0
      %v1982 = vadd.f32 %v1757, %v1981
      %v1983 = vpop.f32.mrf.mxu0
      %1984 = vmatprep.mubr.f32.mxu0 0.0
      %1985 = vmatmul.mubr.f32.gmra.mxu0 %v1797
      %v1986 = vpop.f32.mrf.mxu0
      %v1987 = vadd.f32 %v1757, %v1986
      %v1988 = vpop.f32.mrf.mxu0
      %1989 = vmatprep.mubr.f32.mxu0 0.0
      %1990 = vmatmul.mubr.f32.gmra.mxu0 %v1800
      %v1991 = vpop.f32.mrf.mxu0
      %v1992 = vadd.f32 %v1757, %v1991
      %v1993 = vpop.f32.mrf.mxu0
      %1994 = vmatprep.mubr.f32.mxu0 0.0
      %1995 = vmatmul.mubr.f32.gmra.mxu0 %v1803
      %v1996 = vpop.f32.mrf.mxu0
      %v1997 = vadd.f32 %v1757, %v1996
      %v1998 = vpop.f32.mrf.mxu0
      %1999 = vmatprep.mubr.f32.mxu0 0.0
      %2000 = vmatmul.mubr.f32.gmra.mxu0 %v1806
      %v2001 = vpop.f32.mrf.mxu0
      %v2002 = vadd.f32 %v1757, %v2001
      %v2003 = vpop.f32.mrf.mxu0
      %2004 = vmatprep.mubr.f32.mxu0 0.0
      %2005 = vmatmul.mubr.f32.gmra.mxu0 %v1809
      %v2006 = vpop.f32.mrf.mxu0
      %v2007 = vadd.f32 %v1757, %v2006
      %v2008 = vpop.f32.mrf.mxu0
      %2009 = vmatprep.mubr.f32.mxu0 0.0
      %2010 = vmatmul.mubr.f32.gmra.mxu0 %v1812
      %v2011 = vpop.f32.mrf.mxu0
      %v2012 = vadd.f32 %v1757, %v2011
      %v2013 = vpop.f32.mrf.mxu0
      %2014 = vmatprep.mubr.f32.mxu0 0.0
      %2015 = vmatmul.mubr.f32.gmra.mxu0 %v1815
      %v2016 = vpop.f32.mrf.mxu0
      %v2017 = vadd.f32 %v1757, %v2016
      %v2018 = vpop.f32.mrf.mxu0
      %2019 = vmatprep.mubr.f32.mxu0 0.0
      %2020 = vmatmul.mubr.f32.gmra.mxu0 %v1818
      %v2021 = vpop.f32.mrf.mxu0
      %v2022 = vadd.f32 %v1757, %v2021
      %v2023 = vpop.f32.mrf.mxu0
      %2024 = vmatprep.mubr.f32.mxu0 0.0
      %2025 = vmatmul.mubr.f32.gmra.mxu0 %v1821
      %v2026 = vpop.f32.mrf.mxu0
      %v2027 = vadd.f32 %v1757, %v2026
      %v2028 = vpop.f32.mrf.mxu0
      %2029 = vmatprep.mubr.f32.mxu0 0.0
      %2030 = vmatmul.mubr.f32.gmra.mxu0 %v1824
      %v2031 = vpop.f32.mrf.mxu0
      %v2032 = vadd.f32 %v1757, %v2031
      %v2033 = vpop.f32.mrf.mxu0
      %2034 = vmatprep.mubr.f32.mxu0 0.0
      %2035 = vmatmul.mubr.f32.gmra.mxu0 %v1827
      %v2036 = vpop.f32.mrf.mxu0
      %v2037 = vadd.f32 %v1757, %v2036
      %v2038 = vpop.f32.mrf.mxu0
      %2039 = vmatprep.mubr.f32.mxu0 0.0
      %2040 = vmatmul.mubr.f32.gmra.mxu0 %v1830
      %v2041 = vpop.f32.mrf.mxu0
      %v2042 = vadd.f32 %v1757, %v2041
      %v2043 = vpop.f32.mrf.mxu0
      %2044 = vmatprep.mubr.f32.mxu0 0.0
      %2045 = vmatmul.mubr.f32.gmra.mxu0 %v1833
      %v2046 = vpop.f32.mrf.mxu0
      %v2047 = vadd.f32 %v1757, %v2046
      %v2048 = vpop.f32.mrf.mxu0
      %2049 = vmatprep.mubr.f32.mxu0 0.0
      %2050 = vmatmul.mubr.f32.gmra.mxu0 %v1836
      %v2051 = vpop.f32.mrf.mxu0
      %v2052 = vadd.f32 %v1757, %v2051
      %v2053 = vpop.f32.mrf.mxu0
      %2054 = vmatprep.mubr.f32.mxu0 0.0
      %2055 = vmatmul.mubr.f32.gmra.mxu0 %v1839
      %v2056 = vpop.f32.mrf.mxu0
      %v2057 = vadd.f32 %v1757, %v2056
      %v2058 = vpop.f32.mrf.mxu0
      %2059 = vmatprep.mubr.f32.mxu0 0.0
      %2060 = vmatmul.mubr.f32.gmra.mxu0 %v1842
      %v2061 = vpop.f32.mrf.mxu0
      %v2062 = vadd.f32 %v1757, %v2061
      %v2063 = vpop.f32.mrf.mxu0
      %2064 = vmatprep.mubr.f32.mxu0 0.0
      %2065 = vmatmul.mubr.f32.gmra.mxu0 %v1845
      %v2066 = vpop.f32.mrf.mxu0
      %v2067 = vadd.f32 %v1757, %v2066
      %v2068 = vpop.f32.mrf.mxu0
      %2069 = vmatprep.mubr.f32.mxu0 0.0
      %2070 = vmatmul.mubr.f32.gmra.mxu0 %v1848
      %v2071 = vpop.f32.mrf.mxu0
      %v2072 = vadd.f32 %v1757, %v2071
      %v2073 = vpop.f32.mrf.mxu0
      %2074 = vmatprep.mubr.f32.mxu0 0.0
      %2075 = vmatmul.mubr.f32.gmra.mxu0 %v1851
      %v2076 = vpop.f32.mrf.mxu0
      %v2077 = vadd.f32 %v1757, %v2076
      %v2078 = vpop.f32.mrf.mxu0
      %2079 = vmatprep.mubr.f32.mxu0 0.0
      %2080 = vmatmul.mubr.f32.gmra.mxu0 %v1854
      %v2081 = vpop.f32.mrf.mxu0
      %v2082 = vadd.f32 %v1757, %v2081
      %v2083 = vpop.f32.mrf.mxu0
      %2084 = vdwg.mxu0
      %v2085 = vmax.f32 %v1927, 0.0
      %v2086 = vmax.f32 %v1932, 0.0
      %v2087 = vmax.f32 %v1937, 0.0
      %v2088 = vmax.f32 %v1942, 0.0
      %v2089 = vmax.f32 %v1947, 0.0
      %v2090 = vmax.f32 %v1952, 0.0
      %v2091 = vmax.f32 %v1957, 0.0
      %v2092 = vmax.f32 %v1962, 0.0
      %v2093 = vmax.f32 %v1967, 0.0
      %v2094 = vmax.f32 %v1972, 0.0
      %v2095 = vmax.f32 %v1977, 0.0
      %v2096 = vmax.f32 %v1982, 0.0
      %v2097 = vmax.f32 %v1987, 0.0
      %v2098 = vmax.f32 %v1992, 0.0
      %v2099 = vmax.f32 %v1997, 0.0
      %v2100 = vmax.f32 %v2002, 0.0
      %v2101 = vmax.f32 %v2007, 0.0
      %v2102 = vmax.f32 %v2012, 0.0
      %v2103 = vmax.f32 %v2017, 0.0
      %v2104 = vmax.f32 %v2022, 0.0
      %v2105 = vmax.f32 %v2027, 0.0
      %v2106 = vmax.f32 %v2032, 0.0
      %v2107 = vmax.f32 %v2037, 0.0
      %v2108 = vmax.f32 %v2042, 0.0
      %v2109 = vmax.f32 %v2047, 0.0
      %v2110 = vmax.f32 %v2052, 0.0
      %v2111 = vmax.f32 %v2057, 0.0
      %v2112 = vmax.f32 %v2062, 0.0
      %v2113 = vmax.f32 %v2067, 0.0
      %v2114 = vmax.f32 %v2072, 0.0
      %v2115 = vmax.f32 %v2077, 0.0
      %v2116 = vmax.f32 %v2082, 0.0
      %v2149 = vcombine.high %v2085, %v2085
      %v2151 = vunpack.c.l.s4 1983009808
      %v2152 = vunpack.c.0.s8 %v2151
      %v2153 = vlaneseq
      %v2154 = vshrl.u32 %v2153, 7
      %v2155 = vsub.s32 %v2152, %v2154
      %v2156 = vrot.slane %v2085, %v2155
      %v2158 = vunpack.c.l.s4 1983009808
      %v2159 = vunpack.c.0.s8 %v2158
      %v2160 = vlaneseq
      %v2161 = vshrl.u32 %v2160, 7
      %v2162 = vsub.s32 %v2159, %v2161
      %v2163 = vrot.slane %v2149, %v2162
      %v2164 = vcombine.high %v2156, %v2156
      %v2165 = vcombine.high %v2163, %v2163
      %v2166 = vcombine.high %v2086, %v2086
      %v2168 = vunpack.c.l.s4 1983009808
      %v2169 = vunpack.c.0.s8 %v2168
      %v2170 = vlaneseq
      %v2171 = vshrl.u32 %v2170, 7
      %v2172 = vsub.s32 %v2169, %v2171
      %v2173 = vrot.slane %v2086, %v2172
      %v2175 = vunpack.c.l.s4 1983009808
      %v2176 = vunpack.c.0.s8 %v2175
      %v2177 = vlaneseq
      %v2178 = vshrl.u32 %v2177, 7
      %v2179 = vsub.s32 %v2176, %v2178
      %v2180 = vrot.slane %v2166, %v2179
      %v2181 = vcombine.high %v2173, %v2173
      %v2182 = vcombine.high %v2180, %v2180
      %v2183 = vcombine.high %v2087, %v2087
      %v2185 = vunpack.c.l.s4 1983009808
      %v2186 = vunpack.c.0.s8 %v2185
      %v2187 = vlaneseq
      %v2188 = vshrl.u32 %v2187, 7
      %v2189 = vsub.s32 %v2186, %v2188
      %v2190 = vrot.slane %v2087, %v2189
      %v2192 = vunpack.c.l.s4 1983009808
      %v2193 = vunpack.c.0.s8 %v2192
      %v2194 = vlaneseq
      %v2195 = vshrl.u32 %v2194, 7
      %v2196 = vsub.s32 %v2193, %v2195
      %v2197 = vrot.slane %v2183, %v2196
      %v2198 = vcombine.high %v2190, %v2190
      %v2199 = vcombine.high %v2197, %v2197
      %v2200 = vcombine.high %v2088, %v2088
      %v2202 = vunpack.c.l.s4 1983009808
      %v2203 = vunpack.c.0.s8 %v2202
      %v2204 = vlaneseq
      %v2205 = vshrl.u32 %v2204, 7
      %v2206 = vsub.s32 %v2203, %v2205
      %v2207 = vrot.slane %v2088, %v2206
      %v2209 = vunpack.c.l.s4 1983009808
      %v2210 = vunpack.c.0.s8 %v2209
      %v2211 = vlaneseq
      %v2212 = vshrl.u32 %v2211, 7
      %v2213 = vsub.s32 %v2210, %v2212
      %v2214 = vrot.slane %v2200, %v2213
      %v2215 = vcombine.high %v2207, %v2207
      %v2216 = vcombine.high %v2214, %v2214
      %v2217 = vcombine.high %v2089, %v2089
      %v2219 = vunpack.c.l.s4 1983009808
      %v2220 = vunpack.c.0.s8 %v2219
      %v2221 = vlaneseq
      %v2222 = vshrl.u32 %v2221, 7
      %v2223 = vsub.s32 %v2220, %v2222
      %v2224 = vrot.slane %v2089, %v2223
      %v2226 = vunpack.c.l.s4 1983009808
      %v2227 = vunpack.c.0.s8 %v2226
      %v2228 = vlaneseq
      %v2229 = vshrl.u32 %v2228, 7
      %v2230 = vsub.s32 %v2227, %v2229
      %v2231 = vrot.slane %v2217, %v2230
      %v2232 = vcombine.high %v2224, %v2224
      %v2233 = vcombine.high %v2231, %v2231
      %v2234 = vcombine.high %v2090, %v2090
      %v2236 = vunpack.c.l.s4 1983009808
      %v2237 = vunpack.c.0.s8 %v2236
      %v2238 = vlaneseq
      %v2239 = vshrl.u32 %v2238, 7
      %v2240 = vsub.s32 %v2237, %v2239
      %v2241 = vrot.slane %v2090, %v2240
      %v2243 = vunpack.c.l.s4 1983009808
      %v2244 = vunpack.c.0.s8 %v2243
      %v2245 = vlaneseq
      %v2246 = vshrl.u32 %v2245, 7
      %v2247 = vsub.s32 %v2244, %v2246
      %v2248 = vrot.slane %v2234, %v2247
      %v2249 = vcombine.high %v2241, %v2241
      %v2250 = vcombine.high %v2248, %v2248
      %v2251 = vcombine.high %v2091, %v2091
      %v2253 = vunpack.c.l.s4 1983009808
      %v2254 = vunpack.c.0.s8 %v2253
      %v2255 = vlaneseq
      %v2256 = vshrl.u32 %v2255, 7
      %v2257 = vsub.s32 %v2254, %v2256
      %v2258 = vrot.slane %v2091, %v2257
      %v2260 = vunpack.c.l.s4 1983009808
      %v2261 = vunpack.c.0.s8 %v2260
      %v2262 = vlaneseq
      %v2263 = vshrl.u32 %v2262, 7
      %v2264 = vsub.s32 %v2261, %v2263
      %v2265 = vrot.slane %v2251, %v2264
      %v2266 = vcombine.high %v2258, %v2258
      %v2267 = vcombine.high %v2265, %v2265
      %v2268 = vcombine.high %v2092, %v2092
      %v2270 = vunpack.c.l.s4 1983009808
      %v2271 = vunpack.c.0.s8 %v2270
      %v2272 = vlaneseq
      %v2273 = vshrl.u32 %v2272, 7
      %v2274 = vsub.s32 %v2271, %v2273
      %v2275 = vrot.slane %v2092, %v2274
      %v2277 = vunpack.c.l.s4 1983009808
      %v2278 = vunpack.c.0.s8 %v2277
      %v2279 = vlaneseq
      %v2280 = vshrl.u32 %v2279, 7
      %v2281 = vsub.s32 %v2278, %v2280
      %v2282 = vrot.slane %v2268, %v2281
      %v2283 = vcombine.high %v2275, %v2275
      %v2284 = vcombine.high %v2282, %v2282
      %v2285 = vcombine.high %v2093, %v2093
      %v2287 = vunpack.c.l.s4 1983009808
      %v2288 = vunpack.c.0.s8 %v2287
      %v2289 = vlaneseq
      %v2290 = vshrl.u32 %v2289, 7
      %v2291 = vsub.s32 %v2288, %v2290
      %v2292 = vrot.slane %v2093, %v2291
      %v2294 = vunpack.c.l.s4 1983009808
      %v2295 = vunpack.c.0.s8 %v2294
      %v2296 = vlaneseq
      %v2297 = vshrl.u32 %v2296, 7
      %v2298 = vsub.s32 %v2295, %v2297
      %v2299 = vrot.slane %v2285, %v2298
      %v2300 = vcombine.high %v2292, %v2292
      %v2301 = vcombine.high %v2299, %v2299
      %v2302 = vcombine.high %v2094, %v2094
      %v2304 = vunpack.c.l.s4 1983009808
      %v2305 = vunpack.c.0.s8 %v2304
      %v2306 = vlaneseq
      %v2307 = vshrl.u32 %v2306, 7
      %v2308 = vsub.s32 %v2305, %v2307
      %v2309 = vrot.slane %v2094, %v2308
      %v2311 = vunpack.c.l.s4 1983009808
      %v2312 = vunpack.c.0.s8 %v2311
      %v2313 = vlaneseq
      %v2314 = vshrl.u32 %v2313, 7
      %v2315 = vsub.s32 %v2312, %v2314
      %v2316 = vrot.slane %v2302, %v2315
      %v2317 = vcombine.high %v2309, %v2309
      %v2318 = vcombine.high %v2316, %v2316
      %v2319 = vcombine.high %v2095, %v2095
      %v2321 = vunpack.c.l.s4 1983009808
      %v2322 = vunpack.c.0.s8 %v2321
      %v2323 = vlaneseq
      %v2324 = vshrl.u32 %v2323, 7
      %v2325 = vsub.s32 %v2322, %v2324
      %v2326 = vrot.slane %v2095, %v2325
      %v2328 = vunpack.c.l.s4 1983009808
      %v2329 = vunpack.c.0.s8 %v2328
      %v2330 = vlaneseq
      %v2331 = vshrl.u32 %v2330, 7
      %v2332 = vsub.s32 %v2329, %v2331
      %v2333 = vrot.slane %v2319, %v2332
      %v2334 = vcombine.high %v2326, %v2326
      %v2335 = vcombine.high %v2333, %v2333
      %v2336 = vcombine.high %v2096, %v2096
      %v2338 = vunpack.c.l.s4 1983009808
      %v2339 = vunpack.c.0.s8 %v2338
      %v2340 = vlaneseq
      %v2341 = vshrl.u32 %v2340, 7
      %v2342 = vsub.s32 %v2339, %v2341
      %v2343 = vrot.slane %v2096, %v2342
      %v2345 = vunpack.c.l.s4 1983009808
      %v2346 = vunpack.c.0.s8 %v2345
      %v2347 = vlaneseq
      %v2348 = vshrl.u32 %v2347, 7
      %v2349 = vsub.s32 %v2346, %v2348
      %v2350 = vrot.slane %v2336, %v2349
      %v2351 = vcombine.high %v2343, %v2343
      %v2352 = vcombine.high %v2350, %v2350
      %v2353 = vcombine.high %v2097, %v2097
      %v2355 = vunpack.c.l.s4 1983009808
      %v2356 = vunpack.c.0.s8 %v2355
      %v2357 = vlaneseq
      %v2358 = vshrl.u32 %v2357, 7
      %v2359 = vsub.s32 %v2356, %v2358
      %v2360 = vrot.slane %v2097, %v2359
      %v2362 = vunpack.c.l.s4 1983009808
      %v2363 = vunpack.c.0.s8 %v2362
      %v2364 = vlaneseq
      %v2365 = vshrl.u32 %v2364, 7
      %v2366 = vsub.s32 %v2363, %v2365
      %v2367 = vrot.slane %v2353, %v2366
      %v2368 = vcombine.high %v2360, %v2360
      %v2369 = vcombine.high %v2367, %v2367
      %v2370 = vcombine.high %v2098, %v2098
      %v2372 = vunpack.c.l.s4 1983009808
      %v2373 = vunpack.c.0.s8 %v2372
      %v2374 = vlaneseq
      %v2375 = vshrl.u32 %v2374, 7
      %v2376 = vsub.s32 %v2373, %v2375
      %v2377 = vrot.slane %v2098, %v2376
      %v2379 = vunpack.c.l.s4 1983009808
      %v2380 = vunpack.c.0.s8 %v2379
      %v2381 = vlaneseq
      %v2382 = vshrl.u32 %v2381, 7
      %v2383 = vsub.s32 %v2380, %v2382
      %v2384 = vrot.slane %v2370, %v2383
      %v2385 = vcombine.high %v2377, %v2377
      %v2386 = vcombine.high %v2384, %v2384
      %v2387 = vcombine.high %v2099, %v2099
      %v2389 = vunpack.c.l.s4 1983009808
      %v2390 = vunpack.c.0.s8 %v2389
      %v2391 = vlaneseq
      %v2392 = vshrl.u32 %v2391, 7
      %v2393 = vsub.s32 %v2390, %v2392
      %v2394 = vrot.slane %v2099, %v2393
      %v2396 = vunpack.c.l.s4 1983009808
      %v2397 = vunpack.c.0.s8 %v2396
      %v2398 = vlaneseq
      %v2399 = vshrl.u32 %v2398, 7
      %v2400 = vsub.s32 %v2397, %v2399
      %v2401 = vrot.slane %v2387, %v2400
      %v2402 = vcombine.high %v2394, %v2394
      %v2403 = vcombine.high %v2401, %v2401
      %v2404 = vcombine.high %v2100, %v2100
      %v2406 = vunpack.c.l.s4 1983009808
      %v2407 = vunpack.c.0.s8 %v2406
      %v2408 = vlaneseq
      %v2409 = vshrl.u32 %v2408, 7
      %v2410 = vsub.s32 %v2407, %v2409
      %v2411 = vrot.slane %v2100, %v2410
      %v2413 = vunpack.c.l.s4 1983009808
      %v2414 = vunpack.c.0.s8 %v2413
      %v2415 = vlaneseq
      %v2416 = vshrl.u32 %v2415, 7
      %v2417 = vsub.s32 %v2414, %v2416
      %v2418 = vrot.slane %v2404, %v2417
      %v2419 = vcombine.high %v2411, %v2411
      %v2420 = vcombine.high %v2418, %v2418
      %v2421 = vcombine.high %v2101, %v2101
      %v2423 = vunpack.c.l.s4 1983009808
      %v2424 = vunpack.c.0.s8 %v2423
      %v2425 = vlaneseq
      %v2426 = vshrl.u32 %v2425, 7
      %v2427 = vsub.s32 %v2424, %v2426
      %v2428 = vrot.slane %v2101, %v2427
      %v2430 = vunpack.c.l.s4 1983009808
      %v2431 = vunpack.c.0.s8 %v2430
      %v2432 = vlaneseq
      %v2433 = vshrl.u32 %v2432, 7
      %v2434 = vsub.s32 %v2431, %v2433
      %v2435 = vrot.slane %v2421, %v2434
      %v2436 = vcombine.high %v2428, %v2428
      %v2437 = vcombine.high %v2435, %v2435
      %v2438 = vcombine.high %v2102, %v2102
      %v2440 = vunpack.c.l.s4 1983009808
      %v2441 = vunpack.c.0.s8 %v2440
      %v2442 = vlaneseq
      %v2443 = vshrl.u32 %v2442, 7
      %v2444 = vsub.s32 %v2441, %v2443
      %v2445 = vrot.slane %v2102, %v2444
      %v2447 = vunpack.c.l.s4 1983009808
      %v2448 = vunpack.c.0.s8 %v2447
      %v2449 = vlaneseq
      %v2450 = vshrl.u32 %v2449, 7
      %v2451 = vsub.s32 %v2448, %v2450
      %v2452 = vrot.slane %v2438, %v2451
      %v2453 = vcombine.high %v2445, %v2445
      %v2454 = vcombine.high %v2452, %v2452
      %v2455 = vcombine.high %v2103, %v2103
      %v2457 = vunpack.c.l.s4 1983009808
      %v2458 = vunpack.c.0.s8 %v2457
      %v2459 = vlaneseq
      %v2460 = vshrl.u32 %v2459, 7
      %v2461 = vsub.s32 %v2458, %v2460
      %v2462 = vrot.slane %v2103, %v2461
      %v2464 = vunpack.c.l.s4 1983009808
      %v2465 = vunpack.c.0.s8 %v2464
      %v2466 = vlaneseq
      %v2467 = vshrl.u32 %v2466, 7
      %v2468 = vsub.s32 %v2465, %v2467
      %v2469 = vrot.slane %v2455, %v2468
      %v2470 = vcombine.high %v2462, %v2462
      %v2471 = vcombine.high %v2469, %v2469
      %v2472 = vcombine.high %v2104, %v2104
      %v2474 = vunpack.c.l.s4 1983009808
      %v2475 = vunpack.c.0.s8 %v2474
      %v2476 = vlaneseq
      %v2477 = vshrl.u32 %v2476, 7
      %v2478 = vsub.s32 %v2475, %v2477
      %v2479 = vrot.slane %v2104, %v2478
      %v2481 = vunpack.c.l.s4 1983009808
      %v2482 = vunpack.c.0.s8 %v2481
      %v2483 = vlaneseq
      %v2484 = vshrl.u32 %v2483, 7
      %v2485 = vsub.s32 %v2482, %v2484
      %v2486 = vrot.slane %v2472, %v2485
      %v2487 = vcombine.high %v2479, %v2479
      %v2488 = vcombine.high %v2486, %v2486
      %v2489 = vcombine.high %v2105, %v2105
      %v2491 = vunpack.c.l.s4 1983009808
      %v2492 = vunpack.c.0.s8 %v2491
      %v2493 = vlaneseq
      %v2494 = vshrl.u32 %v2493, 7
      %v2495 = vsub.s32 %v2492, %v2494
      %v2496 = vrot.slane %v2105, %v2495
      %v2498 = vunpack.c.l.s4 1983009808
      %v2499 = vunpack.c.0.s8 %v2498
      %v2500 = vlaneseq
      %v2501 = vshrl.u32 %v2500, 7
      %v2502 = vsub.s32 %v2499, %v2501
      %v2503 = vrot.slane %v2489, %v2502
      %v2504 = vcombine.high %v2496, %v2496
      %v2505 = vcombine.high %v2503, %v2503
      %v2506 = vcombine.high %v2106, %v2106
      %v2508 = vunpack.c.l.s4 1983009808
      %v2509 = vunpack.c.0.s8 %v2508
      %v2510 = vlaneseq
      %v2511 = vshrl.u32 %v2510, 7
      %v2512 = vsub.s32 %v2509, %v2511
      %v2513 = vrot.slane %v2106, %v2512
      %v2515 = vunpack.c.l.s4 1983009808
      %v2516 = vunpack.c.0.s8 %v2515
      %v2517 = vlaneseq
      %v2518 = vshrl.u32 %v2517, 7
      %v2519 = vsub.s32 %v2516, %v2518
      %v2520 = vrot.slane %v2506, %v2519
      %v2521 = vcombine.high %v2513, %v2513
      %v2522 = vcombine.high %v2520, %v2520
      %v2523 = vcombine.high %v2107, %v2107
      %v2525 = vunpack.c.l.s4 1983009808
      %v2526 = vunpack.c.0.s8 %v2525
      %v2527 = vlaneseq
      %v2528 = vshrl.u32 %v2527, 7
      %v2529 = vsub.s32 %v2526, %v2528
      %v2530 = vrot.slane %v2107, %v2529
      %v2532 = vunpack.c.l.s4 1983009808
      %v2533 = vunpack.c.0.s8 %v2532
      %v2534 = vlaneseq
      %v2535 = vshrl.u32 %v2534, 7
      %v2536 = vsub.s32 %v2533, %v2535
      %v2537 = vrot.slane %v2523, %v2536
      %v2538 = vcombine.high %v2530, %v2530
      %v2539 = vcombine.high %v2537, %v2537
      %v2540 = vcombine.high %v2108, %v2108
      %v2542 = vunpack.c.l.s4 1983009808
      %v2543 = vunpack.c.0.s8 %v2542
      %v2544 = vlaneseq
      %v2545 = vshrl.u32 %v2544, 7
      %v2546 = vsub.s32 %v2543, %v2545
      %v2547 = vrot.slane %v2108, %v2546
      %v2549 = vunpack.c.l.s4 1983009808
      %v2550 = vunpack.c.0.s8 %v2549
      %v2551 = vlaneseq
      %v2552 = vshrl.u32 %v2551, 7
      %v2553 = vsub.s32 %v2550, %v2552
      %v2554 = vrot.slane %v2540, %v2553
      %v2555 = vcombine.high %v2547, %v2547
      %v2556 = vcombine.high %v2554, %v2554
      %v2557 = vcombine.high %v2109, %v2109
      %v2559 = vunpack.c.l.s4 1983009808
      %v2560 = vunpack.c.0.s8 %v2559
      %v2561 = vlaneseq
      %v2562 = vshrl.u32 %v2561, 7
      %v2563 = vsub.s32 %v2560, %v2562
      %v2564 = vrot.slane %v2109, %v2563
      %v2566 = vunpack.c.l.s4 1983009808
      %v2567 = vunpack.c.0.s8 %v2566
      %v2568 = vlaneseq
      %v2569 = vshrl.u32 %v2568, 7
      %v2570 = vsub.s32 %v2567, %v2569
      %v2571 = vrot.slane %v2557, %v2570
      %v2572 = vcombine.high %v2564, %v2564
      %v2573 = vcombine.high %v2571, %v2571
      %v2574 = vcombine.high %v2110, %v2110
      %v2576 = vunpack.c.l.s4 1983009808
      %v2577 = vunpack.c.0.s8 %v2576
      %v2578 = vlaneseq
      %v2579 = vshrl.u32 %v2578, 7
      %v2580 = vsub.s32 %v2577, %v2579
      %v2581 = vrot.slane %v2110, %v2580
      %v2583 = vunpack.c.l.s4 1983009808
      %v2584 = vunpack.c.0.s8 %v2583
      %v2585 = vlaneseq
      %v2586 = vshrl.u32 %v2585, 7
      %v2587 = vsub.s32 %v2584, %v2586
      %v2588 = vrot.slane %v2574, %v2587
      %v2589 = vcombine.high %v2581, %v2581
      %v2590 = vcombine.high %v2588, %v2588
      %v2591 = vcombine.high %v2111, %v2111
      %v2593 = vunpack.c.l.s4 1983009808
      %v2594 = vunpack.c.0.s8 %v2593
      %v2595 = vlaneseq
      %v2596 = vshrl.u32 %v2595, 7
      %v2597 = vsub.s32 %v2594, %v2596
      %v2598 = vrot.slane %v2111, %v2597
      %v2600 = vunpack.c.l.s4 1983009808
      %v2601 = vunpack.c.0.s8 %v2600
      %v2602 = vlaneseq
      %v2603 = vshrl.u32 %v2602, 7
      %v2604 = vsub.s32 %v2601, %v2603
      %v2605 = vrot.slane %v2591, %v2604
      %v2606 = vcombine.high %v2598, %v2598
      %v2607 = vcombine.high %v2605, %v2605
      %v2608 = vcombine.high %v2112, %v2112
      %v2610 = vunpack.c.l.s4 1983009808
      %v2611 = vunpack.c.0.s8 %v2610
      %v2612 = vlaneseq
      %v2613 = vshrl.u32 %v2612, 7
      %v2614 = vsub.s32 %v2611, %v2613
      %v2615 = vrot.slane %v2112, %v2614
      %v2617 = vunpack.c.l.s4 1983009808
      %v2618 = vunpack.c.0.s8 %v2617
      %v2619 = vlaneseq
      %v2620 = vshrl.u32 %v2619, 7
      %v2621 = vsub.s32 %v2618, %v2620
      %v2622 = vrot.slane %v2608, %v2621
      %v2623 = vcombine.high %v2615, %v2615
      %v2624 = vcombine.high %v2622, %v2622
      %v2625 = vcombine.high %v2113, %v2113
      %v2627 = vunpack.c.l.s4 1983009808
      %v2628 = vunpack.c.0.s8 %v2627
      %v2629 = vlaneseq
      %v2630 = vshrl.u32 %v2629, 7
      %v2631 = vsub.s32 %v2628, %v2630
      %v2632 = vrot.slane %v2113, %v2631
      %v2634 = vunpack.c.l.s4 1983009808
      %v2635 = vunpack.c.0.s8 %v2634
      %v2636 = vlaneseq
      %v2637 = vshrl.u32 %v2636, 7
      %v2638 = vsub.s32 %v2635, %v2637
      %v2639 = vrot.slane %v2625, %v2638
      %v2640 = vcombine.high %v2632, %v2632
      %v2641 = vcombine.high %v2639, %v2639
      %v2642 = vcombine.high %v2114, %v2114
      %v2644 = vunpack.c.l.s4 1983009808
      %v2645 = vunpack.c.0.s8 %v2644
      %v2646 = vlaneseq
      %v2647 = vshrl.u32 %v2646, 7
      %v2648 = vsub.s32 %v2645, %v2647
      %v2649 = vrot.slane %v2114, %v2648
      %v2651 = vunpack.c.l.s4 1983009808
      %v2652 = vunpack.c.0.s8 %v2651
      %v2653 = vlaneseq
      %v2654 = vshrl.u32 %v2653, 7
      %v2655 = vsub.s32 %v2652, %v2654
      %v2656 = vrot.slane %v2642, %v2655
      %v2657 = vcombine.high %v2649, %v2649
      %v2658 = vcombine.high %v2656, %v2656
      %v2659 = vcombine.high %v2115, %v2115
      %v2661 = vunpack.c.l.s4 1983009808
      %v2662 = vunpack.c.0.s8 %v2661
      %v2663 = vlaneseq
      %v2664 = vshrl.u32 %v2663, 7
      %v2665 = vsub.s32 %v2662, %v2664
      %v2666 = vrot.slane %v2115, %v2665
      %v2668 = vunpack.c.l.s4 1983009808
      %v2669 = vunpack.c.0.s8 %v2668
      %v2670 = vlaneseq
      %v2671 = vshrl.u32 %v2670, 7
      %v2672 = vsub.s32 %v2669, %v2671
      %v2673 = vrot.slane %v2659, %v2672
      %v2674 = vcombine.high %v2666, %v2666
      %v2675 = vcombine.high %v2673, %v2673
      %v2676 = vcombine.high %v2116, %v2116
      %v2678 = vunpack.c.l.s4 1983009808
      %v2679 = vunpack.c.0.s8 %v2678
      %v2680 = vlaneseq
      %v2681 = vshrl.u32 %v2680, 7
      %v2682 = vsub.s32 %v2679, %v2681
      %v2683 = vrot.slane %v2116, %v2682
      %v2685 = vunpack.c.l.s4 1983009808
      %v2686 = vunpack.c.0.s8 %v2685
      %v2687 = vlaneseq
      %v2688 = vshrl.u32 %v2687, 7
      %v2689 = vsub.s32 %v2686, %v2688
      %v2690 = vrot.slane %v2676, %v2689
      %v2691 = vcombine.high %v2683, %v2683
      %v2692 = vcombine.high %v2690, %v2690
      %v2821 = vrot.slane %v2156, 7
      %v2822 = vrot.slane %v2821, 2
      %v2823 = vrot.slane %v2164, 7
      %v2824 = vrot.slane %v2823, 2
      %v2825 = vrot.slane %v2163, 7
      %v2826 = vrot.slane %v2825, 2
      %v2827 = vrot.slane %v2165, 7
      %v2828 = vrot.slane %v2827, 2
      %v2829 = vrot.slane %v2173, 7
      %v2830 = vrot.slane %v2829, 2
      %v2831 = vrot.slane %v2181, 7
      %v2832 = vrot.slane %v2831, 2
      %v2833 = vrot.slane %v2180, 7
      %v2834 = vrot.slane %v2833, 2
      %v2835 = vrot.slane %v2182, 7
      %v2836 = vrot.slane %v2835, 2
      %v2837 = vrot.slane %v2224, 7
      %v2838 = vrot.slane %v2837, 2
      %v2839 = vrot.slane %v2232, 7
      %v2840 = vrot.slane %v2839, 2
      %v2841 = vrot.slane %v2231, 7
      %v2842 = vrot.slane %v2841, 2
      %v2843 = vrot.slane %v2233, 7
      %v2844 = vrot.slane %v2843, 2
      %v2845 = vrot.slane %v2241, 7
      %v2846 = vrot.slane %v2845, 2
      %v2847 = vrot.slane %v2249, 7
      %v2848 = vrot.slane %v2847, 2
      %v2849 = vrot.slane %v2248, 7
      %v2850 = vrot.slane %v2849, 2
      %v2851 = vrot.slane %v2250, 7
      %v2852 = vrot.slane %v2851, 2
      %v2853 = vrot.slane %v2292, 7
      %v2854 = vrot.slane %v2853, 2
      %v2855 = vrot.slane %v2300, 7
      %v2856 = vrot.slane %v2855, 2
      %v2857 = vrot.slane %v2299, 7
      %v2858 = vrot.slane %v2857, 2
      %v2859 = vrot.slane %v2301, 7
      %v2860 = vrot.slane %v2859, 2
      %v2861 = vrot.slane %v2309, 7
      %v2862 = vrot.slane %v2861, 2
      %v2863 = vrot.slane %v2317, 7
      %v2864 = vrot.slane %v2863, 2
      %v2865 = vrot.slane %v2316, 7
      %v2866 = vrot.slane %v2865, 2
      %v2867 = vrot.slane %v2318, 7
      %v2868 = vrot.slane %v2867, 2
      %v2869 = vrot.slane %v2360, 7
      %v2870 = vrot.slane %v2869, 2
      %v2871 = vrot.slane %v2368, 7
      %v2872 = vrot.slane %v2871, 2
      %v2873 = vrot.slane %v2367, 7
      %v2874 = vrot.slane %v2873, 2
      %v2875 = vrot.slane %v2369, 7
      %v2876 = vrot.slane %v2875, 2
      %v2877 = vrot.slane %v2377, 7
      %v2878 = vrot.slane %v2877, 2
      %v2879 = vrot.slane %v2385, 7
      %v2880 = vrot.slane %v2879, 2
      %v2881 = vrot.slane %v2384, 7
      %v2882 = vrot.slane %v2881, 2
      %v2883 = vrot.slane %v2386, 7
      %v2884 = vrot.slane %v2883, 2
      %v2885 = vrot.slane %v2428, 7
      %v2886 = vrot.slane %v2885, 2
      %v2887 = vrot.slane %v2436, 7
      %v2888 = vrot.slane %v2887, 2
      %v2889 = vrot.slane %v2435, 7
      %v2890 = vrot.slane %v2889, 2
      %v2891 = vrot.slane %v2437, 7
      %v2892 = vrot.slane %v2891, 2
      %v2893 = vrot.slane %v2445, 7
      %v2894 = vrot.slane %v2893, 2
      %v2895 = vrot.slane %v2453, 7
      %v2896 = vrot.slane %v2895, 2
      %v2897 = vrot.slane %v2452, 7
      %v2898 = vrot.slane %v2897, 2
      %v2899 = vrot.slane %v2454, 7
      %v2900 = vrot.slane %v2899, 2
      %v2901 = vrot.slane %v2496, 7
      %v2902 = vrot.slane %v2901, 2
      %v2903 = vrot.slane %v2504, 7
      %v2904 = vrot.slane %v2903, 2
      %v2905 = vrot.slane %v2503, 7
      %v2906 = vrot.slane %v2905, 2
      %v2907 = vrot.slane %v2505, 7
      %v2908 = vrot.slane %v2907, 2
      %v2909 = vrot.slane %v2513, 7
      %v2910 = vrot.slane %v2909, 2
      %v2911 = vrot.slane %v2521, 7
      %v2912 = vrot.slane %v2911, 2
      %v2913 = vrot.slane %v2520, 7
      %v2914 = vrot.slane %v2913, 2
      %v2915 = vrot.slane %v2522, 7
      %v2916 = vrot.slane %v2915, 2
      %v2917 = vrot.slane %v2564, 7
      %v2918 = vrot.slane %v2917, 2
      %v2919 = vrot.slane %v2572, 7
      %v2920 = vrot.slane %v2919, 2
      %v2921 = vrot.slane %v2571, 7
      %v2922 = vrot.slane %v2921, 2
      %v2923 = vrot.slane %v2573, 7
      %v2924 = vrot.slane %v2923, 2
      %v2925 = vrot.slane %v2581, 7
      %v2926 = vrot.slane %v2925, 2
      %v2927 = vrot.slane %v2589, 7
      %v2928 = vrot.slane %v2927, 2
      %v2929 = vrot.slane %v2588, 7
      %v2930 = vrot.slane %v2929, 2
      %v2931 = vrot.slane %v2590, 7
      %v2932 = vrot.slane %v2931, 2
      %v2933 = vrot.slane %v2632, 7
      %v2934 = vrot.slane %v2933, 2
      %v2935 = vrot.slane %v2640, 7
      %v2936 = vrot.slane %v2935, 2
      %v2937 = vrot.slane %v2639, 7
      %v2938 = vrot.slane %v2937, 2
      %v2939 = vrot.slane %v2641, 7
      %v2940 = vrot.slane %v2939, 2
      %v2941 = vrot.slane %v2649, 7
      %v2942 = vrot.slane %v2941, 2
      %v2943 = vrot.slane %v2657, 7
      %v2944 = vrot.slane %v2943, 2
      %v2945 = vrot.slane %v2656, 7
      %v2946 = vrot.slane %v2945, 2
      %v2947 = vrot.slane %v2658, 7
      %v2948 = vrot.slane %v2947, 2
      %v3013 = vmax.f32 %v2156, %v2822
      %v3014 = vmax.f32 %v2164, %v2824
      %v3015 = vmax.f32 %v2163, %v2826
      %v3016 = vmax.f32 %v2165, %v2828
      %v3017 = vmax.f32 %v2173, %v2830
      %v3018 = vmax.f32 %v2181, %v2832
      %v3019 = vmax.f32 %v2180, %v2834
      %v3020 = vmax.f32 %v2182, %v2836
      %v3021 = vmax.f32 %v2224, %v2838
      %v3022 = vmax.f32 %v2232, %v2840
      %v3023 = vmax.f32 %v2231, %v2842
      %v3024 = vmax.f32 %v2233, %v2844
      %v3025 = vmax.f32 %v2241, %v2846
      %v3026 = vmax.f32 %v2249, %v2848
      %v3027 = vmax.f32 %v2248, %v2850
      %v3028 = vmax.f32 %v2250, %v2852
      %v3029 = vmax.f32 %v2292, %v2854
      %v3030 = vmax.f32 %v2300, %v2856
      %v3031 = vmax.f32 %v2299, %v2858
      %v3032 = vmax.f32 %v2301, %v2860
      %v3033 = vmax.f32 %v2309, %v2862
      %v3034 = vmax.f32 %v2317, %v2864
      %v3035 = vmax.f32 %v2316, %v2866
      %v3036 = vmax.f32 %v2318, %v2868
      %v3037 = vmax.f32 %v2360, %v2870
      %v3038 = vmax.f32 %v2368, %v2872
      %v3039 = vmax.f32 %v2367, %v2874
      %v3040 = vmax.f32 %v2369, %v2876
      %v3041 = vmax.f32 %v2377, %v2878
      %v3042 = vmax.f32 %v2385, %v2880
      %v3043 = vmax.f32 %v2384, %v2882
      %v3044 = vmax.f32 %v2386, %v2884
      %v3045 = vmax.f32 %v2428, %v2886
      %v3046 = vmax.f32 %v2436, %v2888
      %v3047 = vmax.f32 %v2435, %v2890
      %v3048 = vmax.f32 %v2437, %v2892
      %v3049 = vmax.f32 %v2445, %v2894
      %v3050 = vmax.f32 %v2453, %v2896
      %v3051 = vmax.f32 %v2452, %v2898
      %v3052 = vmax.f32 %v2454, %v2900
      %v3053 = vmax.f32 %v2496, %v2902
      %v3054 = vmax.f32 %v2504, %v2904
      %v3055 = vmax.f32 %v2503, %v2906
      %v3056 = vmax.f32 %v2505, %v2908
      %v3057 = vmax.f32 %v2513, %v2910
      %v3058 = vmax.f32 %v2521, %v2912
      %v3059 = vmax.f32 %v2520, %v2914
      %v3060 = vmax.f32 %v2522, %v2916
      %v3061 = vmax.f32 %v2564, %v2918
      %v3062 = vmax.f32 %v2572, %v2920
      %v3063 = vmax.f32 %v2571, %v2922
      %v3064 = vmax.f32 %v2573, %v2924
      %v3065 = vmax.f32 %v2581, %v2926
      %v3066 = vmax.f32 %v2589, %v2928
      %v3067 = vmax.f32 %v2588, %v2930
      %v3068 = vmax.f32 %v2590, %v2932
      %v3069 = vmax.f32 %v2632, %v2934
      %v3070 = vmax.f32 %v2640, %v2936
      %v3071 = vmax.f32 %v2639, %v2938
      %v3072 = vmax.f32 %v2641, %v2940
      %v3073 = vmax.f32 %v2649, %v2942
      %v3074 = vmax.f32 %v2657, %v2944
      %v3075 = vmax.f32 %v2656, %v2946
      %v3076 = vmax.f32 %v2658, %v2948
      %v3077 = vrot.slane %v2190, 7
      %v3078 = vrot.slane %v3077, 2
      %v3079 = vrot.slane %v2198, 7
      %v3080 = vrot.slane %v3079, 2
      %v3081 = vrot.slane %v2197, 7
      %v3082 = vrot.slane %v3081, 2
      %v3083 = vrot.slane %v2199, 7
      %v3084 = vrot.slane %v3083, 2
      %v3085 = vrot.slane %v2207, 7
      %v3086 = vrot.slane %v3085, 2
      %v3087 = vrot.slane %v2215, 7
      %v3088 = vrot.slane %v3087, 2
      %v3089 = vrot.slane %v2214, 7
      %v3090 = vrot.slane %v3089, 2
      %v3091 = vrot.slane %v2216, 7
      %v3092 = vrot.slane %v3091, 2
      %v3093 = vrot.slane %v2258, 7
      %v3094 = vrot.slane %v3093, 2
      %v3095 = vrot.slane %v2266, 7
      %v3096 = vrot.slane %v3095, 2
      %v3097 = vrot.slane %v2265, 7
      %v3098 = vrot.slane %v3097, 2
      %v3099 = vrot.slane %v2267, 7
      %v3100 = vrot.slane %v3099, 2
      %v3101 = vrot.slane %v2275, 7
      %v3102 = vrot.slane %v3101, 2
      %v3103 = vrot.slane %v2283, 7
      %v3104 = vrot.slane %v3103, 2
      %v3105 = vrot.slane %v2282, 7
      %v3106 = vrot.slane %v3105, 2
      %v3107 = vrot.slane %v2284, 7
      %v3108 = vrot.slane %v3107, 2
      %v3109 = vrot.slane %v2326, 7
      %v3110 = vrot.slane %v3109, 2
      %v3111 = vrot.slane %v2334, 7
      %v3112 = vrot.slane %v3111, 2
      %v3113 = vrot.slane %v2333, 7
      %v3114 = vrot.slane %v3113, 2
      %v3115 = vrot.slane %v2335, 7
      %v3116 = vrot.slane %v3115, 2
      %v3117 = vrot.slane %v2343, 7
      %v3118 = vrot.slane %v3117, 2
      %v3119 = vrot.slane %v2351, 7
      %v3120 = vrot.slane %v3119, 2
      %v3121 = vrot.slane %v2350, 7
      %v3122 = vrot.slane %v3121, 2
      %v3123 = vrot.slane %v2352, 7
      %v3124 = vrot.slane %v3123, 2
      %v3125 = vrot.slane %v2394, 7
      %v3126 = vrot.slane %v3125, 2
      %v3127 = vrot.slane %v2402, 7
      %v3128 = vrot.slane %v3127, 2
      %v3129 = vrot.slane %v2401, 7
      %v3130 = vrot.slane %v3129, 2
      %v3131 = vrot.slane %v2403, 7
      %v3132 = vrot.slane %v3131, 2
      %v3133 = vrot.slane %v2411, 7
      %v3134 = vrot.slane %v3133, 2
      %v3135 = vrot.slane %v2419, 7
      %v3136 = vrot.slane %v3135, 2
      %v3137 = vrot.slane %v2418, 7
      %v3138 = vrot.slane %v3137, 2
      %v3139 = vrot.slane %v2420, 7
      %v3140 = vrot.slane %v3139, 2
      %v3141 = vrot.slane %v2462, 7
      %v3142 = vrot.slane %v3141, 2
      %v3143 = vrot.slane %v2470, 7
      %v3144 = vrot.slane %v3143, 2
      %v3145 = vrot.slane %v2469, 7
      %v3146 = vrot.slane %v3145, 2
      %v3147 = vrot.slane %v2471, 7
      %v3148 = vrot.slane %v3147, 2
      %v3149 = vrot.slane %v2479, 7
      %v3150 = vrot.slane %v3149, 2
      %v3151 = vrot.slane %v2487, 7
      %v3152 = vrot.slane %v3151, 2
      %v3153 = vrot.slane %v2486, 7
      %v3154 = vrot.slane %v3153, 2
      %v3155 = vrot.slane %v2488, 7
      %v3156 = vrot.slane %v3155, 2
      %v3157 = vrot.slane %v2530, 7
      %v3158 = vrot.slane %v3157, 2
      %v3159 = vrot.slane %v2538, 7
      %v3160 = vrot.slane %v3159, 2
      %v3161 = vrot.slane %v2537, 7
      %v3162 = vrot.slane %v3161, 2
      %v3163 = vrot.slane %v2539, 7
      %v3164 = vrot.slane %v3163, 2
      %v3165 = vrot.slane %v2547, 7
      %v3166 = vrot.slane %v3165, 2
      %v3167 = vrot.slane %v2555, 7
      %v3168 = vrot.slane %v3167, 2
      %v3169 = vrot.slane %v2554, 7
      %v3170 = vrot.slane %v3169, 2
      %v3171 = vrot.slane %v2556, 7
      %v3172 = vrot.slane %v3171, 2
      %v3173 = vrot.slane %v2598, 7
      %v3174 = vrot.slane %v3173, 2
      %v3175 = vrot.slane %v2606, 7
      %v3176 = vrot.slane %v3175, 2
      %v3177 = vrot.slane %v2605, 7
      %v3178 = vrot.slane %v3177, 2
      %v3179 = vrot.slane %v2607, 7
      %v3180 = vrot.slane %v3179, 2
      %v3181 = vrot.slane %v2615, 7
      %v3182 = vrot.slane %v3181, 2
      %v3183 = vrot.slane %v2623, 7
      %v3184 = vrot.slane %v3183, 2
      %v3185 = vrot.slane %v2622, 7
      %v3186 = vrot.slane %v3185, 2
      %v3187 = vrot.slane %v2624, 7
      %v3188 = vrot.slane %v3187, 2
      %v3189 = vrot.slane %v2666, 7
      %v3190 = vrot.slane %v3189, 2
      %v3191 = vrot.slane %v2674, 7
      %v3192 = vrot.slane %v3191, 2
      %v3193 = vrot.slane %v2673, 7
      %v3194 = vrot.slane %v3193, 2
      %v3195 = vrot.slane %v2675, 7
      %v3196 = vrot.slane %v3195, 2
      %v3197 = vrot.slane %v2683, 7
      %v3198 = vrot.slane %v3197, 2
      %v3199 = vrot.slane %v2691, 7
      %v3200 = vrot.slane %v3199, 2
      %v3201 = vrot.slane %v2690, 7
      %v3202 = vrot.slane %v3201, 2
      %v3203 = vrot.slane %v2692, 7
      %v3204 = vrot.slane %v3203, 2
      %v3269 = vmax.f32 %v2190, %v3078
      %v3270 = vmax.f32 %v2198, %v3080
      %v3271 = vmax.f32 %v2197, %v3082
      %v3272 = vmax.f32 %v2199, %v3084
      %v3273 = vmax.f32 %v2207, %v3086
      %v3274 = vmax.f32 %v2215, %v3088
      %v3275 = vmax.f32 %v2214, %v3090
      %v3276 = vmax.f32 %v2216, %v3092
      %v3277 = vmax.f32 %v2258, %v3094
      %v3278 = vmax.f32 %v2266, %v3096
      %v3279 = vmax.f32 %v2265, %v3098
      %v3280 = vmax.f32 %v2267, %v3100
      %v3281 = vmax.f32 %v2275, %v3102
      %v3282 = vmax.f32 %v2283, %v3104
      %v3283 = vmax.f32 %v2282, %v3106
      %v3284 = vmax.f32 %v2284, %v3108
      %v3285 = vmax.f32 %v2326, %v3110
      %v3286 = vmax.f32 %v2334, %v3112
      %v3287 = vmax.f32 %v2333, %v3114
      %v3288 = vmax.f32 %v2335, %v3116
      %v3289 = vmax.f32 %v2343, %v3118
      %v3290 = vmax.f32 %v2351, %v3120
      %v3291 = vmax.f32 %v2350, %v3122
      %v3292 = vmax.f32 %v2352, %v3124
      %v3293 = vmax.f32 %v2394, %v3126
      %v3294 = vmax.f32 %v2402, %v3128
      %v3295 = vmax.f32 %v2401, %v3130
      %v3296 = vmax.f32 %v2403, %v3132
      %v3297 = vmax.f32 %v2411, %v3134
      %v3298 = vmax.f32 %v2419, %v3136
      %v3299 = vmax.f32 %v2418, %v3138
      %v3300 = vmax.f32 %v2420, %v3140
      %v3301 = vmax.f32 %v2462, %v3142
      %v3302 = vmax.f32 %v2470, %v3144
      %v3303 = vmax.f32 %v2469, %v3146
      %v3304 = vmax.f32 %v2471, %v3148
      %v3305 = vmax.f32 %v2479, %v3150
      %v3306 = vmax.f32 %v2487, %v3152
      %v3307 = vmax.f32 %v2486, %v3154
      %v3308 = vmax.f32 %v2488, %v3156
      %v3309 = vmax.f32 %v2530, %v3158
      %v3310 = vmax.f32 %v2538, %v3160
      %v3311 = vmax.f32 %v2537, %v3162
      %v3312 = vmax.f32 %v2539, %v3164
      %v3313 = vmax.f32 %v2547, %v3166
      %v3314 = vmax.f32 %v2555, %v3168
      %v3315 = vmax.f32 %v2554, %v3170
      %v3316 = vmax.f32 %v2556, %v3172
      %v3317 = vmax.f32 %v2598, %v3174
      %v3318 = vmax.f32 %v2606, %v3176
      %v3319 = vmax.f32 %v2605, %v3178
      %v3320 = vmax.f32 %v2607, %v3180
      %v3321 = vmax.f32 %v2615, %v3182
      %v3322 = vmax.f32 %v2623, %v3184
      %v3323 = vmax.f32 %v2622, %v3186
      %v3324 = vmax.f32 %v2624, %v3188
      %v3325 = vmax.f32 %v2666, %v3190
      %v3326 = vmax.f32 %v2674, %v3192
      %v3327 = vmax.f32 %v2673, %v3194
      %v3328 = vmax.f32 %v2675, %v3196
      %v3329 = vmax.f32 %v2683, %v3198
      %v3330 = vmax.f32 %v2691, %v3200
      %v3331 = vmax.f32 %v2690, %v3202
      %v3332 = vmax.f32 %v2692, %v3204
      %v3333 = vmax.f32 %v3013, %v3269
      %v3334 = vmax.f32 %v3014, %v3270
      %v3335 = vmax.f32 %v3015, %v3271
      %v3336 = vmax.f32 %v3016, %v3272
      %v3337 = vmax.f32 %v3017, %v3273
      %v3338 = vmax.f32 %v3018, %v3274
      %v3339 = vmax.f32 %v3019, %v3275
      %v3340 = vmax.f32 %v3020, %v3276
      %v3341 = vmax.f32 %v3021, %v3277
      %v3342 = vmax.f32 %v3022, %v3278
      %v3343 = vmax.f32 %v3023, %v3279
      %v3344 = vmax.f32 %v3024, %v3280
      %v3345 = vmax.f32 %v3025, %v3281
      %v3346 = vmax.f32 %v3026, %v3282
      %v3347 = vmax.f32 %v3027, %v3283
      %v3348 = vmax.f32 %v3028, %v3284
      %v3349 = vmax.f32 %v3029, %v3285
      %v3350 = vmax.f32 %v3030, %v3286
      %v3351 = vmax.f32 %v3031, %v3287
      %v3352 = vmax.f32 %v3032, %v3288
      %v3353 = vmax.f32 %v3033, %v3289
      %v3354 = vmax.f32 %v3034, %v3290
      %v3355 = vmax.f32 %v3035, %v3291
      %v3356 = vmax.f32 %v3036, %v3292
      %v3357 = vmax.f32 %v3037, %v3293
      %v3358 = vmax.f32 %v3038, %v3294
      %v3359 = vmax.f32 %v3039, %v3295
      %v3360 = vmax.f32 %v3040, %v3296
      %v3361 = vmax.f32 %v3041, %v3297
      %v3362 = vmax.f32 %v3042, %v3298
      %v3363 = vmax.f32 %v3043, %v3299
      %v3364 = vmax.f32 %v3044, %v3300
      %v3365 = vmax.f32 %v3045, %v3301
      %v3366 = vmax.f32 %v3046, %v3302
      %v3367 = vmax.f32 %v3047, %v3303
      %v3368 = vmax.f32 %v3048, %v3304
      %v3369 = vmax.f32 %v3049, %v3305
      %v3370 = vmax.f32 %v3050, %v3306
      %v3371 = vmax.f32 %v3051, %v3307
      %v3372 = vmax.f32 %v3052, %v3308
      %v3373 = vmax.f32 %v3053, %v3309
      %v3374 = vmax.f32 %v3054, %v3310
      %v3375 = vmax.f32 %v3055, %v3311
      %v3376 = vmax.f32 %v3056, %v3312
      %v3377 = vmax.f32 %v3057, %v3313
      %v3378 = vmax.f32 %v3058, %v3314
      %v3379 = vmax.f32 %v3059, %v3315
      %v3380 = vmax.f32 %v3060, %v3316
      %v3381 = vmax.f32 %v3061, %v3317
      %v3382 = vmax.f32 %v3062, %v3318
      %v3383 = vmax.f32 %v3063, %v3319
      %v3384 = vmax.f32 %v3064, %v3320
      %v3385 = vmax.f32 %v3065, %v3321
      %v3386 = vmax.f32 %v3066, %v3322
      %v3387 = vmax.f32 %v3067, %v3323
      %v3388 = vmax.f32 %v3068, %v3324
      %v3389 = vmax.f32 %v3069, %v3325
      %v3390 = vmax.f32 %v3070, %v3326
      %v3391 = vmax.f32 %v3071, %v3327
      %v3392 = vmax.f32 %v3072, %v3328
      %v3393 = vmax.f32 %v3073, %v3329
      %v3394 = vmax.f32 %v3074, %v3330
      %v3395 = vmax.f32 %v3075, %v3331
      %v3396 = vmax.f32 %v3076, %v3332
      %v3461 = vlaneseq
      %v3462 = vshrl.u32 %v3461, 7
      %v3463 = vsub.s32 0, %v3462
      %v3464 = vrot.slane %v3333, %v3463
      %v3465 = vlaneseq
      %v3466 = vshrl.u32 %v3465, 7
      %v3467 = vsub.s32 0, %v3466
      %v3468 = vrot.slane %v3334, %v3467
      %v3469 = vlaneseq
      %v3470 = vshrl.u32 %v3469, 7
      %v3471 = vsub.s32 0, %v3470
      %v3472 = vrot.slane %v3335, %v3471
      %v3473 = vlaneseq
      %v3474 = vshrl.u32 %v3473, 7
      %v3475 = vsub.s32 0, %v3474
      %v3476 = vrot.slane %v3336, %v3475
      %v3477 = vlaneseq
      %v3478 = vshrl.u32 %v3477, 7
      %v3479 = vsub.s32 0, %v3478
      %v3480 = vrot.slane %v3337, %v3479
      %v3481 = vlaneseq
      %v3482 = vshrl.u32 %v3481, 7
      %v3483 = vsub.s32 0, %v3482
      %v3484 = vrot.slane %v3338, %v3483
      %v3485 = vlaneseq
      %v3486 = vshrl.u32 %v3485, 7
      %v3487 = vsub.s32 0, %v3486
      %v3488 = vrot.slane %v3339, %v3487
      %v3489 = vlaneseq
      %v3490 = vshrl.u32 %v3489, 7
      %v3491 = vsub.s32 0, %v3490
      %v3492 = vrot.slane %v3340, %v3491
      %v3493 = vlaneseq
      %v3494 = vshrl.u32 %v3493, 7
      %v3495 = vsub.s32 0, %v3494
      %v3496 = vrot.slane %v3341, %v3495
      %v3497 = vlaneseq
      %v3498 = vshrl.u32 %v3497, 7
      %v3499 = vsub.s32 0, %v3498
      %v3500 = vrot.slane %v3342, %v3499
      %v3501 = vlaneseq
      %v3502 = vshrl.u32 %v3501, 7
      %v3503 = vsub.s32 0, %v3502
      %v3504 = vrot.slane %v3343, %v3503
      %v3505 = vlaneseq
      %v3506 = vshrl.u32 %v3505, 7
      %v3507 = vsub.s32 0, %v3506
      %v3508 = vrot.slane %v3344, %v3507
      %v3509 = vlaneseq
      %v3510 = vshrl.u32 %v3509, 7
      %v3511 = vsub.s32 0, %v3510
      %v3512 = vrot.slane %v3345, %v3511
      %v3513 = vlaneseq
      %v3514 = vshrl.u32 %v3513, 7
      %v3515 = vsub.s32 0, %v3514
      %v3516 = vrot.slane %v3346, %v3515
      %v3517 = vlaneseq
      %v3518 = vshrl.u32 %v3517, 7
      %v3519 = vsub.s32 0, %v3518
      %v3520 = vrot.slane %v3347, %v3519
      %v3521 = vlaneseq
      %v3522 = vshrl.u32 %v3521, 7
      %v3523 = vsub.s32 0, %v3522
      %v3524 = vrot.slane %v3348, %v3523
      %v3525 = vlaneseq
      %v3526 = vshrl.u32 %v3525, 7
      %v3527 = vsub.s32 0, %v3526
      %v3528 = vrot.slane %v3349, %v3527
      %v3529 = vlaneseq
      %v3530 = vshrl.u32 %v3529, 7
      %v3531 = vsub.s32 0, %v3530
      %v3532 = vrot.slane %v3350, %v3531
      %v3533 = vlaneseq
      %v3534 = vshrl.u32 %v3533, 7
      %v3535 = vsub.s32 0, %v3534
      %v3536 = vrot.slane %v3351, %v3535
      %v3537 = vlaneseq
      %v3538 = vshrl.u32 %v3537, 7
      %v3539 = vsub.s32 0, %v3538
      %v3540 = vrot.slane %v3352, %v3539
      %v3541 = vlaneseq
      %v3542 = vshrl.u32 %v3541, 7
      %v3543 = vsub.s32 0, %v3542
      %v3544 = vrot.slane %v3353, %v3543
      %v3545 = vlaneseq
      %v3546 = vshrl.u32 %v3545, 7
      %v3547 = vsub.s32 0, %v3546
      %v3548 = vrot.slane %v3354, %v3547
      %v3549 = vlaneseq
      %v3550 = vshrl.u32 %v3549, 7
      %v3551 = vsub.s32 0, %v3550
      %v3552 = vrot.slane %v3355, %v3551
      %v3553 = vlaneseq
      %v3554 = vshrl.u32 %v3553, 7
      %v3555 = vsub.s32 0, %v3554
      %v3556 = vrot.slane %v3356, %v3555
      %v3557 = vlaneseq
      %v3558 = vshrl.u32 %v3557, 7
      %v3559 = vsub.s32 0, %v3558
      %v3560 = vrot.slane %v3357, %v3559
      %v3561 = vlaneseq
      %v3562 = vshrl.u32 %v3561, 7
      %v3563 = vsub.s32 0, %v3562
      %v3564 = vrot.slane %v3358, %v3563
      %v3565 = vlaneseq
      %v3566 = vshrl.u32 %v3565, 7
      %v3567 = vsub.s32 0, %v3566
      %v3568 = vrot.slane %v3359, %v3567
      %v3569 = vlaneseq
      %v3570 = vshrl.u32 %v3569, 7
      %v3571 = vsub.s32 0, %v3570
      %v3572 = vrot.slane %v3360, %v3571
      %v3573 = vlaneseq
      %v3574 = vshrl.u32 %v3573, 7
      %v3575 = vsub.s32 0, %v3574
      %v3576 = vrot.slane %v3361, %v3575
      %v3577 = vlaneseq
      %v3578 = vshrl.u32 %v3577, 7
      %v3579 = vsub.s32 0, %v3578
      %v3580 = vrot.slane %v3362, %v3579
      %v3581 = vlaneseq
      %v3582 = vshrl.u32 %v3581, 7
      %v3583 = vsub.s32 0, %v3582
      %v3584 = vrot.slane %v3363, %v3583
      %v3585 = vlaneseq
      %v3586 = vshrl.u32 %v3585, 7
      %v3587 = vsub.s32 0, %v3586
      %v3588 = vrot.slane %v3364, %v3587
      %v3589 = vlaneseq
      %v3590 = vshrl.u32 %v3589, 7
      %v3591 = vsub.s32 0, %v3590
      %v3592 = vrot.slane %v3365, %v3591
      %v3593 = vlaneseq
      %v3594 = vshrl.u32 %v3593, 7
      %v3595 = vsub.s32 0, %v3594
      %v3596 = vrot.slane %v3366, %v3595
      %v3597 = vlaneseq
      %v3598 = vshrl.u32 %v3597, 7
      %v3599 = vsub.s32 0, %v3598
      %v3600 = vrot.slane %v3367, %v3599
      %v3601 = vlaneseq
      %v3602 = vshrl.u32 %v3601, 7
      %v3603 = vsub.s32 0, %v3602
      %v3604 = vrot.slane %v3368, %v3603
      %v3605 = vlaneseq
      %v3606 = vshrl.u32 %v3605, 7
      %v3607 = vsub.s32 0, %v3606
      %v3608 = vrot.slane %v3369, %v3607
      %v3609 = vlaneseq
      %v3610 = vshrl.u32 %v3609, 7
      %v3611 = vsub.s32 0, %v3610
      %v3612 = vrot.slane %v3370, %v3611
      %v3613 = vlaneseq
      %v3614 = vshrl.u32 %v3613, 7
      %v3615 = vsub.s32 0, %v3614
      %v3616 = vrot.slane %v3371, %v3615
      %v3617 = vlaneseq
      %v3618 = vshrl.u32 %v3617, 7
      %v3619 = vsub.s32 0, %v3618
      %v3620 = vrot.slane %v3372, %v3619
      %v3621 = vlaneseq
      %v3622 = vshrl.u32 %v3621, 7
      %v3623 = vsub.s32 0, %v3622
      %v3624 = vrot.slane %v3373, %v3623
      %v3625 = vlaneseq
      %v3626 = vshrl.u32 %v3625, 7
      %v3627 = vsub.s32 0, %v3626
      %v3628 = vrot.slane %v3374, %v3627
      %v3629 = vlaneseq
      %v3630 = vshrl.u32 %v3629, 7
      %v3631 = vsub.s32 0, %v3630
      %v3632 = vrot.slane %v3375, %v3631
      %v3633 = vlaneseq
      %v3634 = vshrl.u32 %v3633, 7
      %v3635 = vsub.s32 0, %v3634
      %v3636 = vrot.slane %v3376, %v3635
      %v3637 = vlaneseq
      %v3638 = vshrl.u32 %v3637, 7
      %v3639 = vsub.s32 0, %v3638
      %v3640 = vrot.slane %v3377, %v3639
      %v3641 = vlaneseq
      %v3642 = vshrl.u32 %v3641, 7
      %v3643 = vsub.s32 0, %v3642
      %v3644 = vrot.slane %v3378, %v3643
      %v3645 = vlaneseq
      %v3646 = vshrl.u32 %v3645, 7
      %v3647 = vsub.s32 0, %v3646
      %v3648 = vrot.slane %v3379, %v3647
      %v3649 = vlaneseq
      %v3650 = vshrl.u32 %v3649, 7
      %v3651 = vsub.s32 0, %v3650
      %v3652 = vrot.slane %v3380, %v3651
      %v3653 = vlaneseq
      %v3654 = vshrl.u32 %v3653, 7
      %v3655 = vsub.s32 0, %v3654
      %v3656 = vrot.slane %v3381, %v3655
      %v3657 = vlaneseq
      %v3658 = vshrl.u32 %v3657, 7
      %v3659 = vsub.s32 0, %v3658
      %v3660 = vrot.slane %v3382, %v3659
      %v3661 = vlaneseq
      %v3662 = vshrl.u32 %v3661, 7
      %v3663 = vsub.s32 0, %v3662
      %v3664 = vrot.slane %v3383, %v3663
      %v3665 = vlaneseq
      %v3666 = vshrl.u32 %v3665, 7
      %v3667 = vsub.s32 0, %v3666
      %v3668 = vrot.slane %v3384, %v3667
      %v3669 = vlaneseq
      %v3670 = vshrl.u32 %v3669, 7
      %v3671 = vsub.s32 0, %v3670
      %v3672 = vrot.slane %v3385, %v3671
      %v3673 = vlaneseq
      %v3674 = vshrl.u32 %v3673, 7
      %v3675 = vsub.s32 0, %v3674
      %v3676 = vrot.slane %v3386, %v3675
      %v3677 = vlaneseq
      %v3678 = vshrl.u32 %v3677, 7
      %v3679 = vsub.s32 0, %v3678
      %v3680 = vrot.slane %v3387, %v3679
      %v3681 = vlaneseq
      %v3682 = vshrl.u32 %v3681, 7
      %v3683 = vsub.s32 0, %v3682
      %v3684 = vrot.slane %v3388, %v3683
      %v3685 = vlaneseq
      %v3686 = vshrl.u32 %v3685, 7
      %v3687 = vsub.s32 0, %v3686
      %v3688 = vrot.slane %v3389, %v3687
      %v3689 = vlaneseq
      %v3690 = vshrl.u32 %v3689, 7
      %v3691 = vsub.s32 0, %v3690
      %v3692 = vrot.slane %v3390, %v3691
      %v3693 = vlaneseq
      %v3694 = vshrl.u32 %v3693, 7
      %v3695 = vsub.s32 0, %v3694
      %v3696 = vrot.slane %v3391, %v3695
      %v3697 = vlaneseq
      %v3698 = vshrl.u32 %v3697, 7
      %v3699 = vsub.s32 0, %v3698
      %v3700 = vrot.slane %v3392, %v3699
      %v3701 = vlaneseq
      %v3702 = vshrl.u32 %v3701, 7
      %v3703 = vsub.s32 0, %v3702
      %v3704 = vrot.slane %v3393, %v3703
      %v3705 = vlaneseq
      %v3706 = vshrl.u32 %v3705, 7
      %v3707 = vsub.s32 0, %v3706
      %v3708 = vrot.slane %v3394, %v3707
      %v3709 = vlaneseq
      %v3710 = vshrl.u32 %v3709, 7
      %v3711 = vsub.s32 0, %v3710
      %v3712 = vrot.slane %v3395, %v3711
      %v3713 = vlaneseq
      %v3714 = vshrl.u32 %v3713, 7
      %v3715 = vsub.s32 0, %v3714
      %v3716 = vrot.slane %v3396, %v3715
      %vm3717 = vcmask 1042434
      %v3718 = vsel %vm3717, %v3468, %v3464
      %vm3719 = vcmask 1043459
      %v3720 = vsel %vm3719, %v3472, %v3718
      %vm3721 = vcmask 1044484
      %v3722 = vsel %vm3721, %v3476, %v3720
      %vm3723 = vcmask 1045509
      %v3724 = vsel %vm3723, %v3480, %v3722
      %vm3725 = vcmask 1046534
      %v3726 = vsel %vm3725, %v3484, %v3724
      %vm3727 = vcmask 1047559
      %v3728 = vsel %vm3727, %v3488, %v3726
      %v3729 = vsel %vm3717, %v3500, %v3496
      %v3730 = vsel %vm3719, %v3504, %v3729
      %v3731 = vsel %vm3721, %v3508, %v3730
      %v3732 = vsel %vm3723, %v3512, %v3731
      %v3733 = vsel %vm3725, %v3516, %v3732
      %v3734 = vsel %vm3727, %v3520, %v3733
      %v3735 = vsel %vm3717, %v3532, %v3528
      %v3736 = vsel %vm3719, %v3536, %v3735
      %v3737 = vsel %vm3721, %v3540, %v3736
      %v3738 = vsel %vm3723, %v3544, %v3737
      %v3739 = vsel %vm3725, %v3548, %v3738
      %v3740 = vsel %vm3727, %v3552, %v3739
      %v3741 = vsel %vm3717, %v3564, %v3560
      %v3742 = vsel %vm3719, %v3568, %v3741
      %v3743 = vsel %vm3721, %v3572, %v3742
      %v3744 = vsel %vm3723, %v3576, %v3743
      %v3745 = vsel %vm3725, %v3580, %v3744
      %v3746 = vsel %vm3727, %v3584, %v3745
      %v3747 = vsel %vm3717, %v3596, %v3592
      %v3748 = vsel %vm3719, %v3600, %v3747
      %v3749 = vsel %vm3721, %v3604, %v3748
      %v3750 = vsel %vm3723, %v3608, %v3749
      %v3751 = vsel %vm3725, %v3612, %v3750
      %v3752 = vsel %vm3727, %v3616, %v3751
      %v3753 = vsel %vm3717, %v3628, %v3624
      %v3754 = vsel %vm3719, %v3632, %v3753
      %v3755 = vsel %vm3721, %v3636, %v3754
      %v3756 = vsel %vm3723, %v3640, %v3755
      %v3757 = vsel %vm3725, %v3644, %v3756
      %v3758 = vsel %vm3727, %v3648, %v3757
      %v3759 = vsel %vm3717, %v3660, %v3656
      %v3760 = vsel %vm3719, %v3664, %v3759
      %v3761 = vsel %vm3721, %v3668, %v3760
      %v3762 = vsel %vm3723, %v3672, %v3761
      %v3763 = vsel %vm3725, %v3676, %v3762
      %v3764 = vsel %vm3727, %v3680, %v3763
      %v3765 = vsel %vm3717, %v3692, %v3688
      %v3766 = vsel %vm3719, %v3696, %v3765
      %v3767 = vsel %vm3721, %v3700, %v3766
      %v3768 = vsel %vm3723, %v3704, %v3767
      %v3769 = vsel %vm3725, %v3708, %v3768
      %v3770 = vsel %vm3727, %v3712, %v3769
      %v3787 = vsel %vm397, 0.0, %v3728
      %v3788 = vsel %vm397, 0.0, %v3734
      %v3789 = vsel %vm397, 0.0, %v3740
      %v3790 = vsel %vm397, 0.0, %v3746
      %v3791 = vsel %vm397, 0.0, %v3752
      %v3792 = vsel %vm397, 0.0, %v3758
      %v3793 = vsel %vm397, 0.0, %v3764
      %v3794 = vsel %vm397, 0.0, %v3770
      %v3795 = vsel %vm397, %v3492, 0.0
      %v3796 = vsel %vm397, %v3524, 0.0
      %v3797 = vsel %vm397, %v3556, 0.0
      %v3798 = vsel %vm397, %v3588, 0.0
      %v3799 = vsel %vm397, %v3620, 0.0
      %v3800 = vsel %vm397, %v3652, 0.0
      %v3801 = vsel %vm397, %v3684, 0.0
      %v3802 = vsel %vm397, %v3716, 0.0
      %v3817 = vrot.slane %v3787, 1
      %v3818 = vrot.slane %v3795, 1
      %v3819 = vsel %vm556, %v3817, %v3818
      %v3820 = vrot.slane %v3788, 1
      %v3821 = vrot.slane %v3796, 1
      %v3822 = vsel %vm556, %v3820, %v3821
      %v3823 = vrot.slane %v3789, 1
      %v3824 = vrot.slane %v3797, 1
      %v3825 = vsel %vm556, %v3823, %v3824
      %v3826 = vrot.slane %v3790, 1
      %v3827 = vrot.slane %v3798, 1
      %v3828 = vsel %vm556, %v3826, %v3827
      %v3829 = vrot.slane %v3791, 1
      %v3830 = vrot.slane %v3799, 1
      %v3831 = vsel %vm556, %v3829, %v3830
      %v3832 = vrot.slane %v3792, 1
      %v3833 = vrot.slane %v3800, 1
      %v3834 = vsel %vm556, %v3832, %v3833
      %v3835 = vrot.slane %v3793, 1
      %v3836 = vrot.slane %v3801, 1
      %v3837 = vsel %vm556, %v3835, %v3836
      %3838 = vrot.lane.b32.xlu0 %v558, 32
      %v3839 = vpop.permute.xlu0 %3838
      %3840 = vrot.lane.b32.xlu0 %v3819, 32
      %v3841 = vpop.permute.xlu0 %3840
      %3842 = vrot.lane.b32.xlu0 %v3822, 32
      %v3843 = vpop.permute.xlu0 %3842
      %3844 = vrot.lane.b32.xlu0 %v3825, 32
      %v3845 = vpop.permute.xlu0 %3844
      %3846 = vrot.lane.b32.xlu0 %v3828, 32
      %v3847 = vpop.permute.xlu0 %3846
      %3848 = vrot.lane.b32.xlu0 %v3831, 32
      %v3849 = vpop.permute.xlu0 %3848
      %3850 = vrot.lane.b32.xlu0 %v3834, 32
      %v3851 = vpop.permute.xlu0 %3850
      %3852 = vrot.lane.b32.xlu0 %v3837, 32
      %v3853 = vpop.permute.xlu0 %3852
      %v3862 = vrot.slane %v3787, 2
      %v3863 = vrot.slane %v3795, 2
      %v3864 = vsel %vm727, %v3862, %v3863
      %v3865 = vrot.slane %v3788, 2
      %v3866 = vrot.slane %v3796, 2
      %v3867 = vsel %vm727, %v3865, %v3866
      %v3868 = vrot.slane %v3789, 2
      %v3869 = vrot.slane %v3797, 2
      %v3870 = vsel %vm727, %v3868, %v3869
      %v3871 = vrot.slane %v3790, 2
      %v3872 = vrot.slane %v3798, 2
      %v3873 = vsel %vm727, %v3871, %v3872
      %v3874 = vrot.slane %v3791, 2
      %v3875 = vrot.slane %v3799, 2
      %v3876 = vsel %vm727, %v3874, %v3875
      %v3877 = vrot.slane %v3792, 2
      %v3878 = vrot.slane %v3800, 2
      %v3879 = vsel %vm727, %v3877, %v3878
      %v3880 = vrot.slane %v3793, 2
      %v3881 = vrot.slane %v3801, 2
      %v3882 = vsel %vm727, %v3880, %v3881
      %3883 = vrot.lane.b32.xlu0 %v729, 64
      %v3884 = vpop.permute.xlu0 %3883
      %3885 = vrot.lane.b32.xlu0 %v3864, 64
      %v3886 = vpop.permute.xlu0 %3885
      %3887 = vrot.lane.b32.xlu0 %v3867, 64
      %v3888 = vpop.permute.xlu0 %3887
      %3889 = vrot.lane.b32.xlu0 %v3870, 64
      %v3890 = vpop.permute.xlu0 %3889
      %3891 = vrot.lane.b32.xlu0 %v3873, 64
      %v3892 = vpop.permute.xlu0 %3891
      %3893 = vrot.lane.b32.xlu0 %v3876, 64
      %v3894 = vpop.permute.xlu0 %3893
      %3895 = vrot.lane.b32.xlu0 %v3879, 64
      %v3896 = vpop.permute.xlu0 %3895
      %3897 = vrot.lane.b32.xlu0 %v3882, 64
      %v3898 = vpop.permute.xlu0 %3897
      %3908 = vrot.lane.b32.xlu0 %v3787, 96
      %v3909 = vpop.permute.xlu0 %3908
      %3910 = vrot.lane.b32.xlu0 %v3788, 96
      %v3911 = vpop.permute.xlu0 %3910
      %3912 = vrot.lane.b32.xlu0 %v3789, 96
      %v3913 = vpop.permute.xlu0 %3912
      %3914 = vrot.lane.b32.xlu0 %v3790, 96
      %v3915 = vpop.permute.xlu0 %3914
      %3916 = vrot.lane.b32.xlu0 %v3791, 96
      %v3917 = vpop.permute.xlu0 %3916
      %3918 = vrot.lane.b32.xlu0 %v3792, 96
      %v3919 = vpop.permute.xlu0 %3918
      %3920 = vrot.lane.b32.xlu0 %v3793, 96
      %v3921 = vpop.permute.xlu0 %3920
      %3922 = vrot.lane.b32.xlu0 %v3794, 96
      %v3923 = vpop.permute.xlu0 %3922
      %v3933 = vrot.slane %v3794, 1
      %v3934 = vrot.slane %v3802, 1
      %v3935 = vsel %vm556, %v3933, %v3934
      %v3944 = vrot.slane %v3794, 2
      %v3945 = vrot.slane %v3802, 2
      %v3946 = vsel %vm727, %v3944, %v3945
      %3947 = vrot.lane.b32.xlu0 %v3864, 32
      %v3948 = vpop.permute.xlu0 %3947
      %3949 = vrot.lane.b32.xlu0 %v3867, 32
      %v3950 = vpop.permute.xlu0 %3949
      %3951 = vrot.lane.b32.xlu0 %v3870, 32
      %v3952 = vpop.permute.xlu0 %3951
      %3953 = vrot.lane.b32.xlu0 %v3873, 32
      %v3954 = vpop.permute.xlu0 %3953
      %3955 = vrot.lane.b32.xlu0 %v3876, 32
      %v3956 = vpop.permute.xlu0 %3955
      %3957 = vrot.lane.b32.xlu0 %v3879, 32
      %v3958 = vpop.permute.xlu0 %3957
      %3959 = vrot.lane.b32.xlu0 %v3882, 32
      %v3960 = vpop.permute.xlu0 %3959
      %3961 = vrot.lane.b32.xlu0 %v3946, 32
      %v3962 = vpop.permute.xlu0 %3961
      %3971 = vrot.lane.b32.xlu0 %v3788, 64
      %v3972 = vpop.permute.xlu0 %3971
      %3973 = vrot.lane.b32.xlu0 %v3789, 64
      %v3974 = vpop.permute.xlu0 %3973
      %3975 = vrot.lane.b32.xlu0 %v3790, 64
      %v3976 = vpop.permute.xlu0 %3975
      %3977 = vrot.lane.b32.xlu0 %v3791, 64
      %v3978 = vpop.permute.xlu0 %3977
      %3979 = vrot.lane.b32.xlu0 %v3792, 64
      %v3980 = vpop.permute.xlu0 %3979
      %3981 = vrot.lane.b32.xlu0 %v3793, 64
      %v3982 = vpop.permute.xlu0 %3981
      %3983 = vrot.lane.b32.xlu0 %v3794, 64
      %v3984 = vpop.permute.xlu0 %3983
      %3985 = vrot.lane.b32.xlu0 0.0, 64
      %v3986 = vpop.permute.xlu0 %3985
      %3995 = vrot.lane.b32.xlu0 %v3822, 96
      %v3996 = vpop.permute.xlu0 %3995
      %3997 = vrot.lane.b32.xlu0 %v3825, 96
      %v3998 = vpop.permute.xlu0 %3997
      %3999 = vrot.lane.b32.xlu0 %v3828, 96
      %v4000 = vpop.permute.xlu0 %3999
      %4001 = vrot.lane.b32.xlu0 %v3831, 96
      %v4002 = vpop.permute.xlu0 %4001
      %4003 = vrot.lane.b32.xlu0 %v3834, 96
      %v4004 = vpop.permute.xlu0 %4003
      %4005 = vrot.lane.b32.xlu0 %v3837, 96
      %v4006 = vpop.permute.xlu0 %4005
      %4007 = vrot.lane.b32.xlu0 %v3935, 96
      %v4008 = vpop.permute.xlu0 %4007
      %4009 = vrot.lane.b32.xlu0 %v558, 96
      %v4010 = vpop.permute.xlu0 %4009
      %vm4019 = vcmask 261120
      %v4020 = vsel %vm4019, 0.0, %v3839
      %v4021 = vsel %vm4019, %v3787, %v3841
      %v4022 = vsel %vm4019, %v3788, %v3843
      %v4023 = vsel %vm4019, %v3789, %v3845
      %v4024 = vsel %vm4019, %v3790, %v3847
      %v4025 = vsel %vm4019, %v3791, %v3849
      %v4026 = vsel %vm4019, %v3792, %v3851
      %v4027 = vsel %vm4019, %v3793, %v3853
      %vm4028 = vcmask 523264
      %v4029 = vsel %vm4028, %v4020, %v3884
      %v4030 = vsel %vm4028, %v4021, %v3886
      %v4031 = vsel %vm4028, %v4022, %v3888
      %v4032 = vsel %vm4028, %v4023, %v3890
      %v4033 = vsel %vm4028, %v4024, %v3892
      %v4034 = vsel %vm4028, %v4025, %v3894
      %v4035 = vsel %vm4028, %v4026, %v3896
      %v4036 = vsel %vm4028, %v4027, %v3898
      %vm4037 = vcmask 785408
      %v4038 = vsel %vm4037, %v4029, %v3909
      %v4039 = vsel %vm4037, %v4030, %v3911
      %v4040 = vsel %vm4037, %v4031, %v3913
      %v4041 = vsel %vm4037, %v4032, %v3915
      %v4042 = vsel %vm4037, %v4033, %v3917
      %v4043 = vsel %vm4037, %v4034, %v3919
      %v4044 = vsel %vm4037, %v4035, %v3921
      %v4045 = vsel %vm4037, %v4036, %v3923
      %v4046 = vsel %vm4019, %v3819, %v3948
      %v4047 = vsel %vm4019, %v3822, %v3950
      %v4048 = vsel %vm4019, %v3825, %v3952
      %v4049 = vsel %vm4019, %v3828, %v3954
      %v4050 = vsel %vm4019, %v3831, %v3956
      %v4051 = vsel %vm4019, %v3834, %v3958
      %v4052 = vsel %vm4019, %v3837, %v3960
      %v4053 = vsel %vm4019, %v3935, %v3962
      %v4054 = vsel %vm4028, %v4046, %v3972
      %v4055 = vsel %vm4028, %v4047, %v3974
      %v4056 = vsel %vm4028, %v4048, %v3976
      %v4057 = vsel %vm4028, %v4049, %v3978
      %v4058 = vsel %vm4028, %v4050, %v3980
      %v4059 = vsel %vm4028, %v4051, %v3982
      %v4060 = vsel %vm4028, %v4052, %v3984
      %v4061 = vsel %vm4028, %v4053, %v3986
      %v4062 = vsel %vm4037, %v4054, %v3996
      %v4063 = vsel %vm4037, %v4055, %v3998
      %v4064 = vsel %vm4037, %v4056, %v4000
      %v4065 = vsel %vm4037, %v4057, %v4002
      %v4066 = vsel %vm4037, %v4058, %v4004
      %v4067 = vsel %vm4037, %v4059, %v4006
      %v4068 = vsel %vm4037, %v4060, %v4008
      %v4069 = vsel %vm4037, %v4061, %v4010
      %v4070 = vld [vmem:[%s3] sm:$0xff]
      %v4071 = vld [vmem:[%s3 + $0x8] sm:$0xff]
      %v4072 = vld [vmem:[%s3 + $0x10] sm:$0xff]
      %v4073 = vld [vmem:[%s3 + $0x18] sm:$0xff]
      %v4074 = vld [vmem:[%s3 + $0x20] sm:$0xff]
      %v4075 = vld [vmem:[%s3 + $0x28] sm:$0xff]
      %v4076 = vld [vmem:[%s3 + $0x30] sm:$0xff]
      %v4077 = vld [vmem:[%s3 + $0x38] sm:$0xff]
      %v4078 = vld [vmem:[%s3 + $0x40] sm:$0xff]
      %v4079 = vld [vmem:[%s3 + $0x48] sm:$0xff]
      %v4080 = vld [vmem:[%s3 + $0x50] sm:$0xff]
      %v4081 = vld [vmem:[%s3 + $0x58] sm:$0xff]
      %v4082 = vld [vmem:[%s3 + $0x60] sm:$0xff]
      %v4083 = vld [vmem:[%s3 + $0x68] sm:$0xff]
      %v4084 = vld [vmem:[%s3 + $0x70] sm:$0xff]
      %v4085 = vld [vmem:[%s3 + $0x78] sm:$0xff]
      %v4086 = vld [vmem:[%s3 + $0x80] sm:$0xff]
      %v4087 = vld [vmem:[%s3 + $0x88] sm:$0xff]
      %v4088 = vld [vmem:[%s3 + $0x90] sm:$0xff]
      %v4089 = vld [vmem:[%s3 + $0x98] sm:$0xff]
      %v4090 = vld [vmem:[%s3 + $0xa0] sm:$0xff]
      %v4091 = vld [vmem:[%s3 + $0xa8] sm:$0xff]
      %v4092 = vld [vmem:[%s3 + $0xb0] sm:$0xff]
      %v4093 = vld [vmem:[%s3 + $0xb8] sm:$0xff]
      %v4094 = vld [vmem:[%s3 + $0xc0] sm:$0xff]
      %v4095 = vld [vmem:[%s3 + $0xc8] sm:$0xff]
      %v4096 = vld [vmem:[%s3 + $0xd0] sm:$0xff]
      %v4097 = vld [vmem:[%s3 + $0xd8] sm:$0xff]
      %v4098 = vld [vmem:[%s3 + $0xe0] sm:$0xff]
      %v4099 = vld [vmem:[%s3 + $0xe8] sm:$0xff]
      %v4100 = vld [vmem:[%s3 + $0xf0] sm:$0xff]
      %v4101 = vld [vmem:[%s3 + $0xf8] sm:$0xff]
      %v4102 = vld [vmem:[%s3 + $0x100] sm:$0xff]
      %v4103 = vld [vmem:[%s3 + $0x108] sm:$0xff]
      %v4104 = vld [vmem:[%s3 + $0x110] sm:$0xff]
      %v4105 = vld [vmem:[%s3 + $0x118] sm:$0xff]
      %v4106 = vld [vmem:[%s4] sm:$0x1]
      %v4108 = vlaneseq
      %v4109 = vshrl.u32 %v4108, 7
      %v4110 = vsub.s32 0, %v4109
      %v4111 = vrot.slane %v4106, %v4110
      %v4113 = vsel %vm4019, %v3867, 0
      %v4115 = vsel %vm4019, %v3870, 0
      %v4117 = vsel %vm4019, %v3873, 0
      %v4119 = vsel %vm4019, %v3876, 0
      %v4121 = vsel %vm4019, %v3879, 0
      %v4123 = vsel %vm4019, %v3882, 0
      %v4125 = vsel %vm4019, %v3946, 0
      %v4127 = vsel %vm4019, %v729, 0
      %4129 = vmatprep.subr.mxu0 0.0
      %4130 = vmatpush1.msra.mxu0 %v4085
      %4131 = vmatprep.subr.mxu0 0.0
      %4132 = vmatpush1.msra.mxu0 %v4084
      %4133 = vmatprep.subr.mxu0 0.0
      %4134 = vmatpush1.msra.mxu0 %v4083
      %4135 = vmatprep.subr.mxu0 0.0
      %4136 = vmatpush1.msra.mxu0 %v4082
      %4137 = vmatprep.subr.mxu0 0.0
      %4138 = vmatpush1.msra.mxu0 %v4081
      %4139 = vmatprep.subr.mxu0 0.0
      %4140 = vmatpush1.msra.mxu0 %v4080
      %4141 = vmatprep.subr.mxu0 0.0
      %4142 = vmatpush1.msra.mxu0 %v4079
      %4143 = vmatprep.subr.mxu0 0.0
      %4144 = vmatpush1.msra.mxu0 %v4078
      %4145 = vmatprep.subr.mxu0 0.0
      %4146 = vmatpush1.msra.mxu0 %v4077
      %4147 = vmatprep.subr.mxu0 0.0
      %4148 = vmatpush1.msra.mxu0 %v4076
      %4149 = vmatprep.subr.mxu0 0.0
      %4150 = vmatpush1.msra.mxu0 %v4075
      %4151 = vmatprep.subr.mxu0 0.0
      %4152 = vmatpush1.msra.mxu0 %v4074
      %4153 = vmatprep.subr.mxu0 0.0
      %4154 = vmatpush1.msra.mxu0 %v4073
      %4155 = vmatprep.subr.mxu0 0.0
      %4156 = vmatpush1.msra.mxu0 %v4072
      %4157 = vmatprep.subr.mxu0 0.0
      %4158 = vmatpush1.msra.mxu0 %v4071
      %4159 = vmatprep.subr.mxu0 0.0
      %4160 = vmatpush1.msra.mxu0 %v4070
      %4161 = vmatprep.subr.mxu0 0.0
      %4162 = vmatpush2.msra.mxu0 %v4101
      %4163 = vmatprep.subr.mxu0 0.0
      %4164 = vmatpush2.msra.mxu0 %v4100
      %4165 = vmatprep.subr.mxu0 0.0
      %4166 = vmatpush2.msra.mxu0 %v4099
      %4167 = vmatprep.subr.mxu0 0.0
      %4168 = vmatpush2.msra.mxu0 %v4098
      %4169 = vmatprep.subr.mxu0 0.0
      %4170 = vmatpush2.msra.mxu0 %v4097
      %4171 = vmatprep.subr.mxu0 0.0
      %4172 = vmatpush2.msra.mxu0 %v4096
      %4173 = vmatprep.subr.mxu0 0.0
      %4174 = vmatpush2.msra.mxu0 %v4095
      %4175 = vmatprep.subr.mxu0 0.0
      %4176 = vmatpush2.msra.mxu0 %v4094
      %4177 = vmatprep.subr.mxu0 0.0
      %4178 = vmatpush2.msra.mxu0 %v4093
      %4179 = vmatprep.subr.mxu0 0.0
      %4180 = vmatpush2.msra.mxu0 %v4092
      %4181 = vmatprep.subr.mxu0 0.0
      %4182 = vmatpush2.msra.mxu0 %v4091
      %4183 = vmatprep.subr.mxu0 0.0
      %4184 = vmatpush2.msra.mxu0 %v4090
      %4185 = vmatprep.subr.mxu0 0.0
      %4186 = vmatpush2.msra.mxu0 %v4089
      %4187 = vmatprep.subr.mxu0 0.0
      %4188 = vmatpush2.msra.mxu0 %v4088
      %4189 = vmatprep.subr.mxu0 0.0
      %4190 = vmatpush2.msra.mxu0 %v4087
      %4191 = vmatprep.subr.mxu0 0.0
      %4192 = vmatpush2.msra.mxu0 %v4086
      %4193 = vmatprep.mubr.f32.mxu0 %v4062
      %4194 = vmatmul.mubr.f32.gmra.mxu0 %v4038
      %v4195 = vpop.f32.mrf.mxu0
      %v4196 = vadd.f32 %v4111, %v4195
      %v4197 = vpop.f32.mrf.mxu0
      %4198 = vmatprep.mubr.f32.mxu0 %v4063
      %4199 = vmatmul.mubr.f32.gmra.mxu0 %v4039
      %v4200 = vpop.f32.mrf.mxu0
      %v4201 = vadd.f32 %v4111, %v4200
      %v4202 = vpop.f32.mrf.mxu0
      %4203 = vmatprep.mubr.f32.mxu0 %v4064
      %4204 = vmatmul.mubr.f32.gmra.mxu0 %v4040
      %v4205 = vpop.f32.mrf.mxu0
      %v4206 = vadd.f32 %v4111, %v4205
      %v4207 = vpop.f32.mrf.mxu0
      %4208 = vmatprep.mubr.f32.mxu0 %v4065
      %4209 = vmatmul.mubr.f32.gmra.mxu0 %v4041
      %v4210 = vpop.f32.mrf.mxu0
      %v4211 = vadd.f32 %v4111, %v4210
      %v4212 = vpop.f32.mrf.mxu0
      %4213 = vmatprep.mubr.f32.mxu0 %v4066
      %4214 = vmatmul.mubr.f32.gmra.mxu0 %v4042
      %v4215 = vpop.f32.mrf.mxu0
      %v4216 = vadd.f32 %v4111, %v4215
      %v4217 = vpop.f32.mrf.mxu0
      %4218 = vmatprep.mubr.f32.mxu0 %v4067
      %4219 = vmatmul.mubr.f32.gmra.mxu0 %v4043
      %v4220 = vpop.f32.mrf.mxu0
      %v4221 = vadd.f32 %v4111, %v4220
      %v4222 = vpop.f32.mrf.mxu0
      %4223 = vmatprep.mubr.f32.mxu0 %v4068
      %4224 = vmatmul.mubr.f32.gmra.mxu0 %v4044
      %v4225 = vpop.f32.mrf.mxu0
      %v4226 = vadd.f32 %v4111, %v4225
      %v4227 = vpop.f32.mrf.mxu0
      %4228 = vmatprep.mubr.f32.mxu0 %v4069
      %4229 = vmatmul.mubr.f32.gmra.mxu0 %v4045
      %v4230 = vpop.f32.mrf.mxu0
      %v4231 = vadd.f32 %v4111, %v4230
      %v4232 = vpop.f32.mrf.mxu0
      %4233 = vdwg.mxu0
      %4234 = vmatprep.subr.mxu0 0.0
      %4235 = vmatpush1.msra.mxu0 0.0
      %4236 = vmatprep.subr.mxu0 0.0
      %4237 = vmatpush1.msra.mxu0 0.0
      %4238 = vmatprep.subr.mxu0 0.0
      %4239 = vmatpush1.msra.mxu0 0.0
      %4240 = vmatprep.subr.mxu0 0.0
      %4241 = vmatpush1.msra.mxu0 0.0
      %4242 = vmatprep.subr.mxu0 0.0
      %4243 = vmatpush1.msra.mxu0 0.0
      %4244 = vmatprep.subr.mxu0 0.0
      %4245 = vmatpush1.msra.mxu0 0.0
      %4246 = vmatprep.subr.mxu0 0.0
      %4247 = vmatpush1.msra.mxu0 0.0
      %4248 = vmatprep.subr.mxu0 0.0
      %4249 = vmatpush1.msra.mxu0 0.0
      %4250 = vmatprep.subr.mxu0 0.0
      %4251 = vmatpush1.msra.mxu0 0.0
      %4252 = vmatprep.subr.mxu0 0.0
      %4253 = vmatpush1.msra.mxu0 0.0
      %4254 = vmatprep.subr.mxu0 0.0
      %4255 = vmatpush1.msra.mxu0 0.0
      %4256 = vmatprep.subr.mxu0 0.0
      %4257 = vmatpush1.msra.mxu0 0.0
      %4258 = vmatprep.subr.mxu0 0.0
      %4259 = vmatpush1.msra.mxu0 %v4105
      %4260 = vmatprep.subr.mxu0 0.0
      %4261 = vmatpush1.msra.mxu0 %v4104
      %4262 = vmatprep.subr.mxu0 0.0
      %4263 = vmatpush1.msra.mxu0 %v4103
      %4264 = vmatprep.subr.mxu0 0.0
      %4265 = vmatpush1.msra.mxu0 %v4102
      %4266 = vmatprep.subr.mxu0 0.0
      %4267 = vmatpush2.msra.mxu0 0.0
      %4268 = vmatprep.subr.mxu0 0.0
      %4269 = vmatpush2.msra.mxu0 0.0
      %4270 = vmatprep.subr.mxu0 0.0
      %4271 = vmatpush2.msra.mxu0 0.0
      %4272 = vmatprep.subr.mxu0 0.0
      %4273 = vmatpush2.msra.mxu0 0.0
      %4274 = vmatprep.subr.mxu0 0.0
      %4275 = vmatpush2.msra.mxu0 0.0
      %4276 = vmatprep.subr.mxu0 0.0
      %4277 = vmatpush2.msra.mxu0 0.0
      %4278 = vmatprep.subr.mxu0 0.0
      %4279 = vmatpush2.msra.mxu0 0.0
      %4280 = vmatprep.subr.mxu0 0.0
      %4281 = vmatpush2.msra.mxu0 0.0
      %4282 = vmatprep.subr.mxu0 0.0
      %4283 = vmatpush2.msra.mxu0 0.0
      %4284 = vmatprep.subr.mxu0 0.0
      %4285 = vmatpush2.msra.mxu0 0.0
      %4286 = vmatprep.subr.mxu0 0.0
      %4287 = vmatpush2.msra.mxu0 0.0
      %4288 = vmatprep.subr.mxu0 0.0
      %4289 = vmatpush2.msra.mxu0 0.0
      %4290 = vmatprep.subr.mxu0 0.0
      %4291 = vmatpush2.msra.mxu0 0.0
      %4292 = vmatprep.subr.mxu0 0.0
      %4293 = vmatpush2.msra.mxu0 0.0
      %4294 = vmatprep.subr.mxu0 0.0
      %4295 = vmatpush2.msra.mxu0 0.0
      %4296 = vmatprep.subr.mxu0 0.0
      %4297 = vmatpush2.msra.mxu0 0.0
      %4298 = vmatprep.mubr.f32.mxu0 0.0
      %4299 = vmatmul.mubr.f32.gmra.mxu0 %v4113
      %v4300 = vpop.f32.mrf.mxu0
      %v4301 = vadd.f32 %v4196, %v4300
      %v4302 = vpop.f32.mrf.mxu0
      %4303 = vmatprep.mubr.f32.mxu0 0.0
      %4304 = vmatmul.mubr.f32.gmra.mxu0 %v4115
      %v4305 = vpop.f32.mrf.mxu0
      %v4306 = vadd.f32 %v4201, %v4305
      %v4307 = vpop.f32.mrf.mxu0
      %4308 = vmatprep.mubr.f32.mxu0 0.0
      %4309 = vmatmul.mubr.f32.gmra.mxu0 %v4117
      %v4310 = vpop.f32.mrf.mxu0
      %v4311 = vadd.f32 %v4206, %v4310
      %v4312 = vpop.f32.mrf.mxu0
      %4313 = vmatprep.mubr.f32.mxu0 0.0
      %4314 = vmatmul.mubr.f32.gmra.mxu0 %v4119
      %v4315 = vpop.f32.mrf.mxu0
      %v4316 = vadd.f32 %v4211, %v4315
      %v4317 = vpop.f32.mrf.mxu0
      %4318 = vmatprep.mubr.f32.mxu0 0.0
      %4319 = vmatmul.mubr.f32.gmra.mxu0 %v4121
      %v4320 = vpop.f32.mrf.mxu0
      %v4321 = vadd.f32 %v4216, %v4320
      %v4322 = vpop.f32.mrf.mxu0
      %4323 = vmatprep.mubr.f32.mxu0 0.0
      %4324 = vmatmul.mubr.f32.gmra.mxu0 %v4123
      %v4325 = vpop.f32.mrf.mxu0
      %v4326 = vadd.f32 %v4221, %v4325
      %v4327 = vpop.f32.mrf.mxu0
      %4328 = vmatprep.mubr.f32.mxu0 0.0
      %4329 = vmatmul.mubr.f32.gmra.mxu0 %v4125
      %v4330 = vpop.f32.mrf.mxu0
      %v4331 = vadd.f32 %v4226, %v4330
      %v4332 = vpop.f32.mrf.mxu0
      %4333 = vmatprep.mubr.f32.mxu0 0.0
      %4334 = vmatmul.mubr.f32.gmra.mxu0 %v4127
      %v4335 = vpop.f32.mrf.mxu0
      %v4336 = vadd.f32 %v4231, %v4335
      %v4337 = vpop.f32.mrf.mxu0
      %4338 = vdwg.mxu0
      %v4339 = vmax.f32 %v4301, 0.0
      %v4340 = vmax.f32 %v4306, 0.0
      %v4341 = vmax.f32 %v4311, 0.0
      %v4342 = vmax.f32 %v4316, 0.0
      %v4343 = vmax.f32 %v4321, 0.0
      %v4344 = vmax.f32 %v4326, 0.0
      %v4345 = vmax.f32 %v4331, 0.0
      %v4346 = vmax.f32 %v4336, 0.0
      %v4355 = vcombine.high %v4339, %v4339
      %v4357 = vunpack.c.l.s4 1983009808
      %v4358 = vunpack.c.0.s8 %v4357
      %v4359 = vlaneseq
      %v4360 = vshrl.u32 %v4359, 7
      %v4361 = vsub.s32 %v4358, %v4360
      %v4362 = vrot.slane %v4339, %v4361
      %v4364 = vunpack.c.l.s4 1983009808
      %v4365 = vunpack.c.0.s8 %v4364
      %v4366 = vlaneseq
      %v4367 = vshrl.u32 %v4366, 7
      %v4368 = vsub.s32 %v4365, %v4367
      %v4369 = vrot.slane %v4355, %v4368
      %v4370 = vcombine.high %v4362, %v4362
      %v4371 = vcombine.high %v4369, %v4369
      %v4372 = vcombine.high %v4340, %v4340
      %v4374 = vunpack.c.l.s4 1983009808
      %v4375 = vunpack.c.0.s8 %v4374
      %v4376 = vlaneseq
      %v4377 = vshrl.u32 %v4376, 7
      %v4378 = vsub.s32 %v4375, %v4377
      %v4379 = vrot.slane %v4340, %v4378
      %v4381 = vunpack.c.l.s4 1983009808
      %v4382 = vunpack.c.0.s8 %v4381
      %v4383 = vlaneseq
      %v4384 = vshrl.u32 %v4383, 7
      %v4385 = vsub.s32 %v4382, %v4384
      %v4386 = vrot.slane %v4372, %v4385
      %v4387 = vcombine.high %v4379, %v4379
      %v4388 = vcombine.high %v4386, %v4386
      %v4389 = vcombine.high %v4341, %v4341
      %v4391 = vunpack.c.l.s4 1983009808
      %v4392 = vunpack.c.0.s8 %v4391
      %v4393 = vlaneseq
      %v4394 = vshrl.u32 %v4393, 7
      %v4395 = vsub.s32 %v4392, %v4394
      %v4396 = vrot.slane %v4341, %v4395
      %v4398 = vunpack.c.l.s4 1983009808
      %v4399 = vunpack.c.0.s8 %v4398
      %v4400 = vlaneseq
      %v4401 = vshrl.u32 %v4400, 7
      %v4402 = vsub.s32 %v4399, %v4401
      %v4403 = vrot.slane %v4389, %v4402
      %v4404 = vcombine.high %v4396, %v4396
      %v4405 = vcombine.high %v4403, %v4403
      %v4406 = vcombine.high %v4342, %v4342
      %v4408 = vunpack.c.l.s4 1983009808
      %v4409 = vunpack.c.0.s8 %v4408
      %v4410 = vlaneseq
      %v4411 = vshrl.u32 %v4410, 7
      %v4412 = vsub.s32 %v4409, %v4411
      %v4413 = vrot.slane %v4342, %v4412
      %v4415 = vunpack.c.l.s4 1983009808
      %v4416 = vunpack.c.0.s8 %v4415
      %v4417 = vlaneseq
      %v4418 = vshrl.u32 %v4417, 7
      %v4419 = vsub.s32 %v4416, %v4418
      %v4420 = vrot.slane %v4406, %v4419
      %v4421 = vcombine.high %v4413, %v4413
      %v4422 = vcombine.high %v4420, %v4420
      %v4423 = vcombine.high %v4343, %v4343
      %v4425 = vunpack.c.l.s4 1983009808
      %v4426 = vunpack.c.0.s8 %v4425
      %v4427 = vlaneseq
      %v4428 = vshrl.u32 %v4427, 7
      %v4429 = vsub.s32 %v4426, %v4428
      %v4430 = vrot.slane %v4343, %v4429
      %v4432 = vunpack.c.l.s4 1983009808
      %v4433 = vunpack.c.0.s8 %v4432
      %v4434 = vlaneseq
      %v4435 = vshrl.u32 %v4434, 7
      %v4436 = vsub.s32 %v4433, %v4435
      %v4437 = vrot.slane %v4423, %v4436
      %v4438 = vcombine.high %v4430, %v4430
      %v4439 = vcombine.high %v4437, %v4437
      %v4440 = vcombine.high %v4344, %v4344
      %v4442 = vunpack.c.l.s4 1983009808
      %v4443 = vunpack.c.0.s8 %v4442
      %v4444 = vlaneseq
      %v4445 = vshrl.u32 %v4444, 7
      %v4446 = vsub.s32 %v4443, %v4445
      %v4447 = vrot.slane %v4344, %v4446
      %v4449 = vunpack.c.l.s4 1983009808
      %v4450 = vunpack.c.0.s8 %v4449
      %v4451 = vlaneseq
      %v4452 = vshrl.u32 %v4451, 7
      %v4453 = vsub.s32 %v4450, %v4452
      %v4454 = vrot.slane %v4440, %v4453
      %v4455 = vcombine.high %v4447, %v4447
      %v4456 = vcombine.high %v4454, %v4454
      %v4457 = vcombine.high %v4345, %v4345
      %v4459 = vunpack.c.l.s4 1983009808
      %v4460 = vunpack.c.0.s8 %v4459
      %v4461 = vlaneseq
      %v4462 = vshrl.u32 %v4461, 7
      %v4463 = vsub.s32 %v4460, %v4462
      %v4464 = vrot.slane %v4345, %v4463
      %v4466 = vunpack.c.l.s4 1983009808
      %v4467 = vunpack.c.0.s8 %v4466
      %v4468 = vlaneseq
      %v4469 = vshrl.u32 %v4468, 7
      %v4470 = vsub.s32 %v4467, %v4469
      %v4471 = vrot.slane %v4457, %v4470
      %v4472 = vcombine.high %v4464, %v4464
      %v4473 = vcombine.high %v4471, %v4471
      %v4474 = vcombine.high %v4346, %v4346
      %v4476 = vunpack.c.l.s4 1983009808
      %v4477 = vunpack.c.0.s8 %v4476
      %v4478 = vlaneseq
      %v4479 = vshrl.u32 %v4478, 7
      %v4480 = vsub.s32 %v4477, %v4479
      %v4481 = vrot.slane %v4346, %v4480
      %v4483 = vunpack.c.l.s4 1983009808
      %v4484 = vunpack.c.0.s8 %v4483
      %v4485 = vlaneseq
      %v4486 = vshrl.u32 %v4485, 7
      %v4487 = vsub.s32 %v4484, %v4486
      %v4488 = vrot.slane %v4474, %v4487
      %v4489 = vcombine.high %v4481, %v4481
      %v4490 = vcombine.high %v4488, %v4488
      %v4523 = vrot.slane %v4362, 7
      %v4524 = vrot.slane %v4523, 2
      %v4525 = vrot.slane %v4370, 7
      %v4526 = vrot.slane %v4525, 2
      %v4527 = vrot.slane %v4369, 7
      %v4528 = vrot.slane %v4527, 2
      %v4529 = vrot.slane %v4371, 7
      %v4530 = vrot.slane %v4529, 2
      %v4531 = vrot.slane %v4396, 7
      %v4532 = vrot.slane %v4531, 2
      %v4533 = vrot.slane %v4404, 7
      %v4534 = vrot.slane %v4533, 2
      %v4535 = vrot.slane %v4403, 7
      %v4536 = vrot.slane %v4535, 2
      %v4537 = vrot.slane %v4405, 7
      %v4538 = vrot.slane %v4537, 2
      %v4539 = vrot.slane %v4430, 7
      %v4540 = vrot.slane %v4539, 2
      %v4541 = vrot.slane %v4438, 7
      %v4542 = vrot.slane %v4541, 2
      %v4543 = vrot.slane %v4437, 7
      %v4544 = vrot.slane %v4543, 2
      %v4545 = vrot.slane %v4439, 7
      %v4546 = vrot.slane %v4545, 2
      %v4547 = vrot.slane %v4464, 7
      %v4548 = vrot.slane %v4547, 2
      %v4549 = vrot.slane %v4472, 7
      %v4550 = vrot.slane %v4549, 2
      %v4551 = vrot.slane %v4471, 7
      %v4552 = vrot.slane %v4551, 2
      %v4553 = vrot.slane %v4473, 7
      %v4554 = vrot.slane %v4553, 2
      %v4571 = vmax.f32 %v4362, %v4524
      %v4572 = vmax.f32 %v4370, %v4526
      %v4573 = vmax.f32 %v4369, %v4528
      %v4574 = vmax.f32 %v4371, %v4530
      %v4575 = vmax.f32 %v4396, %v4532
      %v4576 = vmax.f32 %v4404, %v4534
      %v4577 = vmax.f32 %v4403, %v4536
      %v4578 = vmax.f32 %v4405, %v4538
      %v4579 = vmax.f32 %v4430, %v4540
      %v4580 = vmax.f32 %v4438, %v4542
      %v4581 = vmax.f32 %v4437, %v4544
      %v4582 = vmax.f32 %v4439, %v4546
      %v4583 = vmax.f32 %v4464, %v4548
      %v4584 = vmax.f32 %v4472, %v4550
      %v4585 = vmax.f32 %v4471, %v4552
      %v4586 = vmax.f32 %v4473, %v4554
      %v4587 = vrot.slane %v4379, 7
      %v4588 = vrot.slane %v4587, 2
      %v4589 = vrot.slane %v4387, 7
      %v4590 = vrot.slane %v4589, 2
      %v4591 = vrot.slane %v4386, 7
      %v4592 = vrot.slane %v4591, 2
      %v4593 = vrot.slane %v4388, 7
      %v4594 = vrot.slane %v4593, 2
      %v4595 = vrot.slane %v4413, 7
      %v4596 = vrot.slane %v4595, 2
      %v4597 = vrot.slane %v4421, 7
      %v4598 = vrot.slane %v4597, 2
      %v4599 = vrot.slane %v4420, 7
      %v4600 = vrot.slane %v4599, 2
      %v4601 = vrot.slane %v4422, 7
      %v4602 = vrot.slane %v4601, 2
      %v4603 = vrot.slane %v4447, 7
      %v4604 = vrot.slane %v4603, 2
      %v4605 = vrot.slane %v4455, 7
      %v4606 = vrot.slane %v4605, 2
      %v4607 = vrot.slane %v4454, 7
      %v4608 = vrot.slane %v4607, 2
      %v4609 = vrot.slane %v4456, 7
      %v4610 = vrot.slane %v4609, 2
      %v4611 = vrot.slane %v4481, 7
      %v4612 = vrot.slane %v4611, 2
      %v4613 = vrot.slane %v4489, 7
      %v4614 = vrot.slane %v4613, 2
      %v4615 = vrot.slane %v4488, 7
      %v4616 = vrot.slane %v4615, 2
      %v4617 = vrot.slane %v4490, 7
      %v4618 = vrot.slane %v4617, 2
      %v4635 = vmax.f32 %v4379, %v4588
      %v4636 = vmax.f32 %v4387, %v4590
      %v4637 = vmax.f32 %v4386, %v4592
      %v4638 = vmax.f32 %v4388, %v4594
      %v4639 = vmax.f32 %v4413, %v4596
      %v4640 = vmax.f32 %v4421, %v4598
      %v4641 = vmax.f32 %v4420, %v4600
      %v4642 = vmax.f32 %v4422, %v4602
      %v4643 = vmax.f32 %v4447, %v4604
      %v4644 = vmax.f32 %v4455, %v4606
      %v4645 = vmax.f32 %v4454, %v4608
      %v4646 = vmax.f32 %v4456, %v4610
      %v4647 = vmax.f32 %v4481, %v4612
      %v4648 = vmax.f32 %v4489, %v4614
      %v4649 = vmax.f32 %v4488, %v4616
      %v4650 = vmax.f32 %v4490, %v4618
      %v4651 = vmax.f32 %v4571, %v4635
      %v4652 = vmax.f32 %v4572, %v4636
      %v4653 = vmax.f32 %v4573, %v4637
      %v4654 = vmax.f32 %v4574, %v4638
      %v4655 = vmax.f32 %v4575, %v4639
      %v4656 = vmax.f32 %v4576, %v4640
      %v4657 = vmax.f32 %v4577, %v4641
      %v4658 = vmax.f32 %v4578, %v4642
      %v4659 = vmax.f32 %v4579, %v4643
      %v4660 = vmax.f32 %v4580, %v4644
      %v4661 = vmax.f32 %v4581, %v4645
      %v4662 = vmax.f32 %v4582, %v4646
      %v4663 = vmax.f32 %v4583, %v4647
      %v4664 = vmax.f32 %v4584, %v4648
      %v4665 = vmax.f32 %v4585, %v4649
      %v4666 = vmax.f32 %v4586, %v4650
      %v4667 = vld [vmem:[%s5] sm:$0xff]
      %v4668 = vld [vmem:[%s5 + $0x8] sm:$0xff]
      %v4669 = vld [vmem:[%s5 + $0x10] sm:$0xff]
      %v4670 = vld [vmem:[%s5 + $0x18] sm:$0xff]
      %v4671 = vld [vmem:[%s5 + $0x20] sm:$0xff]
      %v4672 = vld [vmem:[%s5 + $0x28] sm:$0xff]
      %v4673 = vld [vmem:[%s5 + $0x30] sm:$0xff]
      %v4674 = vld [vmem:[%s5 + $0x38] sm:$0xff]
      %v4675 = vld [vmem:[%s6] sm:$0x1]
      %v4677 = vlaneseq
      %v4678 = vshrl.u32 %v4677, 7
      %v4679 = vsub.s32 0, %v4678
      %v4680 = vrot.slane %v4675, %v4679
      %v4698 = vlaneseq
      %v4699 = vshrl.u32 %v4698, 7
      %v4700 = vsub.s32 0, %v4699
      %v4701 = vrot.slane %v4651, %v4700
      %v4702 = vlaneseq
      %v4703 = vshrl.u32 %v4702, 7
      %v4704 = vsub.s32 0, %v4703
      %v4705 = vrot.slane %v4652, %v4704
      %v4706 = vlaneseq
      %v4707 = vshrl.u32 %v4706, 7
      %v4708 = vsub.s32 0, %v4707
      %v4709 = vrot.slane %v4653, %v4708
      %v4710 = vlaneseq
      %v4711 = vshrl.u32 %v4710, 7
      %v4712 = vsub.s32 0, %v4711
      %v4713 = vrot.slane %v4654, %v4712
      %v4714 = vlaneseq
      %v4715 = vshrl.u32 %v4714, 7
      %v4716 = vsub.s32 0, %v4715
      %v4717 = vrot.slane %v4655, %v4716
      %v4718 = vlaneseq
      %v4719 = vshrl.u32 %v4718, 7
      %v4720 = vsub.s32 0, %v4719
      %v4721 = vrot.slane %v4656, %v4720
      %v4722 = vlaneseq
      %v4723 = vshrl.u32 %v4722, 7
      %v4724 = vsub.s32 0, %v4723
      %v4725 = vrot.slane %v4657, %v4724
      %v4726 = vlaneseq
      %v4727 = vshrl.u32 %v4726, 7
      %v4728 = vsub.s32 0, %v4727
      %v4729 = vrot.slane %v4658, %v4728
      %v4730 = vlaneseq
      %v4731 = vshrl.u32 %v4730, 7
      %v4732 = vsub.s32 0, %v4731
      %v4733 = vrot.slane %v4659, %v4732
      %v4734 = vlaneseq
      %v4735 = vshrl.u32 %v4734, 7
      %v4736 = vsub.s32 0, %v4735
      %v4737 = vrot.slane %v4660, %v4736
      %v4738 = vlaneseq
      %v4739 = vshrl.u32 %v4738, 7
      %v4740 = vsub.s32 0, %v4739
      %v4741 = vrot.slane %v4661, %v4740
      %v4742 = vlaneseq
      %v4743 = vshrl.u32 %v4742, 7
      %v4744 = vsub.s32 0, %v4743
      %v4745 = vrot.slane %v4662, %v4744
      %v4746 = vlaneseq
      %v4747 = vshrl.u32 %v4746, 7
      %v4748 = vsub.s32 0, %v4747
      %v4749 = vrot.slane %v4663, %v4748
      %v4750 = vlaneseq
      %v4751 = vshrl.u32 %v4750, 7
      %v4752 = vsub.s32 0, %v4751
      %v4753 = vrot.slane %v4664, %v4752
      %v4754 = vlaneseq
      %v4755 = vshrl.u32 %v4754, 7
      %v4756 = vsub.s32 0, %v4755
      %v4757 = vrot.slane %v4665, %v4756
      %v4758 = vlaneseq
      %v4759 = vshrl.u32 %v4758, 7
      %v4760 = vsub.s32 0, %v4759
      %v4761 = vrot.slane %v4666, %v4760
      %vm4762 = vcmask 1041409
      %v4763 = vsel %vm4762, %v4705, %v4701
      %v4764 = vsel %vm3717, %v4709, %v4763
      %v4765 = vsel %vm3719, %v4713, %v4764
      %v4766 = vsel %vm3721, %v4717, %v4765
      %v4767 = vsel %vm3723, %v4721, %v4766
      %v4768 = vsel %vm3725, %v4725, %v4767
      %v4769 = vsel %vm3727, %v4729, %v4768
      %v4770 = vsel %vm4762, %v4737, %v4733
      %v4771 = vsel %vm3717, %v4741, %v4770
      %v4772 = vsel %vm3719, %v4745, %v4771
      %v4773 = vsel %vm3721, %v4749, %v4772
      %v4774 = vsel %vm3723, %v4753, %v4773
      %v4775 = vsel %vm3725, %v4757, %v4774
      %v4776 = vsel %vm3727, %v4761, %v4775
      %v4777 = vsel %vm4028, %v4769, 0
      %v4779 = vsel %vm4028, %v4776, 0
      %4781 = vmatprep.subr.mxu0 0.0
      %4782 = vmatpush1.msra.mxu0 0.0
      %4783 = vmatprep.subr.mxu0 0.0
      %4784 = vmatpush1.msra.mxu0 0.0
      %4785 = vmatprep.subr.mxu0 0.0
      %4786 = vmatpush1.msra.mxu0 0.0
      %4787 = vmatprep.subr.mxu0 0.0
      %4788 = vmatpush1.msra.mxu0 0.0
      %4789 = vmatprep.subr.mxu0 0.0
      %4790 = vmatpush1.msra.mxu0 0.0
      %4791 = vmatprep.subr.mxu0 0.0
      %4792 = vmatpush1.msra.mxu0 0.0
      %4793 = vmatprep.subr.mxu0 0.0
      %4794 = vmatpush1.msra.mxu0 0.0
      %4795 = vmatprep.subr.mxu0 0.0
      %4796 = vmatpush1.msra.mxu0 0.0
      %4797 = vmatprep.subr.mxu0 0.0
      %4798 = vmatpush1.msra.mxu0 %v4674
      %4799 = vmatprep.subr.mxu0 0.0
      %4800 = vmatpush1.msra.mxu0 %v4673
      %4801 = vmatprep.subr.mxu0 0.0
      %4802 = vmatpush1.msra.mxu0 %v4672
      %4803 = vmatprep.subr.mxu0 0.0
      %4804 = vmatpush1.msra.mxu0 %v4671
      %4805 = vmatprep.subr.mxu0 0.0
      %4806 = vmatpush1.msra.mxu0 %v4670
      %4807 = vmatprep.subr.mxu0 0.0
      %4808 = vmatpush1.msra.mxu0 %v4669
      %4809 = vmatprep.subr.mxu0 0.0
      %4810 = vmatpush1.msra.mxu0 %v4668
      %4811 = vmatprep.subr.mxu0 0.0
      %4812 = vmatpush1.msra.mxu0 %v4667
      %4813 = vmatprep.subr.mxu0 0.0
      %4814 = vmatpush2.msra.mxu0 0.0
      %4815 = vmatprep.subr.mxu0 0.0
      %4816 = vmatpush2.msra.mxu0 0.0
      %4817 = vmatprep.subr.mxu0 0.0
      %4818 = vmatpush2.msra.mxu0 0.0
      %4819 = vmatprep.subr.mxu0 0.0
      %4820 = vmatpush2.msra.mxu0 0.0
      %4821 = vmatprep.subr.mxu0 0.0
      %4822 = vmatpush2.msra.mxu0 0.0
      %4823 = vmatprep.subr.mxu0 0.0
      %4824 = vmatpush2.msra.mxu0 0.0
      %4825 = vmatprep.subr.mxu0 0.0
      %4826 = vmatpush2.msra.mxu0 0.0
      %4827 = vmatprep.subr.mxu0 0.0
      %4828 = vmatpush2.msra.mxu0 0.0
      %4829 = vmatprep.subr.mxu0 0.0
      %4830 = vmatpush2.msra.mxu0 0.0
      %4831 = vmatprep.subr.mxu0 0.0
      %4832 = vmatpush2.msra.mxu0 0.0
      %4833 = vmatprep.subr.mxu0 0.0
      %4834 = vmatpush2.msra.mxu0 0.0
      %4835 = vmatprep.subr.mxu0 0.0
      %4836 = vmatpush2.msra.mxu0 0.0
      %4837 = vmatprep.subr.mxu0 0.0
      %4838 = vmatpush2.msra.mxu0 0.0
      %4839 = vmatprep.subr.mxu0 0.0
      %4840 = vmatpush2.msra.mxu0 0.0
      %4841 = vmatprep.subr.mxu0 0.0
      %4842 = vmatpush2.msra.mxu0 0.0
      %4843 = vmatprep.subr.mxu0 0.0
      %4844 = vmatpush2.msra.mxu0 0.0
      %4845 = vmatprep.mubr.f32.mxu0 0.0
      %4846 = vmatmul.mubr.f32.gmra.mxu0 %v4777
      %v4847 = vpop.f32.mrf.mxu0
      %v4848 = vadd.f32 %v4680, %v4847
      %v4849 = vpop.f32.mrf.mxu0
      %4850 = vmatprep.mubr.f32.mxu0 0.0
      %4851 = vmatmul.mubr.f32.gmra.mxu0 %v4779
      %v4852 = vpop.f32.mrf.mxu0
      %v4853 = vadd.f32 %v4680, %v4852
      %v4854 = vpop.f32.mrf.mxu0
      %4855 = vdwg.mxu0
      %v4856 = vmax.f32 %v4848, 0.0
      %v4857 = vmax.f32 %v4853, 0.0
      %v4858 = vld [vmem:[%s7] sm:$0xff]
      %v4859 = vld [vmem:[%s7 + $0x8] sm:$0xff]
      %v4860 = vld [vmem:[%s7 + $0x10] sm:$0xff]
      %v4861 = vld [vmem:[%s7 + $0x18] sm:$0xff]
      %v4862 = vld [vmem:[%s7 + $0x20] sm:$0xff]
      %v4863 = vld [vmem:[%s7 + $0x28] sm:$0xff]
      %v4864 = vld [vmem:[%s7 + $0x30] sm:$0xff]
      %v4865 = vld [vmem:[%s7 + $0x38] sm:$0xff]
      %v4866 = vld [vmem:[%s7 + $0x40] sm:$0xff]
      %v4867 = vld [vmem:[%s7 + $0x48] sm:$0xff]
      %v4868 = vld [vmem:[%s7 + $0x50] sm:$0xff]
      %v4869 = vld [vmem:[%s7 + $0x58] sm:$0xff]
      %v4870 = vld [vmem:[%s7 + $0x60] sm:$0xff]
      %v4871 = vld [vmem:[%s7 + $0x68] sm:$0xff]
      %v4872 = vld [vmem:[%s7 + $0x70] sm:$0xff]
      %v4873 = vld [vmem:[%s7 + $0x78] sm:$0xff]
      %v4874 = vld [vmem:[%s8] sm:$0x1]
      %v4876 = vlaneseq
      %v4877 = vshrl.u32 %v4876, 7
      %v4878 = vsub.s32 0, %v4877
      %v4879 = vrot.slane %v4874, %v4878
      %4881 = vmatprep.subr.mxu0 0.0
      %4882 = vmatpush1.msra.mxu0 %v4873
      %4883 = vmatprep.subr.mxu0 0.0
      %4884 = vmatpush1.msra.mxu0 %v4872
      %4885 = vmatprep.subr.mxu0 0.0
      %4886 = vmatpush1.msra.mxu0 %v4871
      %4887 = vmatprep.subr.mxu0 0.0
      %4888 = vmatpush1.msra.mxu0 %v4870
      %4889 = vmatprep.subr.mxu0 0.0
      %4890 = vmatpush1.msra.mxu0 %v4869
      %4891 = vmatprep.subr.mxu0 0.0
      %4892 = vmatpush1.msra.mxu0 %v4868
      %4893 = vmatprep.subr.mxu0 0.0
      %4894 = vmatpush1.msra.mxu0 %v4867
      %4895 = vmatprep.subr.mxu0 0.0
      %4896 = vmatpush1.msra.mxu0 %v4866
      %4897 = vmatprep.subr.mxu0 0.0
      %4898 = vmatpush1.msra.mxu0 %v4865
      %4899 = vmatprep.subr.mxu0 0.0
      %4900 = vmatpush1.msra.mxu0 %v4864
      %4901 = vmatprep.subr.mxu0 0.0
      %4902 = vmatpush1.msra.mxu0 %v4863
      %4903 = vmatprep.subr.mxu0 0.0
      %4904 = vmatpush1.msra.mxu0 %v4862
      %4905 = vmatprep.subr.mxu0 0.0
      %4906 = vmatpush1.msra.mxu0 %v4861
      %4907 = vmatprep.subr.mxu0 0.0
      %4908 = vmatpush1.msra.mxu0 %v4860
      %4909 = vmatprep.subr.mxu0 0.0
      %4910 = vmatpush1.msra.mxu0 %v4859
      %4911 = vmatprep.subr.mxu0 0.0
      %4912 = vmatpush1.msra.mxu0 %v4858
      %4913 = vmatprep.subr.mxu0 0.0
      %4914 = vmatpush2.msra.mxu0 0.0
      %4915 = vmatprep.subr.mxu0 0.0
      %4916 = vmatpush2.msra.mxu0 0.0
      %4917 = vmatprep.subr.mxu0 0.0
      %4918 = vmatpush2.msra.mxu0 0.0
      %4919 = vmatprep.subr.mxu0 0.0
      %4920 = vmatpush2.msra.mxu0 0.0
      %4921 = vmatprep.subr.mxu0 0.0
      %4922 = vmatpush2.msra.mxu0 0.0
      %4923 = vmatprep.subr.mxu0 0.0
      %4924 = vmatpush2.msra.mxu0 0.0
      %4925 = vmatprep.subr.mxu0 0.0
      %4926 = vmatpush2.msra.mxu0 0.0
      %4927 = vmatprep.subr.mxu0 0.0
      %4928 = vmatpush2.msra.mxu0 0.0
      %4929 = vmatprep.subr.mxu0 0.0
      %4930 = vmatpush2.msra.mxu0 0.0
      %4931 = vmatprep.subr.mxu0 0.0
      %4932 = vmatpush2.msra.mxu0 0.0
      %4933 = vmatprep.subr.mxu0 0.0
      %4934 = vmatpush2.msra.mxu0 0.0
      %4935 = vmatprep.subr.mxu0 0.0
      %4936 = vmatpush2.msra.mxu0 0.0
      %4937 = vmatprep.subr.mxu0 0.0
      %4938 = vmatpush2.msra.mxu0 0.0
      %4939 = vmatprep.subr.mxu0 0.0
      %4940 = vmatpush2.msra.mxu0 0.0
      %4941 = vmatprep.subr.mxu0 0.0
      %4942 = vmatpush2.msra.mxu0 0.0
      %4943 = vmatprep.subr.mxu0 0.0
      %4944 = vmatpush2.msra.mxu0 0.0
      %4945 = vmatprep.mubr.f32.mxu0 0.0
      %4946 = vmatmul.mubr.f32.gmra.mxu0 %v4856
      %v4947 = vpop.f32.mrf.mxu0
      %v4948 = vadd.f32 %v4879, %v4947
      %v4949 = vpop.f32.mrf.mxu0
      %4950 = vmatprep.mubr.f32.mxu0 0.0
      %4951 = vmatmul.mubr.f32.gmra.mxu0 %v4857
      %v4952 = vpop.f32.mrf.mxu0
      %v4953 = vadd.f32 %v4879, %v4952
      %v4954 = vpop.f32.mrf.mxu0
      %4955 = vdwg.mxu0
      %v4956 = vxor.u32 %v4948, 2147483648
      %v4957 = vxor.u32 %v4953, 2147483648
      %v4958 = vmul.f32 %v4956, 1.442695
      %v4959 = vpow.pop %v4958
      %v4960 = vmul.f32 %v4957, 1.442695
      %v4961 = vpow.pop %v4960
      %v4962 = vadd.f32 %v4959, 1.0
      %v4963 = vadd.f32 %v4961, 1.0
      %v4964 = vrcp.pop %v4962
      %v4965 = vmul.f32 1.0, %v4964
      %v4966 = vrcp.pop %v4963
      %v4967 = vmul.f32 1.0, %v4966
      %vm4968 = vcmask 130048
      %4969 = vst.msk [vmem:[%s332] sm:$0xff] %vm4968, %v4965
      %4970 = vst.msk [vmem:[%s332 + $0x8] sm:$0xff] %vm4968, %v4967
      %p4971 = scmp.lt.s32.totalorder %s20, 1
      %s4972 = scalar_select %p4971, %s20, 1
      %s4973 = smul.addr %s4972, 2
      %s4974 = smul.addr %s4973, 8
      %s4975 = scalar_lea.vmem %s9, %s4974
      // Predicated region
      $region57: #{segmentation_forward.1} parent=55 // pred_check
        %p4976 = pneg %p232
      $region58: #{segmentation_forward.1} parent=55 // pred_check_branch
        %4978 = sbr.rel (%p4976) target = $region60
      $region59: #{segmentation_forward.1} parent=55 // pred_region
        _
      $region60: #{segmentation_forward.1} parent=55 // pred_fallthru
        _
    $region56: #{segmentation_forward.1} parent=5 // pred_fallthru
      _
    %p4979 = scmp.le.s32.totalorder 2, %s15
    // Predicated region
    $region61: #{segmentation_forward.1} parent=5 // pred_check
      %p4980 = pneg %p4979
    $region62: #{segmentation_forward.1} parent=5 // pred_check_branch
      %4982 = sbr.rel (%p4980) target = $region64
    $region63: #{segmentation_forward.1} parent=5 // pred_region
      %s4983 = ssub.s32 %s15, 2
      // Predicated region
      $region65: #{segmentation_forward.1} parent=63 // pred_check
        %p4984 = pneg %p238
      $region66: #{segmentation_forward.1} parent=63 // pred_check_branch
        %4986 = sbr.rel (%p4984) target = $region68
      $region67: #{segmentation_forward.1} parent=63 // pred_region
        %p4987 = scmp.lt.s32.totalorder %s21, 1
        %s4988 = scalar_select %p4987, %s21, 1
        %s4989 = smul.addr %s4988, 2
        %s4990 = smul.addr %s4989, 8
        %s4991 = scalar_lea.vmem %s9, %s4990
      $region68: #{segmentation_forward.1} parent=63 // pred_fallthru
        _
    $region64: #{segmentation_forward.1} parent=5 // pred_fallthru
      _
  $region6: #{segmentation_forward.1} parent=0 // loop_footer
    %s19 = sadd.s32 1, %s15
  $region7: #{segmentation_forward.1} parent=0 // loop_footer_branch
    %14 = sbr.rel target = $region3
  $region8: #{segmentation_forward.1} parent=0 // loop_exit
    _

</llo_original>
